<compile_context>
chip_gen: v6e
topology: v6e:2x2x1
jax: 0.10.0
libtpu: 0.0.40
codegen_flags: <defaults>
</compile_context>

<pallas_src>
import jax
import jax.numpy as jnp
from jax import lax
from jax.experimental import pallas as pl
from jax.experimental.pallas import tpu as pltpu


def make_resblock_kernel(Rp, Rext, C, M, tap_offsets, count):
    inv_count = 1.0 / float(count)
    eps = 1e-5
    Rh = Rp // 2
    C2 = 2 * C

    def kernel(xe_ref, xres_ref, mask_ref, maskp_ref,
               w1_ref, g1_ref, be1_ref,
               w2_ref, g2p_ref, be2p_ref,
               out_ref, y1e_ref):
        # Hoisted lane-broadcast of the interior-pixel mask (reused 3x in BN1 path).
        mask_b = jnp.broadcast_to(mask_ref[...], (Rp, C))

        def conv3x3(src_bf16, w_ref):
            # 3 matmul chunks of 3 taps each: (Rext,C)x(C,3C) -> keeps the live f32
            # P temporary at (Rext, 3C) instead of (Rext, 9C); MXU is not the binder.
            acc = None
            for chunk in range(3):
                p = jnp.dot(src_bf16, w_ref[chunk],
                            preferred_element_type=jnp.float32)
                for t in range(3):
                    off = tap_offsets[3 * chunk + t]
                    s = p[M + off:M + off + Rp, t * C:(t + 1) * C]
                    acc = s if acc is None else acc + s
            return acc

        # ---- conv1 -> bn1 -> relu, (Rp, C) space ----
        acc1 = conv3x3(xe_ref[...], w1_ref)
        mean1 = jnp.sum(acc1 * mask_b, axis=0, keepdims=True) * inv_count
        c1 = acc1 - mean1                                   # computed once, reused
        d1 = c1 * mask_b
        var1 = jnp.sum(d1 * d1, axis=0, keepdims=True) * inv_count
        scale1 = lax.rsqrt(var1 + eps) * g1_ref[...]        # fold scale before broadcast
        y1 = jnp.maximum(c1 * scale1 + be1_ref[...], 0.0) * mask_b  # mask: conv2 needs zero pads

        # Stage y1 (bf16) for conv2: only the top/bottom M margin rows need zeroing;
        # interior rows are fully overwritten and pad pixels are zero via mask_b.
        y1e_ref[0:M, :] = jnp.zeros((M, C), jnp.bfloat16)
        y1e_ref[M + Rp:Rext, :] = jnp.zeros((M, C), jnp.bfloat16)
        y1e_ref[M:M + Rp, :] = y1.astype(jnp.bfloat16)

        # ---- conv2 -> bn2 -> residual, lane-dense (Rp/2, 2C)=128-lane packed epilogue ----
        acc2 = conv3x3(y1e_ref[...], w2_ref)
        # Pack pixel rows [0,Rh) into lanes 0..C-1 and rows [Rh,Rp) into lanes C..2C-1.
        acc2p = jnp.concatenate([acc2[:Rh, :], acc2[Rh:, :]], axis=1)     # (Rh, 2C)
        mask_p = maskp_ref[...]
        s2 = jnp.sum(acc2p * mask_p, axis=0, keepdims=True)               # (1, 2C)
        mean2 = (s2 + pltpu.roll(s2, shift=C, axis=1)) * inv_count        # fold halves
        c2 = acc2p - mean2
        d2 = c2 * mask_p
        v2 = jnp.sum(d2 * d2, axis=0, keepdims=True)
        var2 = (v2 + pltpu.roll(v2, shift=C, axis=1)) * inv_count
        scale2 = lax.rsqrt(var2 + eps) * g2p_ref[...]
        # Residual add; no pad-mask multiply (wrapper crops the pad ring anyway).
        out_ref[...] = (c2 * scale2 + be2p_ref[...] + xres_ref[...]).astype(out_ref.dtype)

    return kernel


def _vmem_limit_bytes():
    # ~7/8 of physical VMEM, capped at 100 MiB (leaves headroom on 64 MiB v7x parts).
    try:
        phys = int(pltpu.get_tpu_info().vmem_capacity_bytes)
    except Exception:
        phys = 64 * 1024 * 1024   # conservative fallback
    return max(32 * 1024 * 1024, min(phys * 7 // 8, 100 * 1024 * 1024))


def residual_block_pallas(x_nchw, w1, b1, g1, be1, w2, b2, g2, be2):
    # b1/b2 accepted for API parity with the PyTorch module; they cancel exactly
    # under training-mode (batch-statistic) BatchNorm and are not used.
    del b1, b2
    N, C, H, W = x_nchw.shape
    Hp, Wp = H + 2, W + 2
    R = N * Hp * Wp
    Rp = ((R + 15) // 16) * 16          # even + sublane-aligned for the packed epilogue
    Rh = Rp // 2
    # Margin must cover the largest tap shift (Wp + 1); keep it 8-aligned.
    M = ((Wp + 1 + 7) // 8) * 8
    Rext = Rp + 2 * M

    # ---- glue: NCHW -> zero-padded flattened NHWC rows ----
    x_nhwc = jnp.transpose(x_nchw, (0, 2, 3, 1)).astype(jnp.float32)
    xpad = jnp.pad(x_nhwc, ((0, 0), (1, 1), (1, 1), (0, 0)))
    xflat = jnp.pad(xpad.reshape(R, C), ((0, Rp - R), (0, 0)))
    xext = jnp.pad(xflat, ((M, M), (0, 0))).astype(jnp.bfloat16)    # bf16 matmul operand
    # Packed f32 residual: first half of pixel rows in lanes 0..C-1, second half in C..2C-1.
    xres_p = jnp.concatenate([xflat[:Rh, :], xflat[Rh:, :]], axis=1)

    hh = jnp.arange(Hp)
    ww = jnp.arange(Wp)
    interior = ((hh[:, None] >= 1) & (hh[:, None] <= H) &
                (ww[None, :] >= 1) & (ww[None, :] <= W))
    mask = jnp.broadcast_to(interior[None], (N, Hp, Wp)).reshape(R, 1).astype(jnp.float32)
    mask = jnp.pad(mask, ((0, Rp - R), (0, 0)))
    mask_p = jnp.concatenate([jnp.broadcast_to(mask[:Rh, :], (Rh, C)),
                              jnp.broadcast_to(mask[Rh:, :], (Rh, C))], axis=1)

    tap_offsets = [(dh - 1) * Wp + (dw - 1) for dh in range(3) for dw in range(3)]

    def cat_taps(w):  # (3,3,Cin,Cout) HWIO -> (3 chunks, Cin, 3*Cout), bf16 for the MXU
        wk = w.reshape(9, C, C)                                   # (tap, Cin, Cout)
        wcat = jnp.transpose(wk, (1, 0, 2)).reshape(C, 9 * C)     # (Cin, 9*Cout)
        return wcat.reshape(C, 3, 3 * C).transpose(1, 0, 2).astype(jnp.bfloat16)

    w1_k, w2_k = cat_taps(w1), cat_taps(w2)
    g1_k = g1.reshape(1, C).astype(jnp.float32)
    be1_k = be1.reshape(1, C).astype(jnp.float32)
    g2_p = jnp.concatenate([g2.reshape(1, C)] * 2, axis=1).astype(jnp.float32)
    be2_p = jnp.concatenate([be2.reshape(1, C)] * 2, axis=1).astype(jnp.float32)

    kernel = make_resblock_kernel(Rp, Rext, C, M, tap_offsets, count=N * H * W)

    vmem_spec = pl.BlockSpec(memory_space=pltpu.MemorySpace.VMEM)
    out_p = pl.pallas_call(
        kernel,
        out_shape=jax.ShapeDtypeStruct((Rh, 2 * C), jnp.float32),   # 128-lane-dense output
        in_specs=[vmem_spec] * 10,
        out_specs=vmem_spec,
        scratch_shapes=[pltpu.VMEM((Rext, C), jnp.bfloat16)],
        compiler_params=pltpu.CompilerParams(vmem_limit_bytes=_vmem_limit_bytes()),
    )(xext, xres_p, mask, mask_p, w1_k, g1_k, be1_k, w2_k, g2_p, be2_p)

    # ---- glue: unpack lanes, crop pad ring, back to NCHW ----
    out_flat = jnp.concatenate([out_p[:, :C], out_p[:, C:]], axis=0)[:R]
    out = out_flat.reshape(N, Hp, Wp, C)[:, 1:1 + H, 1:1 + W, :]
    return jnp.transpose(out, (0, 3, 1, 2))


def residual_block_ref(x_nchw, w1, b1, g1, be1, w2, b2, g2, be2):
    """Pure-JAX f32 reference matching the PyTorch forward (training-mode BN)."""
    x = jnp.transpose(x_nchw, (0, 2, 3, 1)).astype(jnp.float32)  # NHWC

    def conv(v, w, b):
        return lax.conv_general_dilated(
            v, w, (1, 1), 'SAME',
            dimension_numbers=('NHWC', 'HWIO', 'NHWC'),
            precision=jax.lax.Precision.HIGHEST) + b

    def bn(v, g, be):
        m = jnp.mean(v, axis=(0, 1, 2), keepdims=True)
        var = jnp.mean((v - m) ** 2, axis=(0, 1, 2), keepdims=True)
        return (v - m) * jax.lax.rsqrt(var + 1e-5) * g + be

    y = jnp.maximum(bn(conv(x, w1, b1), g1, be1), 0.0)
    out = bn(conv(y, w2, b2), g2, be2) + x
    return jnp.transpose(out, (0, 3, 1, 2))


if __name__ == "__main__":
    N, C, H, W = 2, 64, 8, 8   # in_channels = n = 64 (module defaults), small spatial

    key = jax.random.PRNGKey(0)
    ks = jax.random.split(key, 9)
    w1 = 0.05 * jax.random.normal(ks[0], (3, 3, C, C), jnp.float32)   # HWIO
    b1 = 0.05 * jax.random.normal(ks[1], (C,), jnp.float32)
    g1 = 1.0 + 0.1 * jax.random.normal(ks[2], (C,), jnp.float32)
    be1 = 0.1 * jax.random.normal(ks[3], (C,), jnp.float32)
    w2 = 0.05 * jax.random.normal(ks[4], (3, 3, C, C), jnp.float32)
    b2 = 0.05 * jax.random.normal(ks[5], (C,), jnp.float32)
    g2 = 1.0 + 0.1 * jax.random.normal(ks[6], (C,), jnp.float32)
    be2 = 0.1 * jax.random.normal(ks[7], (C,), jnp.float32)
    x = jax.random.normal(ks[8], (N, C, H, W), jnp.float32)           # NCHW input

    fwd = jax.jit(residual_block_pallas)
    out = fwd(x, w1, b1, g1, be1, w2, b2, g2, be2)
    out = jax.block_until_ready(out)

    ref = residual_block_ref(x, w1, b1, g1, be1, w2, b2, g2, be2)
    ref = jax.block_until_ready(ref)

    if out.shape != (N, C, H, W):
        raise AssertionError(f"bad output shape {out.shape}")
    # Kernel matmuls use bf16 MXU operands with f32 accumulation / f32 BN stats;
    # reference is full-f32, so allow 2e-2.
    if not bool(jnp.allclose(out, ref, atol=2e-2, rtol=2e-2)):
        err = float(jnp.max(jnp.abs(out - ref)))
        raise AssertionError(f"mismatch vs reference, max abs err = {err}")

    print("KERNEL_OK")
</pallas_src>

<mosaic_0001>
module attributes {stable_mosaic.version = 11 : i64} {
  func.func @kernel(%arg0: memref<240x64xbf16, #tpu.memory_space<vmem>>, %arg1: memref<104x128xf32, #tpu.memory_space<vmem>>, %arg2: memref<208x1xf32, #tpu.memory_space<vmem>>, %arg3: memref<104x128xf32, #tpu.memory_space<vmem>>, %arg4: memref<3x64x192xbf16, #tpu.memory_space<vmem>>, %arg5: memref<1x64xf32, #tpu.memory_space<vmem>>, %arg6: memref<1x64xf32, #tpu.memory_space<vmem>>, %arg7: memref<3x64x192xbf16, #tpu.memory_space<vmem>>, %arg8: memref<1x128xf32, #tpu.memory_space<vmem>>, %arg9: memref<1x128xf32, #tpu.memory_space<vmem>>, %arg10: memref<104x128xf32, #tpu.memory_space<vmem>>, %arg11: memref<240x64xbf16, #tpu.memory_space<vmem>>) attributes {dimension_semantics = [], scalar_prefetch = 0 : i64, scratch_operands = 1 : i64, tpu.core_type = #tpu.core_type<tc>} {
    %c0 = arith.constant 0 : index
    %c0_0 = arith.constant 0 : index
    %0 = vector.load %arg2[%c0, %c0_0] : memref<208x1xf32, #tpu.memory_space<vmem>>, vector<208x1xf32>
    %1 = vector.shape_cast %0 : vector<208x1xf32> to vector<208x1xf32>
    %2 = vector.broadcast %1 : vector<208x1xf32> to vector<208x64xf32>
    %c0_1 = arith.constant 0 : index
    %c0_2 = arith.constant 0 : index
    %3 = vector.load %arg0[%c0_1, %c0_2] : memref<240x64xbf16, #tpu.memory_space<vmem>>, vector<240x64xbf16>
    %c0_3 = arith.constant 0 : index
    %c0_4 = arith.constant 0 : index
    %c0_5 = arith.constant 0 : index
    %4 = vector.load %arg4[%c0_3, %c0_4, %c0_5] : memref<3x64x192xbf16, #tpu.memory_space<vmem>>, vector<1x64x192xbf16>
    %5 = vector.shape_cast %4 : vector<1x64x192xbf16> to vector<64x192xbf16>
    %cst = arith.constant dense<0.000000e+00> : vector<240x192xf32>
    %6 = tpu.matmul %3, %5, %cst {dimension_numbers = #tpu.dot_dimension_numbers<[1], [0], [0], [1], [0, 0, 1, 1], [], []>} : vector<240x64xbf16>, vector<64x192xbf16>, vector<240x192xf32> -> vector<240x192xf32>
    %7 = vector.extract_strided_slice %6 {offsets = [5, 0], sizes = [208, 64], strides = [1, 1]} : vector<240x192xf32> to vector<208x64xf32>
    %8 = vector.extract_strided_slice %6 {offsets = [6, 64], sizes = [208, 64], strides = [1, 1]} : vector<240x192xf32> to vector<208x64xf32>
    %9 = arith.addf %7, %8 : vector<208x64xf32>
    %10 = vector.extract_strided_slice %6 {offsets = [7, 128], sizes = [208, 64], strides = [1, 1]} : vector<240x192xf32> to vector<208x64xf32>
    %11 = arith.addf %9, %10 : vector<208x64xf32>
    %c1 = arith.constant 1 : index
    %c0_6 = arith.constant 0 : index
    %c0_7 = arith.constant 0 : index
    %12 = vector.load %arg4[%c1, %c0_6, %c0_7] : memref<3x64x192xbf16, #tpu.memory_space<vmem>>, vector<1x64x192xbf16>
    %13 = vector.shape_cast %12 : vector<1x64x192xbf16> to vector<64x192xbf16>
    %cst_8 = arith.constant dense<0.000000e+00> : vector<240x192xf32>
    %14 = tpu.matmul %3, %13, %cst_8 {dimension_numbers = #tpu.dot_dimension_numbers<[1], [0], [0], [1], [0, 0, 1, 1], [], []>} : vector<240x64xbf16>, vector<64x192xbf16>, vector<240x192xf32> -> vector<240x192xf32>
    %15 = vector.extract_strided_slice %14 {offsets = [15, 0], sizes = [208, 64], strides = [1, 1]} : vector<240x192xf32> to vector<208x64xf32>
    %16 = arith.addf %11, %15 : vector<208x64xf32>
    %17 = vector.extract_strided_slice %14 {offsets = [16, 64], sizes = [208, 64], strides = [1, 1]} : vector<240x192xf32> to vector<208x64xf32>
    %18 = arith.addf %16, %17 : vector<208x64xf32>
    %19 = vector.extract_strided_slice %14 {offsets = [17, 128], sizes = [208, 64], strides = [1, 1]} : vector<240x192xf32> to vector<208x64xf32>
    %20 = arith.addf %18, %19 : vector<208x64xf32>
    %c2 = arith.constant 2 : index
    %c0_9 = arith.constant 0 : index
    %c0_10 = arith.constant 0 : index
    %21 = vector.load %arg4[%c2, %c0_9, %c0_10] : memref<3x64x192xbf16, #tpu.memory_space<vmem>>, vector<1x64x192xbf16>
    %22 = vector.shape_cast %21 : vector<1x64x192xbf16> to vector<64x192xbf16>
    %cst_11 = arith.constant dense<0.000000e+00> : vector<240x192xf32>
    %23 = tpu.matmul %3, %22, %cst_11 {dimension_numbers = #tpu.dot_dimension_numbers<[1], [0], [0], [1], [0, 0, 1, 1], [], []>} : vector<240x64xbf16>, vector<64x192xbf16>, vector<240x192xf32> -> vector<240x192xf32>
    %24 = vector.extract_strided_slice %23 {offsets = [25, 0], sizes = [208, 64], strides = [1, 1]} : vector<240x192xf32> to vector<208x64xf32>
    %25 = arith.addf %20, %24 : vector<208x64xf32>
    %26 = vector.extract_strided_slice %23 {offsets = [26, 64], sizes = [208, 64], strides = [1, 1]} : vector<240x192xf32> to vector<208x64xf32>
    %27 = arith.addf %25, %26 : vector<208x64xf32>
    %28 = vector.extract_strided_slice %23 {offsets = [27, 128], sizes = [208, 64], strides = [1, 1]} : vector<240x192xf32> to vector<208x64xf32>
    %29 = arith.addf %27, %28 : vector<208x64xf32>
    %30 = arith.mulf %29, %2 : vector<208x64xf32>
    %cst_12 = arith.constant dense<0.000000e+00> : vector<64xf32>
    %31 = vector.multi_reduction <add>, %30, %cst_12 [0] : vector<208x64xf32> to vector<64xf32>
    %32 = vector.shape_cast %31 : vector<64xf32> to vector<1x64xf32>
    %cst_13 = arith.constant 7.812500e-03 : f32
    %33 = vector.broadcast %cst_13 : f32 to vector<1x64xf32>
    %34 = arith.mulf %32, %33 : vector<1x64xf32>
    %35 = vector.broadcast %34 : vector<1x64xf32> to vector<208x64xf32>
    %36 = arith.subf %29, %35 : vector<208x64xf32>
    %37 = arith.mulf %36, %2 : vector<208x64xf32>
    %38 = arith.mulf %37, %37 : vector<208x64xf32>
    %cst_14 = arith.constant dense<0.000000e+00> : vector<64xf32>
    %39 = vector.multi_reduction <add>, %38, %cst_14 [0] : vector<208x64xf32> to vector<64xf32>
    %40 = vector.shape_cast %39 : vector<64xf32> to vector<1x64xf32>
    %cst_15 = arith.constant 7.812500e-03 : f32
    %41 = vector.broadcast %cst_15 : f32 to vector<1x64xf32>
    %42 = arith.mulf %40, %41 : vector<1x64xf32>
    %cst_16 = arith.constant 9.99999974E-6 : f32
    %43 = vector.broadcast %cst_16 : f32 to vector<1x64xf32>
    %44 = arith.addf %42, %43 : vector<1x64xf32>
    %45 = math.rsqrt %44 : vector<1x64xf32>
    %c0_17 = arith.constant 0 : index
    %c0_18 = arith.constant 0 : index
    %46 = vector.load %arg5[%c0_17, %c0_18] : memref<1x64xf32, #tpu.memory_space<vmem>>, vector<1x64xf32>
    %47 = arith.mulf %45, %46 : vector<1x64xf32>
    %48 = vector.broadcast %47 : vector<1x64xf32> to vector<208x64xf32>
    %49 = arith.mulf %36, %48 : vector<208x64xf32>
    %c0_19 = arith.constant 0 : index
    %c0_20 = arith.constant 0 : index
    %50 = vector.load %arg6[%c0_19, %c0_20] : memref<1x64xf32, #tpu.memory_space<vmem>>, vector<1x64xf32>
    %51 = vector.broadcast %50 : vector<1x64xf32> to vector<208x64xf32>
    %52 = arith.addf %49, %51 : vector<208x64xf32>
    %cst_21 = arith.constant 0.000000e+00 : f32
    %53 = vector.broadcast %cst_21 : f32 to vector<208x64xf32>
    %54 = arith.maximumf %52, %53 : vector<208x64xf32>
    %55 = arith.mulf %54, %2 : vector<208x64xf32>
    %cst_22 = arith.constant 0.000000e+00 : bf16
    %56 = vector.broadcast %cst_22 : bf16 to vector<16x64xbf16>
    %c0_23 = arith.constant 0 : index
    %c0_24 = arith.constant 0 : index
    %57 = vector.load %arg11[%c0_23, %c0_24] : memref<240x64xbf16, #tpu.memory_space<vmem>>, vector<16x64xbf16>
    tpu.vector_store %arg11[%c0_23, %c0_24], %56 {strides = array<i32>} : memref<240x64xbf16, #tpu.memory_space<vmem>>, vector<16x64xbf16>,
    %cst_25 = arith.constant 0.000000e+00 : bf16
    %58 = vector.broadcast %cst_25 : bf16 to vector<16x64xbf16>
    %c224 = arith.constant 224 : index
    %c0_26 = arith.constant 0 : index
    %59 = vector.load %arg11[%c224, %c0_26] : memref<240x64xbf16, #tpu.memory_space<vmem>>, vector<16x64xbf16>
    tpu.vector_store %arg11[%c224, %c0_26], %58 {strides = array<i32>} : memref<240x64xbf16, #tpu.memory_space<vmem>>, vector<16x64xbf16>,
    %60 = arith.truncf %55 : vector<208x64xf32> to vector<208x64xbf16>
    %c16 = arith.constant 16 : index
    %c0_27 = arith.constant 0 : index
    %61 = vector.load %arg11[%c16, %c0_27] : memref<240x64xbf16, #tpu.memory_space<vmem>>, vector<208x64xbf16>
    tpu.vector_store %arg11[%c16, %c0_27], %60 {strides = array<i32>} : memref<240x64xbf16, #tpu.memory_space<vmem>>, vector<208x64xbf16>,
    %c0_28 = arith.constant 0 : index
    %c0_29 = arith.constant 0 : index
    %62 = vector.load %arg11[%c0_28, %c0_29] : memref<240x64xbf16, #tpu.memory_space<vmem>>, vector<240x64xbf16>
    %c0_30 = arith.constant 0 : index
    %c0_31 = arith.constant 0 : index
    %c0_32 = arith.constant 0 : index
    %63 = vector.load %arg7[%c0_30, %c0_31, %c0_32] : memref<3x64x192xbf16, #tpu.memory_space<vmem>>, vector<1x64x192xbf16>
    %64 = vector.shape_cast %63 : vector<1x64x192xbf16> to vector<64x192xbf16>
    %cst_33 = arith.constant dense<0.000000e+00> : vector<240x192xf32>
    %65 = tpu.matmul %62, %64, %cst_33 {dimension_numbers = #tpu.dot_dimension_numbers<[1], [0], [0], [1], [0, 0, 1, 1], [], []>} : vector<240x64xbf16>, vector<64x192xbf16>, vector<240x192xf32> -> vector<240x192xf32>
    %66 = vector.extract_strided_slice %65 {offsets = [5, 0], sizes = [208, 64], strides = [1, 1]} : vector<240x192xf32> to vector<208x64xf32>
    %67 = vector.extract_strided_slice %65 {offsets = [6, 64], sizes = [208, 64], strides = [1, 1]} : vector<240x192xf32> to vector<208x64xf32>
    %68 = arith.addf %66, %67 : vector<208x64xf32>
    %69 = vector.extract_strided_slice %65 {offsets = [7, 128], sizes = [208, 64], strides = [1, 1]} : vector<240x192xf32> to vector<208x64xf32>
    %70 = arith.addf %68, %69 : vector<208x64xf32>
    %c1_34 = arith.constant 1 : index
    %c0_35 = arith.constant 0 : index
    %c0_36 = arith.constant 0 : index
    %71 = vector.load %arg7[%c1_34, %c0_35, %c0_36] : memref<3x64x192xbf16, #tpu.memory_space<vmem>>, vector<1x64x192xbf16>
    %72 = vector.shape_cast %71 : vector<1x64x192xbf16> to vector<64x192xbf16>
    %cst_37 = arith.constant dense<0.000000e+00> : vector<240x192xf32>
    %73 = tpu.matmul %62, %72, %cst_37 {dimension_numbers = #tpu.dot_dimension_numbers<[1], [0], [0], [1], [0, 0, 1, 1], [], []>} : vector<240x64xbf16>, vector<64x192xbf16>, vector<240x192xf32> -> vector<240x192xf32>
    %74 = vector.extract_strided_slice %73 {offsets = [15, 0], sizes = [208, 64], strides = [1, 1]} : vector<240x192xf32> to vector<208x64xf32>
    %75 = arith.addf %70, %74 : vector<208x64xf32>
    %76 = vector.extract_strided_slice %73 {offsets = [16, 64], sizes = [208, 64], strides = [1, 1]} : vector<240x192xf32> to vector<208x64xf32>
    %77 = arith.addf %75, %76 : vector<208x64xf32>
    %78 = vector.extract_strided_slice %73 {offsets = [17, 128], sizes = [208, 64], strides = [1, 1]} : vector<240x192xf32> to vector<208x64xf32>
    %79 = arith.addf %77, %78 : vector<208x64xf32>
    %c2_38 = arith.constant 2 : index
    %c0_39 = arith.constant 0 : index
    %c0_40 = arith.constant 0 : index
    %80 = vector.load %arg7[%c2_38, %c0_39, %c0_40] : memref<3x64x192xbf16, #tpu.memory_space<vmem>>, vector<1x64x192xbf16>
    %81 = vector.shape_cast %80 : vector<1x64x192xbf16> to vector<64x192xbf16>
    %cst_41 = arith.constant dense<0.000000e+00> : vector<240x192xf32>
    %82 = tpu.matmul %62, %81, %cst_41 {dimension_numbers = #tpu.dot_dimension_numbers<[1], [0], [0], [1], [0, 0, 1, 1], [], []>} : vector<240x64xbf16>, vector<64x192xbf16>, vector<240x192xf32> -> vector<240x192xf32>
    %83 = vector.extract_strided_slice %82 {offsets = [25, 0], sizes = [208, 64], strides = [1, 1]} : vector<240x192xf32> to vector<208x64xf32>
    %84 = arith.addf %79, %83 : vector<208x64xf32>
    %85 = vector.extract_strided_slice %82 {offsets = [26, 64], sizes = [208, 64], strides = [1, 1]} : vector<240x192xf32> to vector<208x64xf32>
    %86 = arith.addf %84, %85 : vector<208x64xf32>
    %87 = vector.extract_strided_slice %82 {offsets = [27, 128], sizes = [208, 64], strides = [1, 1]} : vector<240x192xf32> to vector<208x64xf32>
    %88 = arith.addf %86, %87 : vector<208x64xf32>
    %89 = vector.extract_strided_slice %88 {offsets = [0, 0], sizes = [104, 64], strides = [1, 1]} : vector<208x64xf32> to vector<104x64xf32>
    %90 = vector.extract_strided_slice %88 {offsets = [104, 0], sizes = [104, 64], strides = [1, 1]} : vector<208x64xf32> to vector<104x64xf32>
    %91 = tpu.concatenate %89, %90 in 1 : vector<104x64xf32>, vector<104x64xf32> -> vector<104x128xf32>
    %c0_42 = arith.constant 0 : index
    %c0_43 = arith.constant 0 : index
    %92 = vector.load %arg3[%c0_42, %c0_43] : memref<104x128xf32, #tpu.memory_space<vmem>>, vector<104x128xf32>
    %93 = arith.mulf %91, %92 : vector<104x128xf32>
    %cst_44 = arith.constant dense<0.000000e+00> : vector<128xf32>
    %94 = vector.multi_reduction <add>, %93, %cst_44 [0] : vector<104x128xf32> to vector<128xf32>
    %95 = vector.shape_cast %94 : vector<128xf32> to vector<1x128xf32>
    %c64_i32 = arith.constant 64 : i32
    %96 = tpu.dynamic_rotate %95 by %c64_i32 dim 1 : vector<1x128xf32>, i32 -> vector<1x128xf32>
    %97 = arith.addf %95, %96 : vector<1x128xf32>
    %cst_45 = arith.constant 7.812500e-03 : f32
    %98 = vector.broadcast %cst_45 : f32 to vector<1x128xf32>
    %99 = arith.mulf %97, %98 : vector<1x128xf32>
    %100 = vector.broadcast %99 : vector<1x128xf32> to vector<104x128xf32>
    %101 = arith.subf %91, %100 : vector<104x128xf32>
    %102 = arith.mulf %101, %92 : vector<104x128xf32>
    %103 = arith.mulf %102, %102 : vector<104x128xf32>
    %cst_46 = arith.constant dense<0.000000e+00> : vector<128xf32>
    %104 = vector.multi_reduction <add>, %103, %cst_46 [0] : vector<104x128xf32> to vector<128xf32>
    %105 = vector.shape_cast %104 : vector<128xf32> to vector<1x128xf32>
    %c64_i32_47 = arith.constant 64 : i32
    %106 = tpu.dynamic_rotate %105 by %c64_i32_47 dim 1 : vector<1x128xf32>, i32 -> vector<1x128xf32>
    %107 = arith.addf %105, %106 : vector<1x128xf32>
    %cst_48 = arith.constant 7.812500e-03 : f32
    %108 = vector.broadcast %cst_48 : f32 to vector<1x128xf32>
    %109 = arith.mulf %107, %108 : vector<1x128xf32>
    %cst_49 = arith.constant 9.99999974E-6 : f32
    %110 = vector.broadcast %cst_49 : f32 to vector<1x128xf32>
    %111 = arith.addf %109, %110 : vector<1x128xf32>
    %112 = math.rsqrt %111 : vector<1x128xf32>
    %c0_50 = arith.constant 0 : index
    %c0_51 = arith.constant 0 : index
    %113 = vector.load %arg8[%c0_50, %c0_51] : memref<1x128xf32, #tpu.memory_space<vmem>>, vector<1x128xf32>
    %114 = arith.mulf %112, %113 : vector<1x128xf32>
    %115 = vector.broadcast %114 : vector<1x128xf32> to vector<104x128xf32>
    %116 = arith.mulf %101, %115 : vector<104x128xf32>
    %c0_52 = arith.constant 0 : index
    %c0_53 = arith.constant 0 : index
    %117 = vector.load %arg9[%c0_52, %c0_53] : memref<1x128xf32, #tpu.memory_space<vmem>>, vector<1x128xf32>
    %118 = vector.broadcast %117 : vector<1x128xf32> to vector<104x128xf32>
    %119 = arith.addf %116, %118 : vector<104x128xf32>
    %c0_54 = arith.constant 0 : index
    %c0_55 = arith.constant 0 : index
    %120 = vector.load %arg1[%c0_54, %c0_55] : memref<104x128xf32, #tpu.memory_space<vmem>>, vector<104x128xf32>
    %121 = arith.addf %119, %120 : vector<104x128xf32>
    %c0_56 = arith.constant 0 : index
    %c0_57 = arith.constant 0 : index
    %122 = vector.load %arg10[%c0_56, %c0_57] : memref<104x128xf32, #tpu.memory_space<vmem>>, vector<104x128xf32>
    tpu.vector_store %arg10[%c0_56, %c0_57], %121 {strides = array<i32>} : memref<104x128xf32, #tpu.memory_space<vmem>>, vector<104x128xf32>,
    return
  }
}

</mosaic_0001>

<llo_original>
// kernel: residual_block_pallas.1
$region0: #{residual_block_pallas.1}
  #allocation0 [shape = 'u32[]', space=smem, size = 0x4, offset = 0x4, fixed_abs, tag = 'smem constant byte address 0x4 - core index']
  #allocation1 [shape = 'u32[144,128]{1,0:T(1,128)}', space=vmem, size = 0x12000, scoped, tag = 'internal scratch']
  #allocation2 [shape = 'bf16[240,64]{1,0:T(8,128)(2,1)}', space=vmem, size = 0xf000, scoped, tag = 'scratch operand']
  %s0 = inlined_call_operand.vmem [shape: bf16[240,64], index: 0, kind: input, shape index: {}]
  %s1 = inlined_call_operand.vmem [shape: f32[104,128], index: 1, kind: input, shape index: {}]
  %s2 = inlined_call_operand.vmem [shape: f32[208,1], index: 2, kind: input, shape index: {}]
  %s3 = inlined_call_operand.vmem [shape: f32[104,128], index: 3, kind: input, shape index: {}]
  %s4 = inlined_call_operand.vmem [shape: bf16[3,64,192], index: 4, kind: input, shape index: {}]
  %s5 = inlined_call_operand.vmem [shape: f32[1,64], index: 5, kind: input, shape index: {}]
  %s6 = inlined_call_operand.vmem [shape: f32[1,64], index: 6, kind: input, shape index: {}]
  %s7 = inlined_call_operand.vmem [shape: bf16[3,64,192], index: 7, kind: input, shape index: {}]
  %s8 = inlined_call_operand.vmem [shape: f32[1,128], index: 8, kind: input, shape index: {}]
  %s9 = inlined_call_operand.vmem [shape: f32[1,128], index: 9, kind: input, shape index: {}]
  %s10 = inlined_call_operand.vmem [shape: f32[104,128], index: 10, kind: output, shape index: {}]
  %s11 = sld [smem:[#allocation0]]
  $region50: #{residual_block_pallas.1} parent=0
    _
  %s13 = ssub.s32 1, %s11
  %s14 = scalar_select 0, %s13, %s11
  // Predicated region
  $region2: #{residual_block_pallas.1} parent=0 // pred_check
    _
  $region3: #{residual_block_pallas.1} parent=0 // pred_check_branch
    %16 = sbr.rel (0) target = $region5
  $region4: #{residual_block_pallas.1} parent=0 // pred_region
    _
  $region5: #{residual_block_pallas.1} parent=0 // pred_fallthru
    _
  // Predicated region
  $region6: #{residual_block_pallas.1} parent=0 // pred_check
    _
  $region7: #{residual_block_pallas.1} parent=0 // pred_check_branch
    %18 = sbr.rel (0) target = $region9
  $region8: #{residual_block_pallas.1} parent=0 // pred_region
    _
  $region9: #{residual_block_pallas.1} parent=0 // pred_fallthru
    _
  // Predicated region
  $region10: #{residual_block_pallas.1} parent=0 // pred_check
    _
  $region11: #{residual_block_pallas.1} parent=0 // pred_check_branch
    %20 = sbr.rel (0) target = $region13
  $region12: #{residual_block_pallas.1} parent=0 // pred_region
    _
  $region13: #{residual_block_pallas.1} parent=0 // pred_fallthru
    _
  // Predicated region
  $region14: #{residual_block_pallas.1} parent=0 // pred_check
    _
  $region15: #{residual_block_pallas.1} parent=0 // pred_check_branch
    %22 = sbr.rel (0) target = $region17
  $region16: #{residual_block_pallas.1} parent=0 // pred_region
    _
  $region17: #{residual_block_pallas.1} parent=0 // pred_fallthru
    _
  // Predicated region
  $region18: #{residual_block_pallas.1} parent=0 // pred_check
    _
  $region19: #{residual_block_pallas.1} parent=0 // pred_check_branch
    %24 = sbr.rel (0) target = $region21
  $region20: #{residual_block_pallas.1} parent=0 // pred_region
    _
  $region21: #{residual_block_pallas.1} parent=0 // pred_fallthru
    _
  // Predicated region
  $region22: #{residual_block_pallas.1} parent=0 // pred_check
    _
  $region23: #{residual_block_pallas.1} parent=0 // pred_check_branch
    %26 = sbr.rel (0) target = $region25
  $region24: #{residual_block_pallas.1} parent=0 // pred_region
    _
  $region25: #{residual_block_pallas.1} parent=0 // pred_fallthru
    _
  // Predicated region
  $region26: #{residual_block_pallas.1} parent=0 // pred_check
    _
  $region27: #{residual_block_pallas.1} parent=0 // pred_check_branch
    %28 = sbr.rel (0) target = $region29
  $region28: #{residual_block_pallas.1} parent=0 // pred_region
    _
  $region29: #{residual_block_pallas.1} parent=0 // pred_fallthru
    _
  // Predicated region
  $region30: #{residual_block_pallas.1} parent=0 // pred_check
    _
  $region31: #{residual_block_pallas.1} parent=0 // pred_check_branch
    %30 = sbr.rel (0) target = $region33
  $region32: #{residual_block_pallas.1} parent=0 // pred_region
    _
  $region33: #{residual_block_pallas.1} parent=0 // pred_fallthru
    _
  // Predicated region
  $region34: #{residual_block_pallas.1} parent=0 // pred_check
    _
  $region35: #{residual_block_pallas.1} parent=0 // pred_check_branch
    %32 = sbr.rel (0) target = $region37
  $region36: #{residual_block_pallas.1} parent=0 // pred_region
    _
  $region37: #{residual_block_pallas.1} parent=0 // pred_fallthru
    _
  // Predicated region
  $region38: #{residual_block_pallas.1} parent=0 // pred_check
    _
  $region39: #{residual_block_pallas.1} parent=0 // pred_check_branch
    %34 = sbr.rel (0) target = $region41
  $region40: #{residual_block_pallas.1} parent=0 // pred_region
    _
  $region41: #{residual_block_pallas.1} parent=0 // pred_fallthru
    _
  %v36 = vld [vmem:[%s2] sm:$0xff]
  %v37 = vld [vmem:[%s2 + $0x8] sm:$0xff]
  %v38 = vld [vmem:[%s2 + $0x10] sm:$0xff]
  %v39 = vld [vmem:[%s2 + $0x18] sm:$0xff]
  %v40 = vld [vmem:[%s2 + $0x20] sm:$0xff]
  %v41 = vld [vmem:[%s2 + $0x28] sm:$0xff]
  %v42 = vld [vmem:[%s2 + $0x30] sm:$0xff]
  %v43 = vld [vmem:[%s2 + $0x38] sm:$0xff]
  %v44 = vld [vmem:[%s2 + $0x40] sm:$0xff]
  %v45 = vld [vmem:[%s2 + $0x48] sm:$0xff]
  %v46 = vld [vmem:[%s2 + $0x50] sm:$0xff]
  %v47 = vld [vmem:[%s2 + $0x58] sm:$0xff]
  %v48 = vld [vmem:[%s2 + $0x60] sm:$0xff]
  %v49 = vld [vmem:[%s2 + $0x68] sm:$0xff]
  %v50 = vld [vmem:[%s2 + $0x70] sm:$0xff]
  %v51 = vld [vmem:[%s2 + $0x78] sm:$0xff]
  %v52 = vld [vmem:[%s2 + $0x80] sm:$0xff]
  %v53 = vld [vmem:[%s2 + $0x88] sm:$0xff]
  %v54 = vld [vmem:[%s2 + $0x90] sm:$0xff]
  %v55 = vld [vmem:[%s2 + $0x98] sm:$0xff]
  %v56 = vld [vmem:[%s2 + $0xa0] sm:$0xff]
  %v57 = vld [vmem:[%s2 + $0xa8] sm:$0xff]
  %v58 = vld [vmem:[%s2 + $0xb0] sm:$0xff]
  %v59 = vld [vmem:[%s2 + $0xb8] sm:$0xff]
  %v60 = vld [vmem:[%s2 + $0xc0] sm:$0xff]
  %v61 = vld [vmem:[%s2 + $0xc8] sm:$0xff]
  %63 = vset.pattern.permute.xlu0 0
  %64 = vperm.xlu0 %63, %v36
  %v65 = vpop.permute.xlu0 %64
  %67 = vset.pattern.permute.xlu0 0
  %68 = vperm.xlu0 %67, %v37
  %v69 = vpop.permute.xlu0 %68
  %71 = vset.pattern.permute.xlu0 0
  %72 = vperm.xlu0 %71, %v38
  %v73 = vpop.permute.xlu0 %72
  %75 = vset.pattern.permute.xlu0 0
  %76 = vperm.xlu0 %75, %v39
  %v77 = vpop.permute.xlu0 %76
  %79 = vset.pattern.permute.xlu0 0
  %80 = vperm.xlu0 %79, %v40
  %v81 = vpop.permute.xlu0 %80
  %83 = vset.pattern.permute.xlu0 0
  %84 = vperm.xlu0 %83, %v41
  %v85 = vpop.permute.xlu0 %84
  %87 = vset.pattern.permute.xlu0 0
  %88 = vperm.xlu0 %87, %v42
  %v89 = vpop.permute.xlu0 %88
  %91 = vset.pattern.permute.xlu0 0
  %92 = vperm.xlu0 %91, %v43
  %v93 = vpop.permute.xlu0 %92
  %95 = vset.pattern.permute.xlu0 0
  %96 = vperm.xlu0 %95, %v44
  %v97 = vpop.permute.xlu0 %96
  %99 = vset.pattern.permute.xlu0 0
  %100 = vperm.xlu0 %99, %v45
  %v101 = vpop.permute.xlu0 %100
  %103 = vset.pattern.permute.xlu0 0
  %104 = vperm.xlu0 %103, %v46
  %v105 = vpop.permute.xlu0 %104
  %107 = vset.pattern.permute.xlu0 0
  %108 = vperm.xlu0 %107, %v47
  %v109 = vpop.permute.xlu0 %108
  %111 = vset.pattern.permute.xlu0 0
  %112 = vperm.xlu0 %111, %v48
  %v113 = vpop.permute.xlu0 %112
  %115 = vset.pattern.permute.xlu0 0
  %116 = vperm.xlu0 %115, %v49
  %v117 = vpop.permute.xlu0 %116
  %119 = vset.pattern.permute.xlu0 0
  %120 = vperm.xlu0 %119, %v50
  %v121 = vpop.permute.xlu0 %120
  %123 = vset.pattern.permute.xlu0 0
  %124 = vperm.xlu0 %123, %v51
  %v125 = vpop.permute.xlu0 %124
  %127 = vset.pattern.permute.xlu0 0
  %128 = vperm.xlu0 %127, %v52
  %v129 = vpop.permute.xlu0 %128
  %131 = vset.pattern.permute.xlu0 0
  %132 = vperm.xlu0 %131, %v53
  %v133 = vpop.permute.xlu0 %132
  %135 = vset.pattern.permute.xlu0 0
  %136 = vperm.xlu0 %135, %v54
  %v137 = vpop.permute.xlu0 %136
  %139 = vset.pattern.permute.xlu0 0
  %140 = vperm.xlu0 %139, %v55
  %v141 = vpop.permute.xlu0 %140
  %143 = vset.pattern.permute.xlu0 0
  %144 = vperm.xlu0 %143, %v56
  %v145 = vpop.permute.xlu0 %144
  %147 = vset.pattern.permute.xlu0 0
  %148 = vperm.xlu0 %147, %v57
  %v149 = vpop.permute.xlu0 %148
  %151 = vset.pattern.permute.xlu0 0
  %152 = vperm.xlu0 %151, %v58
  %v153 = vpop.permute.xlu0 %152
  %155 = vset.pattern.permute.xlu0 0
  %156 = vperm.xlu0 %155, %v59
  %v157 = vpop.permute.xlu0 %156
  %159 = vset.pattern.permute.xlu0 0
  %160 = vperm.xlu0 %159, %v60
  %v161 = vpop.permute.xlu0 %160
  %163 = vset.pattern.permute.xlu0 0
  %164 = vperm.xlu0 %163, %v61
  %v165 = vpop.permute.xlu0 %164
  %v166 = vld [vmem:[%s0] sm:$0xf]
  %v167 = vld [vmem:[%s0 + $0x4] sm:$0xf]
  %v168 = vld [vmem:[%s0 + $0x8] sm:$0xf]
  %v169 = vld [vmem:[%s0 + $0xc] sm:$0xf]
  %v170 = vld [vmem:[%s0 + $0x10] sm:$0xf]
  %v171 = vld [vmem:[%s0 + $0x14] sm:$0xf]
  %v172 = vld [vmem:[%s0 + $0x18] sm:$0xf]
  %v173 = vld [vmem:[%s0 + $0x1c] sm:$0xf]
  %v174 = vld [vmem:[%s0 + $0x20] sm:$0xf]
  %v175 = vld [vmem:[%s0 + $0x24] sm:$0xf]
  %v176 = vld [vmem:[%s0 + $0x28] sm:$0xf]
  %v177 = vld [vmem:[%s0 + $0x2c] sm:$0xf]
  %v178 = vld [vmem:[%s0 + $0x30] sm:$0xf]
  %v179 = vld [vmem:[%s0 + $0x34] sm:$0xf]
  %v180 = vld [vmem:[%s0 + $0x38] sm:$0xf]
  %v181 = vld [vmem:[%s0 + $0x3c] sm:$0xf]
  %v182 = vld [vmem:[%s0 + $0x40] sm:$0xf]
  %v183 = vld [vmem:[%s0 + $0x44] sm:$0xf]
  %v184 = vld [vmem:[%s0 + $0x48] sm:$0xf]
  %v185 = vld [vmem:[%s0 + $0x4c] sm:$0xf]
  %v186 = vld [vmem:[%s0 + $0x50] sm:$0xf]
  %v187 = vld [vmem:[%s0 + $0x54] sm:$0xf]
  %v188 = vld [vmem:[%s0 + $0x58] sm:$0xf]
  %v189 = vld [vmem:[%s0 + $0x5c] sm:$0xf]
  %v190 = vld [vmem:[%s0 + $0x60] sm:$0xf]
  %v191 = vld [vmem:[%s0 + $0x64] sm:$0xf]
  %v192 = vld [vmem:[%s0 + $0x68] sm:$0xf]
  %v193 = vld [vmem:[%s0 + $0x6c] sm:$0xf]
  %v194 = vld [vmem:[%s0 + $0x70] sm:$0xf]
  %v195 = vld [vmem:[%s0 + $0x74] sm:$0xf]
  %v196 = vld [vmem:[%s4] sm:$0xff]
  %v197 = vld [vmem:[%s4 + $0x8] sm:$0xff]
  %v198 = vld [vmem:[%s4 + $0x10] sm:$0xff]
  %v199 = vld [vmem:[%s4 + $0x18] sm:$0xff]
  %v200 = vld [vmem:[%s4 + $0x20] sm:$0xff]
  %v201 = vld [vmem:[%s4 + $0x28] sm:$0xff]
  %v202 = vld [vmem:[%s4 + $0x30] sm:$0xff]
  %v203 = vld [vmem:[%s4 + $0x38] sm:$0xff]
  %v234 = vunpack.c.l.b16 %v166
  %v235 = vunpack.c.l.b16 %v167
  %v236 = vunpack.c.l.b16 %v168
  %v237 = vunpack.c.l.b16 %v169
  %v238 = vunpack.c.l.b16 %v170
  %v239 = vunpack.c.l.b16 %v171
  %v240 = vunpack.c.l.b16 %v172
  %v241 = vunpack.c.l.b16 %v173
  %v242 = vunpack.c.l.b16 %v174
  %v243 = vunpack.c.l.b16 %v175
  %v244 = vunpack.c.l.b16 %v176
  %v245 = vunpack.c.l.b16 %v177
  %v246 = vunpack.c.l.b16 %v178
  %v247 = vunpack.c.l.b16 %v179
  %v248 = vunpack.c.l.b16 %v180
  %v249 = vunpack.c.l.b16 %v181
  %v250 = vunpack.c.l.b16 %v182
  %v251 = vunpack.c.l.b16 %v183
  %v252 = vunpack.c.l.b16 %v184
  %v253 = vunpack.c.l.b16 %v185
  %v254 = vunpack.c.l.b16 %v186
  %v255 = vunpack.c.l.b16 %v187
  %v256 = vunpack.c.l.b16 %v188
  %v257 = vunpack.c.l.b16 %v189
  %v258 = vunpack.c.l.b16 %v190
  %v259 = vunpack.c.l.b16 %v191
  %v260 = vunpack.c.l.b16 %v192
  %v261 = vunpack.c.l.b16 %v193
  %v262 = vunpack.c.l.b16 %v194
  %v263 = vunpack.c.l.b16 %v195
  %v264 = vpack.c.b16 %v235, %v234
  %v265 = vpack.c.b16 %v237, %v236
  %v266 = vpack.c.b16 %v239, %v238
  %v267 = vpack.c.b16 %v241, %v240
  %v268 = vpack.c.b16 %v243, %v242
  %v269 = vpack.c.b16 %v245, %v244
  %v270 = vpack.c.b16 %v247, %v246
  %v271 = vpack.c.b16 %v249, %v248
  %v272 = vpack.c.b16 %v251, %v250
  %v273 = vpack.c.b16 %v253, %v252
  %v274 = vpack.c.b16 %v255, %v254
  %v275 = vpack.c.b16 %v257, %v256
  %v276 = vpack.c.b16 %v259, %v258
  %v277 = vpack.c.b16 %v261, %v260
  %v278 = vpack.c.b16 %v263, %v262
  %v287 = vunpack.c.l.b16 %v196
  %v288 = vunpack.c.h.b16 %v196
  %v289 = vunpack.c.l.b16 %v197
  %v290 = vunpack.c.h.b16 %v197
  %v291 = vunpack.c.l.b16 %v198
  %v292 = vunpack.c.h.b16 %v198
  %v293 = vunpack.c.l.b16 %v199
  %v294 = vunpack.c.h.b16 %v199
  %v295 = vunpack.c.l.b16 %v200
  %v296 = vunpack.c.h.b16 %v200
  %v297 = vunpack.c.l.b16 %v201
  %v298 = vunpack.c.h.b16 %v201
  %v299 = vunpack.c.l.b16 %v202
  %v300 = vunpack.c.h.b16 %v202
  %v301 = vunpack.c.l.b16 %v203
  %v302 = vunpack.c.h.b16 %v203
  %v303 = vpack.c.b16 %v289, %v287
  %v304 = vpack.c.b16 %v290, %v288
  %v305 = vpack.c.b16 %v293, %v291
  %v306 = vpack.c.b16 %v294, %v292
  %v307 = vpack.c.b16 %v297, %v295
  %v308 = vpack.c.b16 %v298, %v296
  %v309 = vpack.c.b16 %v301, %v299
  %v310 = vpack.c.b16 %v302, %v300
  %vm319 = vcmask 523264
  %v321 = vsel %vm319, %v264, 0
  %v324 = vsel %vm319, %v265, 0
  %v327 = vsel %vm319, %v266, 0
  %v330 = vsel %vm319, %v267, 0
  %v333 = vsel %vm319, %v268, 0
  %v336 = vsel %vm319, %v269, 0
  %v339 = vsel %vm319, %v270, 0
  %v342 = vsel %vm319, %v271, 0
  %v345 = vsel %vm319, %v272, 0
  %v348 = vsel %vm319, %v273, 0
  %v351 = vsel %vm319, %v274, 0
  %v354 = vsel %vm319, %v275, 0
  %v357 = vsel %vm319, %v276, 0
  %v360 = vsel %vm319, %v277, 0
  %v363 = vsel %vm319, %v278, 0
  %365 = vmatprep.subr.bf16.mxu0 0
  %366 = vmatpush1.bf16.msra.mxu0 0
  %367 = vmatprep.subr.bf16.mxu0 0
  %368 = vmatpush1.bf16.msra.mxu0 0
  %369 = vmatprep.subr.bf16.mxu0 0
  %370 = vmatpush1.bf16.msra.mxu0 0
  %371 = vmatprep.subr.bf16.mxu0 0
  %372 = vmatpush1.bf16.msra.mxu0 0
  %373 = vmatprep.subr.bf16.mxu0 %v310
  %374 = vmatpush1.bf16.msra.mxu0 %v309
  %375 = vmatprep.subr.bf16.mxu0 %v308
  %376 = vmatpush1.bf16.msra.mxu0 %v307
  %377 = vmatprep.subr.bf16.mxu0 %v306
  %378 = vmatpush1.bf16.msra.mxu0 %v305
  %379 = vmatprep.subr.bf16.mxu0 %v304
  %380 = vmatpush1.bf16.msra.mxu0 %v303
  %381 = vmatprep.subr.bf16.mxu0 0
  %382 = vmatpush2.bf16.msra.mxu0 0
  %383 = vmatprep.subr.bf16.mxu0 0
  %384 = vmatpush2.bf16.msra.mxu0 0
  %385 = vmatprep.subr.bf16.mxu0 0
  %386 = vmatpush2.bf16.msra.mxu0 0
  %387 = vmatprep.subr.bf16.mxu0 0
  %388 = vmatpush2.bf16.msra.mxu0 0
  %389 = vmatprep.subr.bf16.mxu0 0
  %390 = vmatpush2.bf16.msra.mxu0 0
  %391 = vmatprep.subr.bf16.mxu0 0
  %392 = vmatpush2.bf16.msra.mxu0 0
  %393 = vmatprep.subr.bf16.mxu0 0
  %394 = vmatpush2.bf16.msra.mxu0 0
  %395 = vmatprep.subr.bf16.mxu0 0
  %396 = vmatpush2.bf16.msra.mxu0 0
  %397 = vmatprep.mubr.bf16.mxu0 0
  %398 = vmatmul.mubr.bf16.gmra.mxu0 %v321
  %v399 = vpop.f32.mrf.mxu0
  %v400 = vadd.f32 0.0, %v399
  %v401 = vpop.f32.mrf.mxu0
  %v402 = vadd.f32 0.0, %v401
  %v403 = vpop.f32.mrf.mxu0
  %v404 = vadd.f32 0.0, %v403
  %v405 = vpop.f32.mrf.mxu0
  %v406 = vadd.f32 0.0, %v405
  %407 = vmatprep.mubr.bf16.mxu0 0
  %408 = vmatmul.mubr.bf16.gmra.mxu0 %v324
  %v409 = vpop.f32.mrf.mxu0
  %v410 = vadd.f32 0.0, %v409
  %v411 = vpop.f32.mrf.mxu0
  %v412 = vadd.f32 0.0, %v411
  %v413 = vpop.f32.mrf.mxu0
  %v414 = vadd.f32 0.0, %v413
  %v415 = vpop.f32.mrf.mxu0
  %v416 = vadd.f32 0.0, %v415
  %417 = vmatprep.mubr.bf16.mxu0 0
  %418 = vmatmul.mubr.bf16.gmra.mxu0 %v327
  %v419 = vpop.f32.mrf.mxu0
  %v420 = vadd.f32 0.0, %v419
  %v421 = vpop.f32.mrf.mxu0
  %v422 = vadd.f32 0.0, %v421
  %v423 = vpop.f32.mrf.mxu0
  %v424 = vadd.f32 0.0, %v423
  %v425 = vpop.f32.mrf.mxu0
  %v426 = vadd.f32 0.0, %v425
  %427 = vmatprep.mubr.bf16.mxu0 0
  %428 = vmatmul.mubr.bf16.gmra.mxu0 %v330
  %v429 = vpop.f32.mrf.mxu0
  %v430 = vadd.f32 0.0, %v429
  %v431 = vpop.f32.mrf.mxu0
  %v432 = vadd.f32 0.0, %v431
  %v433 = vpop.f32.mrf.mxu0
  %v434 = vadd.f32 0.0, %v433
  %v435 = vpop.f32.mrf.mxu0
  %v436 = vadd.f32 0.0, %v435
  %437 = vmatprep.mubr.bf16.mxu0 0
  %438 = vmatmul.mubr.bf16.gmra.mxu0 %v333
  %v439 = vpop.f32.mrf.mxu0
  %v440 = vadd.f32 0.0, %v439
  %v441 = vpop.f32.mrf.mxu0
  %v442 = vadd.f32 0.0, %v441
  %v443 = vpop.f32.mrf.mxu0
  %v444 = vadd.f32 0.0, %v443
  %v445 = vpop.f32.mrf.mxu0
  %v446 = vadd.f32 0.0, %v445
  %447 = vmatprep.mubr.bf16.mxu0 0
  %448 = vmatmul.mubr.bf16.gmra.mxu0 %v336
  %v449 = vpop.f32.mrf.mxu0
  %v450 = vadd.f32 0.0, %v449
  %v451 = vpop.f32.mrf.mxu0
  %v452 = vadd.f32 0.0, %v451
  %v453 = vpop.f32.mrf.mxu0
  %v454 = vadd.f32 0.0, %v453
  %v455 = vpop.f32.mrf.mxu0
  %v456 = vadd.f32 0.0, %v455
  %457 = vmatprep.mubr.bf16.mxu0 0
  %458 = vmatmul.mubr.bf16.gmra.mxu0 %v339
  %v459 = vpop.f32.mrf.mxu0
  %v460 = vadd.f32 0.0, %v459
  %v461 = vpop.f32.mrf.mxu0
  %v462 = vadd.f32 0.0, %v461
  %v463 = vpop.f32.mrf.mxu0
  %v464 = vadd.f32 0.0, %v463
  %v465 = vpop.f32.mrf.mxu0
  %v466 = vadd.f32 0.0, %v465
  %467 = vmatprep.mubr.bf16.mxu0 0
  %468 = vmatmul.mubr.bf16.gmra.mxu0 %v342
  %v469 = vpop.f32.mrf.mxu0
  %v470 = vadd.f32 0.0, %v469
  %v471 = vpop.f32.mrf.mxu0
  %v472 = vadd.f32 0.0, %v471
  %v473 = vpop.f32.mrf.mxu0
  %v474 = vadd.f32 0.0, %v473
  %v475 = vpop.f32.mrf.mxu0
  %v476 = vadd.f32 0.0, %v475
  %477 = vmatprep.mubr.bf16.mxu0 0
  %478 = vmatmul.mubr.bf16.gmra.mxu0 %v345
  %v479 = vpop.f32.mrf.mxu0
  %v480 = vadd.f32 0.0, %v479
  %v481 = vpop.f32.mrf.mxu0
  %v482 = vadd.f32 0.0, %v481
  %v483 = vpop.f32.mrf.mxu0
  %v484 = vadd.f32 0.0, %v483
  %v485 = vpop.f32.mrf.mxu0
  %v486 = vadd.f32 0.0, %v485
  %487 = vmatprep.mubr.bf16.mxu0 0
  %488 = vmatmul.mubr.bf16.gmra.mxu0 %v348
  %v489 = vpop.f32.mrf.mxu0
  %v490 = vadd.f32 0.0, %v489
  %v491 = vpop.f32.mrf.mxu0
  %v492 = vadd.f32 0.0, %v491
  %v493 = vpop.f32.mrf.mxu0
  %v494 = vadd.f32 0.0, %v493
  %v495 = vpop.f32.mrf.mxu0
  %v496 = vadd.f32 0.0, %v495
  %497 = vmatprep.mubr.bf16.mxu0 0
  %498 = vmatmul.mubr.bf16.gmra.mxu0 %v351
  %v499 = vpop.f32.mrf.mxu0
  %v500 = vadd.f32 0.0, %v499
  %v501 = vpop.f32.mrf.mxu0
  %v502 = vadd.f32 0.0, %v501
  %v503 = vpop.f32.mrf.mxu0
  %v504 = vadd.f32 0.0, %v503
  %v505 = vpop.f32.mrf.mxu0
  %v506 = vadd.f32 0.0, %v505
  %507 = vmatprep.mubr.bf16.mxu0 0
  %508 = vmatmul.mubr.bf16.gmra.mxu0 %v354
  %v509 = vpop.f32.mrf.mxu0
  %v510 = vadd.f32 0.0, %v509
  %v511 = vpop.f32.mrf.mxu0
  %v512 = vadd.f32 0.0, %v511
  %v513 = vpop.f32.mrf.mxu0
  %v514 = vadd.f32 0.0, %v513
  %v515 = vpop.f32.mrf.mxu0
  %v516 = vadd.f32 0.0, %v515
  %517 = vmatprep.mubr.bf16.mxu0 0
  %518 = vmatmul.mubr.bf16.gmra.mxu0 %v357
  %v519 = vpop.f32.mrf.mxu0
  %v520 = vadd.f32 0.0, %v519
  %v521 = vpop.f32.mrf.mxu0
  %v522 = vadd.f32 0.0, %v521
  %v523 = vpop.f32.mrf.mxu0
  %v524 = vadd.f32 0.0, %v523
  %v525 = vpop.f32.mrf.mxu0
  %v526 = vadd.f32 0.0, %v525
  %527 = vmatprep.mubr.bf16.mxu0 0
  %528 = vmatmul.mubr.bf16.gmra.mxu0 %v360
  %v529 = vpop.f32.mrf.mxu0
  %v530 = vadd.f32 0.0, %v529
  %v531 = vpop.f32.mrf.mxu0
  %v532 = vadd.f32 0.0, %v531
  %v533 = vpop.f32.mrf.mxu0
  %v534 = vpop.f32.mrf.mxu0
  %535 = vmatprep.mubr.bf16.mxu0 0
  %536 = vmatmul.mubr.bf16.gmra.mxu0 %v363
  %v537 = vpop.f32.mrf.mxu0
  %v538 = vpop.f32.mrf.mxu0
  %v539 = vpop.f32.mrf.mxu0
  %v540 = vpop.f32.mrf.mxu0
  %541 = vdwg.mxu0
  %vm569 = vcmask 1046528
  %v570 = vrot.slane %v400, 1
  %v571 = vrot.slane %v404, 1
  %v572 = vsel %vm569, %v570, %v571
  %v573 = vrot.slane %v410, 1
  %v574 = vsel %vm569, %v571, %v573
  %v575 = vrot.slane %v414, 1
  %v576 = vsel %vm569, %v573, %v575
  %v577 = vrot.slane %v420, 1
  %v578 = vsel %vm569, %v575, %v577
  %v579 = vrot.slane %v424, 1
  %v580 = vsel %vm569, %v577, %v579
  %v581 = vrot.slane %v430, 1
  %v582 = vsel %vm569, %v579, %v581
  %v583 = vrot.slane %v434, 1
  %v584 = vsel %vm569, %v581, %v583
  %v585 = vrot.slane %v440, 1
  %v586 = vsel %vm569, %v583, %v585
  %v587 = vrot.slane %v444, 1
  %v588 = vsel %vm569, %v585, %v587
  %v589 = vrot.slane %v450, 1
  %v590 = vsel %vm569, %v587, %v589
  %v591 = vrot.slane %v454, 1
  %v592 = vsel %vm569, %v589, %v591
  %v593 = vrot.slane %v460, 1
  %v594 = vsel %vm569, %v591, %v593
  %v595 = vrot.slane %v464, 1
  %v596 = vsel %vm569, %v593, %v595
  %v597 = vrot.slane %v470, 1
  %v598 = vsel %vm569, %v595, %v597
  %v599 = vrot.slane %v474, 1
  %v600 = vsel %vm569, %v597, %v599
  %v601 = vrot.slane %v480, 1
  %v602 = vsel %vm569, %v599, %v601
  %v603 = vrot.slane %v484, 1
  %v604 = vsel %vm569, %v601, %v603
  %v605 = vrot.slane %v490, 1
  %v606 = vsel %vm569, %v603, %v605
  %v607 = vrot.slane %v494, 1
  %v608 = vsel %vm569, %v605, %v607
  %v609 = vrot.slane %v500, 1
  %v610 = vsel %vm569, %v607, %v609
  %v611 = vrot.slane %v504, 1
  %v612 = vsel %vm569, %v609, %v611
  %v613 = vrot.slane %v510, 1
  %v614 = vsel %vm569, %v611, %v613
  %v615 = vrot.slane %v514, 1
  %v616 = vsel %vm569, %v613, %v615
  %v617 = vrot.slane %v520, 1
  %v618 = vsel %vm569, %v615, %v617
  %v619 = vrot.slane %v524, 1
  %v620 = vsel %vm569, %v617, %v619
  %v621 = vrot.slane %v530, 1
  %v622 = vsel %vm569, %v619, %v621
  %623 = vrot.lane.b32.xlu0 %v572, 64
  %v624 = vpop.permute.xlu0 %623
  %625 = vrot.lane.b32.xlu0 %v574, 64
  %v626 = vpop.permute.xlu0 %625
  %627 = vrot.lane.b32.xlu0 %v576, 64
  %v628 = vpop.permute.xlu0 %627
  %629 = vrot.lane.b32.xlu0 %v578, 64
  %v630 = vpop.permute.xlu0 %629
  %631 = vrot.lane.b32.xlu0 %v580, 64
  %v632 = vpop.permute.xlu0 %631
  %633 = vrot.lane.b32.xlu0 %v582, 64
  %v634 = vpop.permute.xlu0 %633
  %635 = vrot.lane.b32.xlu0 %v584, 64
  %v636 = vpop.permute.xlu0 %635
  %637 = vrot.lane.b32.xlu0 %v586, 64
  %v638 = vpop.permute.xlu0 %637
  %639 = vrot.lane.b32.xlu0 %v588, 64
  %v640 = vpop.permute.xlu0 %639
  %641 = vrot.lane.b32.xlu0 %v590, 64
  %v642 = vpop.permute.xlu0 %641
  %643 = vrot.lane.b32.xlu0 %v592, 64
  %v644 = vpop.permute.xlu0 %643
  %645 = vrot.lane.b32.xlu0 %v594, 64
  %v646 = vpop.permute.xlu0 %645
  %647 = vrot.lane.b32.xlu0 %v596, 64
  %v648 = vpop.permute.xlu0 %647
  %649 = vrot.lane.b32.xlu0 %v598, 64
  %v650 = vpop.permute.xlu0 %649
  %651 = vrot.lane.b32.xlu0 %v600, 64
  %v652 = vpop.permute.xlu0 %651
  %653 = vrot.lane.b32.xlu0 %v602, 64
  %v654 = vpop.permute.xlu0 %653
  %655 = vrot.lane.b32.xlu0 %v604, 64
  %v656 = vpop.permute.xlu0 %655
  %657 = vrot.lane.b32.xlu0 %v606, 64
  %v658 = vpop.permute.xlu0 %657
  %659 = vrot.lane.b32.xlu0 %v608, 64
  %v660 = vpop.permute.xlu0 %659
  %661 = vrot.lane.b32.xlu0 %v610, 64
  %v662 = vpop.permute.xlu0 %661
  %663 = vrot.lane.b32.xlu0 %v612, 64
  %v664 = vpop.permute.xlu0 %663
  %665 = vrot.lane.b32.xlu0 %v614, 64
  %v666 = vpop.permute.xlu0 %665
  %667 = vrot.lane.b32.xlu0 %v616, 64
  %v668 = vpop.permute.xlu0 %667
  %669 = vrot.lane.b32.xlu0 %v618, 64
  %v670 = vpop.permute.xlu0 %669
  %671 = vrot.lane.b32.xlu0 %v620, 64
  %v672 = vpop.permute.xlu0 %671
  %673 = vrot.lane.b32.xlu0 %v622, 64
  %v674 = vpop.permute.xlu0 %673
  %675 = vrot.lane.b32.xlu0 %v621, 64
  %v676 = vpop.permute.xlu0 %675
  %v704 = vadd.f32 %v400, %v624
  %v705 = vadd.f32 %v404, %v626
  %v706 = vadd.f32 %v410, %v628
  %v707 = vadd.f32 %v414, %v630
  %v708 = vadd.f32 %v420, %v632
  %v709 = vadd.f32 %v424, %v634
  %v710 = vadd.f32 %v430, %v636
  %v711 = vadd.f32 %v434, %v638
  %v712 = vadd.f32 %v440, %v640
  %v713 = vadd.f32 %v444, %v642
  %v714 = vadd.f32 %v450, %v644
  %v715 = vadd.f32 %v454, %v646
  %v716 = vadd.f32 %v460, %v648
  %v717 = vadd.f32 %v464, %v650
  %v718 = vadd.f32 %v470, %v652
  %v719 = vadd.f32 %v474, %v654
  %v720 = vadd.f32 %v480, %v656
  %v721 = vadd.f32 %v484, %v658
  %v722 = vadd.f32 %v490, %v660
  %v723 = vadd.f32 %v494, %v662
  %v724 = vadd.f32 %v500, %v664
  %v725 = vadd.f32 %v504, %v666
  %v726 = vadd.f32 %v510, %v668
  %v727 = vadd.f32 %v514, %v670
  %v728 = vadd.f32 %v520, %v672
  %v729 = vadd.f32 %v524, %v674
  %v730 = vadd.f32 %v530, %v676
  %vm758 = vcmask 1045504
  %v759 = vrot.slane %v402, 2
  %v760 = vrot.slane %v406, 2
  %v761 = vsel %vm758, %v759, %v760
  %v762 = vrot.slane %v412, 2
  %v763 = vsel %vm758, %v760, %v762
  %v764 = vrot.slane %v416, 2
  %v765 = vsel %vm758, %v762, %v764
  %v766 = vrot.slane %v422, 2
  %v767 = vsel %vm758, %v764, %v766
  %v768 = vrot.slane %v426, 2
  %v769 = vsel %vm758, %v766, %v768
  %v770 = vrot.slane %v432, 2
  %v771 = vsel %vm758, %v768, %v770
  %v772 = vrot.slane %v436, 2
  %v773 = vsel %vm758, %v770, %v772
  %v774 = vrot.slane %v442, 2
  %v775 = vsel %vm758, %v772, %v774
  %v776 = vrot.slane %v446, 2
  %v777 = vsel %vm758, %v774, %v776
  %v778 = vrot.slane %v452, 2
  %v779 = vsel %vm758, %v776, %v778
  %v780 = vrot.slane %v456, 2
  %v781 = vsel %vm758, %v778, %v780
  %v782 = vrot.slane %v462, 2
  %v783 = vsel %vm758, %v780, %v782
  %v784 = vrot.slane %v466, 2
  %v785 = vsel %vm758, %v782, %v784
  %v786 = vrot.slane %v472, 2
  %v787 = vsel %vm758, %v784, %v786
  %v788 = vrot.slane %v476, 2
  %v789 = vsel %vm758, %v786, %v788
  %v790 = vrot.slane %v482, 2
  %v791 = vsel %vm758, %v788, %v790
  %v792 = vrot.slane %v486, 2
  %v793 = vsel %vm758, %v790, %v792
  %v794 = vrot.slane %v492, 2
  %v795 = vsel %vm758, %v792, %v794
  %v796 = vrot.slane %v496, 2
  %v797 = vsel %vm758, %v794, %v796
  %v798 = vrot.slane %v502, 2
  %v799 = vsel %vm758, %v796, %v798
  %v800 = vrot.slane %v506, 2
  %v801 = vsel %vm758, %v798, %v800
  %v802 = vrot.slane %v512, 2
  %v803 = vsel %vm758, %v800, %v802
  %v804 = vrot.slane %v516, 2
  %v805 = vsel %vm758, %v802, %v804
  %v806 = vrot.slane %v522, 2
  %v807 = vsel %vm758, %v804, %v806
  %v808 = vrot.slane %v526, 2
  %v809 = vsel %vm758, %v806, %v808
  %v810 = vrot.slane %v532, 2
  %v811 = vsel %vm758, %v808, %v810
  %v839 = vadd.f32 %v704, %v761
  %v840 = vadd.f32 %v705, %v763
  %v841 = vadd.f32 %v706, %v765
  %v842 = vadd.f32 %v707, %v767
  %v843 = vadd.f32 %v708, %v769
  %v844 = vadd.f32 %v709, %v771
  %v845 = vadd.f32 %v710, %v773
  %v846 = vadd.f32 %v711, %v775
  %v847 = vadd.f32 %v712, %v777
  %v848 = vadd.f32 %v713, %v779
  %v849 = vadd.f32 %v714, %v781
  %v850 = vadd.f32 %v715, %v783
  %v851 = vadd.f32 %v716, %v785
  %v852 = vadd.f32 %v717, %v787
  %v853 = vadd.f32 %v718, %v789
  %v854 = vadd.f32 %v719, %v791
  %v855 = vadd.f32 %v720, %v793
  %v856 = vadd.f32 %v721, %v795
  %v857 = vadd.f32 %v722, %v797
  %v858 = vadd.f32 %v723, %v799
  %v859 = vadd.f32 %v724, %v801
  %v860 = vadd.f32 %v725, %v803
  %v861 = vadd.f32 %v726, %v805
  %v862 = vadd.f32 %v727, %v807
  %v863 = vadd.f32 %v728, %v809
  %v864 = vadd.f32 %v729, %v811
  %v865 = vadd.f32 %v730, %v810
  %s866 = scalar_lea.vmem %s4, 64
  %v867 = vld [vmem:[%s866] sm:$0xff]
  %v868 = vld [vmem:[%s866 + $0x8] sm:$0xff]
  %v869 = vld [vmem:[%s866 + $0x10] sm:$0xff]
  %v870 = vld [vmem:[%s866 + $0x18] sm:$0xff]
  %v871 = vld [vmem:[%s866 + $0x20] sm:$0xff]
  %v872 = vld [vmem:[%s866 + $0x28] sm:$0xff]
  %v873 = vld [vmem:[%s866 + $0x30] sm:$0xff]
  %v874 = vld [vmem:[%s866 + $0x38] sm:$0xff]
  %v883 = vunpack.c.l.b16 %v867
  %v884 = vunpack.c.h.b16 %v867
  %v885 = vunpack.c.l.b16 %v868
  %v886 = vunpack.c.h.b16 %v868
  %v887 = vunpack.c.l.b16 %v869
  %v888 = vunpack.c.h.b16 %v869
  %v889 = vunpack.c.l.b16 %v870
  %v890 = vunpack.c.h.b16 %v870
  %v891 = vunpack.c.l.b16 %v871
  %v892 = vunpack.c.h.b16 %v871
  %v893 = vunpack.c.l.b16 %v872
  %v894 = vunpack.c.h.b16 %v872
  %v895 = vunpack.c.l.b16 %v873
  %v896 = vunpack.c.h.b16 %v873
  %v897 = vunpack.c.l.b16 %v874
  %v898 = vunpack.c.h.b16 %v874
  %v899 = vpack.c.b16 %v885, %v883
  %v900 = vpack.c.b16 %v886, %v884
  %v901 = vpack.c.b16 %v889, %v887
  %v902 = vpack.c.b16 %v890, %v888
  %v903 = vpack.c.b16 %v893, %v891
  %v904 = vpack.c.b16 %v894, %v892
  %v905 = vpack.c.b16 %v897, %v895
  %v906 = vpack.c.b16 %v898, %v896
  %915 = vmatprep.subr.bf16.mxu0 0
  %916 = vmatpush1.bf16.msra.mxu0 0
  %917 = vmatprep.subr.bf16.mxu0 0
  %918 = vmatpush1.bf16.msra.mxu0 0
  %919 = vmatprep.subr.bf16.mxu0 0
  %920 = vmatpush1.bf16.msra.mxu0 0
  %921 = vmatprep.subr.bf16.mxu0 0
  %922 = vmatpush1.bf16.msra.mxu0 0
  %923 = vmatprep.subr.bf16.mxu0 %v906
  %924 = vmatpush1.bf16.msra.mxu0 %v905
  %925 = vmatprep.subr.bf16.mxu0 %v904
  %926 = vmatpush1.bf16.msra.mxu0 %v903
  %927 = vmatprep.subr.bf16.mxu0 %v902
  %928 = vmatpush1.bf16.msra.mxu0 %v901
  %929 = vmatprep.subr.bf16.mxu0 %v900
  %930 = vmatpush1.bf16.msra.mxu0 %v899
  %931 = vmatprep.subr.bf16.mxu0 0
  %932 = vmatpush2.bf16.msra.mxu0 0
  %933 = vmatprep.subr.bf16.mxu0 0
  %934 = vmatpush2.bf16.msra.mxu0 0
  %935 = vmatprep.subr.bf16.mxu0 0
  %936 = vmatpush2.bf16.msra.mxu0 0
  %937 = vmatprep.subr.bf16.mxu0 0
  %938 = vmatpush2.bf16.msra.mxu0 0
  %939 = vmatprep.subr.bf16.mxu0 0
  %940 = vmatpush2.bf16.msra.mxu0 0
  %941 = vmatprep.subr.bf16.mxu0 0
  %942 = vmatpush2.bf16.msra.mxu0 0
  %943 = vmatprep.subr.bf16.mxu0 0
  %944 = vmatpush2.bf16.msra.mxu0 0
  %945 = vmatprep.subr.bf16.mxu0 0
  %946 = vmatpush2.bf16.msra.mxu0 0
  %947 = vmatprep.mubr.bf16.mxu0 0
  %948 = vmatmul.mubr.bf16.gmra.mxu0 %v321
  %v949 = vpop.f32.mrf.mxu0
  %v950 = vpop.f32.mrf.mxu0
  %v951 = vpop.f32.mrf.mxu0
  %v952 = vadd.f32 0.0, %v951
  %v953 = vpop.f32.mrf.mxu0
  %954 = vmatprep.mubr.bf16.mxu0 0
  %955 = vmatmul.mubr.bf16.gmra.mxu0 %v324
  %v956 = vpop.f32.mrf.mxu0
  %v957 = vadd.f32 0.0, %v956
  %v958 = vpop.f32.mrf.mxu0
  %v959 = vadd.f32 0.0, %v958
  %v960 = vpop.f32.mrf.mxu0
  %v961 = vadd.f32 0.0, %v960
  %v962 = vpop.f32.mrf.mxu0
  %v963 = vadd.f32 0.0, %v962
  %964 = vmatprep.mubr.bf16.mxu0 0
  %965 = vmatmul.mubr.bf16.gmra.mxu0 %v327
  %v966 = vpop.f32.mrf.mxu0
  %v967 = vadd.f32 0.0, %v966
  %v968 = vpop.f32.mrf.mxu0
  %v969 = vadd.f32 0.0, %v968
  %v970 = vpop.f32.mrf.mxu0
  %v971 = vadd.f32 0.0, %v970
  %v972 = vpop.f32.mrf.mxu0
  %v973 = vadd.f32 0.0, %v972
  %974 = vmatprep.mubr.bf16.mxu0 0
  %975 = vmatmul.mubr.bf16.gmra.mxu0 %v330
  %v976 = vpop.f32.mrf.mxu0
  %v977 = vadd.f32 0.0, %v976
  %v978 = vpop.f32.mrf.mxu0
  %v979 = vadd.f32 0.0, %v978
  %v980 = vpop.f32.mrf.mxu0
  %v981 = vadd.f32 0.0, %v980
  %v982 = vpop.f32.mrf.mxu0
  %v983 = vadd.f32 0.0, %v982
  %984 = vmatprep.mubr.bf16.mxu0 0
  %985 = vmatmul.mubr.bf16.gmra.mxu0 %v333
  %v986 = vpop.f32.mrf.mxu0
  %v987 = vadd.f32 0.0, %v986
  %v988 = vpop.f32.mrf.mxu0
  %v989 = vadd.f32 0.0, %v988
  %v990 = vpop.f32.mrf.mxu0
  %v991 = vadd.f32 0.0, %v990
  %v992 = vpop.f32.mrf.mxu0
  %v993 = vadd.f32 0.0, %v992
  %994 = vmatprep.mubr.bf16.mxu0 0
  %995 = vmatmul.mubr.bf16.gmra.mxu0 %v336
  %v996 = vpop.f32.mrf.mxu0
  %v997 = vadd.f32 0.0, %v996
  %v998 = vpop.f32.mrf.mxu0
  %v999 = vadd.f32 0.0, %v998
  %v1000 = vpop.f32.mrf.mxu0
  %v1001 = vadd.f32 0.0, %v1000
  %v1002 = vpop.f32.mrf.mxu0
  %v1003 = vadd.f32 0.0, %v1002
  %1004 = vmatprep.mubr.bf16.mxu0 0
  %1005 = vmatmul.mubr.bf16.gmra.mxu0 %v339
  %v1006 = vpop.f32.mrf.mxu0
  %v1007 = vadd.f32 0.0, %v1006
  %v1008 = vpop.f32.mrf.mxu0
  %v1009 = vadd.f32 0.0, %v1008
  %v1010 = vpop.f32.mrf.mxu0
  %v1011 = vadd.f32 0.0, %v1010
  %v1012 = vpop.f32.mrf.mxu0
  %v1013 = vadd.f32 0.0, %v1012
  %1014 = vmatprep.mubr.bf16.mxu0 0
  %1015 = vmatmul.mubr.bf16.gmra.mxu0 %v342
  %v1016 = vpop.f32.mrf.mxu0
  %v1017 = vadd.f32 0.0, %v1016
  %v1018 = vpop.f32.mrf.mxu0
  %v1019 = vadd.f32 0.0, %v1018
  %v1020 = vpop.f32.mrf.mxu0
  %v1021 = vadd.f32 0.0, %v1020
  %v1022 = vpop.f32.mrf.mxu0
  %v1023 = vadd.f32 0.0, %v1022
  %1024 = vmatprep.mubr.bf16.mxu0 0
  %1025 = vmatmul.mubr.bf16.gmra.mxu0 %v345
  %v1026 = vpop.f32.mrf.mxu0
  %v1027 = vadd.f32 0.0, %v1026
  %v1028 = vpop.f32.mrf.mxu0
  %v1029 = vadd.f32 0.0, %v1028
  %v1030 = vpop.f32.mrf.mxu0
  %v1031 = vadd.f32 0.0, %v1030
  %v1032 = vpop.f32.mrf.mxu0
  %v1033 = vadd.f32 0.0, %v1032
  %1034 = vmatprep.mubr.bf16.mxu0 0
  %1035 = vmatmul.mubr.bf16.gmra.mxu0 %v348
  %v1036 = vpop.f32.mrf.mxu0
  %v1037 = vadd.f32 0.0, %v1036
  %v1038 = vpop.f32.mrf.mxu0
  %v1039 = vadd.f32 0.0, %v1038
  %v1040 = vpop.f32.mrf.mxu0
  %v1041 = vadd.f32 0.0, %v1040
  %v1042 = vpop.f32.mrf.mxu0
  %v1043 = vadd.f32 0.0, %v1042
  %1044 = vmatprep.mubr.bf16.mxu0 0
  %1045 = vmatmul.mubr.bf16.gmra.mxu0 %v351
  %v1046 = vpop.f32.mrf.mxu0
  %v1047 = vadd.f32 0.0, %v1046
  %v1048 = vpop.f32.mrf.mxu0
  %v1049 = vadd.f32 0.0, %v1048
  %v1050 = vpop.f32.mrf.mxu0
  %v1051 = vadd.f32 0.0, %v1050
  %v1052 = vpop.f32.mrf.mxu0
  %v1053 = vadd.f32 0.0, %v1052
  %1054 = vmatprep.mubr.bf16.mxu0 0
  %1055 = vmatmul.mubr.bf16.gmra.mxu0 %v354
  %v1056 = vpop.f32.mrf.mxu0
  %v1057 = vadd.f32 0.0, %v1056
  %v1058 = vpop.f32.mrf.mxu0
  %v1059 = vadd.f32 0.0, %v1058
  %v1060 = vpop.f32.mrf.mxu0
  %v1061 = vadd.f32 0.0, %v1060
  %v1062 = vpop.f32.mrf.mxu0
  %v1063 = vadd.f32 0.0, %v1062
  %1064 = vmatprep.mubr.bf16.mxu0 0
  %1065 = vmatmul.mubr.bf16.gmra.mxu0 %v357
  %v1066 = vpop.f32.mrf.mxu0
  %v1067 = vadd.f32 0.0, %v1066
  %v1068 = vpop.f32.mrf.mxu0
  %v1069 = vadd.f32 0.0, %v1068
  %v1070 = vpop.f32.mrf.mxu0
  %v1071 = vadd.f32 0.0, %v1070
  %v1072 = vpop.f32.mrf.mxu0
  %v1073 = vadd.f32 0.0, %v1072
  %1074 = vmatprep.mubr.bf16.mxu0 0
  %1075 = vmatmul.mubr.bf16.gmra.mxu0 %v360
  %v1076 = vpop.f32.mrf.mxu0
  %v1077 = vadd.f32 0.0, %v1076
  %v1078 = vpop.f32.mrf.mxu0
  %v1079 = vadd.f32 0.0, %v1078
  %v1080 = vpop.f32.mrf.mxu0
  %v1081 = vadd.f32 0.0, %v1080
  %v1082 = vpop.f32.mrf.mxu0
  %v1083 = vadd.f32 0.0, %v1082
  %1084 = vmatprep.mubr.bf16.mxu0 0
  %1085 = vmatmul.mubr.bf16.gmra.mxu0 %v363
  %v1086 = vpop.f32.mrf.mxu0
  %v1087 = vpop.f32.mrf.mxu0
  %v1088 = vadd.f32 0.0, %v1087
  %v1089 = vpop.f32.mrf.mxu0
  %v1090 = vpop.f32.mrf.mxu0
  %1091 = vdwg.mxu0
  %v1119 = vrot.slane %v952, 2
  %v1120 = vrot.slane %v957, 2
  %v1121 = vsel %vm758, %v1119, %v1120
  %v1122 = vrot.slane %v961, 2
  %v1123 = vsel %vm758, %v1120, %v1122
  %v1124 = vrot.slane %v967, 2
  %v1125 = vsel %vm758, %v1122, %v1124
  %v1126 = vrot.slane %v971, 2
  %v1127 = vsel %vm758, %v1124, %v1126
  %v1128 = vrot.slane %v977, 2
  %v1129 = vsel %vm758, %v1126, %v1128
  %v1130 = vrot.slane %v981, 2
  %v1131 = vsel %vm758, %v1128, %v1130
  %v1132 = vrot.slane %v987, 2
  %v1133 = vsel %vm758, %v1130, %v1132
  %v1134 = vrot.slane %v991, 2
  %v1135 = vsel %vm758, %v1132, %v1134
  %v1136 = vrot.slane %v997, 2
  %v1137 = vsel %vm758, %v1134, %v1136
  %v1138 = vrot.slane %v1001, 2
  %v1139 = vsel %vm758, %v1136, %v1138
  %v1140 = vrot.slane %v1007, 2
  %v1141 = vsel %vm758, %v1138, %v1140
  %v1142 = vrot.slane %v1011, 2
  %v1143 = vsel %vm758, %v1140, %v1142
  %v1144 = vrot.slane %v1017, 2
  %v1145 = vsel %vm758, %v1142, %v1144
  %v1146 = vrot.slane %v1021, 2
  %v1147 = vsel %vm758, %v1144, %v1146
  %v1148 = vrot.slane %v1027, 2
  %v1149 = vsel %vm758, %v1146, %v1148
  %v1150 = vrot.slane %v1031, 2
  %v1151 = vsel %vm758, %v1148, %v1150
  %v1152 = vrot.slane %v1037, 2
  %v1153 = vsel %vm758, %v1150, %v1152
  %v1154 = vrot.slane %v1041, 2
  %v1155 = vsel %vm758, %v1152, %v1154
  %v1156 = vrot.slane %v1047, 2
  %v1157 = vsel %vm758, %v1154, %v1156
  %v1158 = vrot.slane %v1051, 2
  %v1159 = vsel %vm758, %v1156, %v1158
  %v1160 = vrot.slane %v1057, 2
  %v1161 = vsel %vm758, %v1158, %v1160
  %v1162 = vrot.slane %v1061, 2
  %v1163 = vsel %vm758, %v1160, %v1162
  %v1164 = vrot.slane %v1067, 2
  %v1165 = vsel %vm758, %v1162, %v1164
  %v1166 = vrot.slane %v1071, 2
  %v1167 = vsel %vm758, %v1164, %v1166
  %v1168 = vrot.slane %v1077, 2
  %v1169 = vsel %vm758, %v1166, %v1168
  %v1170 = vrot.slane %v1081, 2
  %v1171 = vsel %vm758, %v1168, %v1170
  %v1199 = vadd.f32 %v839, %v1121
  %v1200 = vadd.f32 %v840, %v1123
  %v1201 = vadd.f32 %v841, %v1125
  %v1202 = vadd.f32 %v842, %v1127
  %v1203 = vadd.f32 %v843, %v1129
  %v1204 = vadd.f32 %v844, %v1131
  %v1205 = vadd.f32 %v845, %v1133
  %v1206 = vadd.f32 %v846, %v1135
  %v1207 = vadd.f32 %v847, %v1137
  %v1208 = vadd.f32 %v848, %v1139
  %v1209 = vadd.f32 %v849, %v1141
  %v1210 = vadd.f32 %v850, %v1143
  %v1211 = vadd.f32 %v851, %v1145
  %v1212 = vadd.f32 %v852, %v1147
  %v1213 = vadd.f32 %v853, %v1149
  %v1214 = vadd.f32 %v854, %v1151
  %v1215 = vadd.f32 %v855, %v1153
  %v1216 = vadd.f32 %v856, %v1155
  %v1217 = vadd.f32 %v857, %v1157
  %v1218 = vadd.f32 %v858, %v1159
  %v1219 = vadd.f32 %v859, %v1161
  %v1220 = vadd.f32 %v860, %v1163
  %v1221 = vadd.f32 %v861, %v1165
  %v1222 = vadd.f32 %v862, %v1167
  %v1223 = vadd.f32 %v863, %v1169
  %v1224 = vadd.f32 %v864, %v1171
  %v1225 = vadd.f32 %v865, %v1170
  %vm1226 = vcmask 1044480
  %v1227 = vrot.slane %v957, 3
  %v1228 = vrot.slane %v961, 3
  %v1229 = vsel %vm1226, %v1227, %v1228
  %v1230 = vrot.slane %v967, 3
  %v1231 = vsel %vm1226, %v1228, %v1230
  %v1232 = vrot.slane %v971, 3
  %v1233 = vsel %vm1226, %v1230, %v1232
  %v1234 = vrot.slane %v977, 3
  %v1235 = vsel %vm1226, %v1232, %v1234
  %v1236 = vrot.slane %v981, 3
  %v1237 = vsel %vm1226, %v1234, %v1236
  %v1238 = vrot.slane %v987, 3
  %v1239 = vsel %vm1226, %v1236, %v1238
  %v1240 = vrot.slane %v991, 3
  %v1241 = vsel %vm1226, %v1238, %v1240
  %v1242 = vrot.slane %v997, 3
  %v1243 = vsel %vm1226, %v1240, %v1242
  %v1244 = vrot.slane %v1001, 3
  %v1245 = vsel %vm1226, %v1242, %v1244
  %v1246 = vrot.slane %v1007, 3
  %v1247 = vsel %vm1226, %v1244, %v1246
  %v1248 = vrot.slane %v1011, 3
  %v1249 = vsel %vm1226, %v1246, %v1248
  %v1250 = vrot.slane %v1017, 3
  %v1251 = vsel %vm1226, %v1248, %v1250
  %v1252 = vrot.slane %v1021, 3
  %v1253 = vsel %vm1226, %v1250, %v1252
  %v1254 = vrot.slane %v1027, 3
  %v1255 = vsel %vm1226, %v1252, %v1254
  %v1256 = vrot.slane %v1031, 3
  %v1257 = vsel %vm1226, %v1254, %v1256
  %v1258 = vrot.slane %v1037, 3
  %v1259 = vsel %vm1226, %v1256, %v1258
  %v1260 = vrot.slane %v1041, 3
  %v1261 = vsel %vm1226, %v1258, %v1260
  %v1262 = vrot.slane %v1047, 3
  %v1263 = vsel %vm1226, %v1260, %v1262
  %v1264 = vrot.slane %v1051, 3
  %v1265 = vsel %vm1226, %v1262, %v1264
  %v1266 = vrot.slane %v1057, 3
  %v1267 = vsel %vm1226, %v1264, %v1266
  %v1268 = vrot.slane %v1061, 3
  %v1269 = vsel %vm1226, %v1266, %v1268
  %v1270 = vrot.slane %v1067, 3
  %v1271 = vsel %vm1226, %v1268, %v1270
  %v1272 = vrot.slane %v1071, 3
  %v1273 = vsel %vm1226, %v1270, %v1272
  %v1274 = vrot.slane %v1077, 3
  %v1275 = vsel %vm1226, %v1272, %v1274
  %v1276 = vrot.slane %v1081, 3
  %v1277 = vsel %vm1226, %v1274, %v1276
  %1278 = vrot.lane.b32.xlu0 %v1227, 64
  %v1279 = vpop.permute.xlu0 %1278
  %1280 = vrot.lane.b32.xlu0 %v1229, 64
  %v1281 = vpop.permute.xlu0 %1280
  %1282 = vrot.lane.b32.xlu0 %v1231, 64
  %v1283 = vpop.permute.xlu0 %1282
  %1284 = vrot.lane.b32.xlu0 %v1233, 64
  %v1285 = vpop.permute.xlu0 %1284
  %1286 = vrot.lane.b32.xlu0 %v1235, 64
  %v1287 = vpop.permute.xlu0 %1286
  %1288 = vrot.lane.b32.xlu0 %v1237, 64
  %v1289 = vpop.permute.xlu0 %1288
  %1290 = vrot.lane.b32.xlu0 %v1239, 64
  %v1291 = vpop.permute.xlu0 %1290
  %1292 = vrot.lane.b32.xlu0 %v1241, 64
  %v1293 = vpop.permute.xlu0 %1292
  %1294 = vrot.lane.b32.xlu0 %v1243, 64
  %v1295 = vpop.permute.xlu0 %1294
  %1296 = vrot.lane.b32.xlu0 %v1245, 64
  %v1297 = vpop.permute.xlu0 %1296
  %1298 = vrot.lane.b32.xlu0 %v1247, 64
  %v1299 = vpop.permute.xlu0 %1298
  %1300 = vrot.lane.b32.xlu0 %v1249, 64
  %v1301 = vpop.permute.xlu0 %1300
  %1302 = vrot.lane.b32.xlu0 %v1251, 64
  %v1303 = vpop.permute.xlu0 %1302
  %1304 = vrot.lane.b32.xlu0 %v1253, 64
  %v1305 = vpop.permute.xlu0 %1304
  %1306 = vrot.lane.b32.xlu0 %v1255, 64
  %v1307 = vpop.permute.xlu0 %1306
  %1308 = vrot.lane.b32.xlu0 %v1257, 64
  %v1309 = vpop.permute.xlu0 %1308
  %1310 = vrot.lane.b32.xlu0 %v1259, 64
  %v1311 = vpop.permute.xlu0 %1310
  %1312 = vrot.lane.b32.xlu0 %v1261, 64
  %v1313 = vpop.permute.xlu0 %1312
  %1314 = vrot.lane.b32.xlu0 %v1263, 64
  %v1315 = vpop.permute.xlu0 %1314
  %1316 = vrot.lane.b32.xlu0 %v1265, 64
  %v1317 = vpop.permute.xlu0 %1316
  %1318 = vrot.lane.b32.xlu0 %v1267, 64
  %v1319 = vpop.permute.xlu0 %1318
  %1320 = vrot.lane.b32.xlu0 %v1269, 64
  %v1321 = vpop.permute.xlu0 %1320
  %1322 = vrot.lane.b32.xlu0 %v1271, 64
  %v1323 = vpop.permute.xlu0 %1322
  %1324 = vrot.lane.b32.xlu0 %v1273, 64
  %v1325 = vpop.permute.xlu0 %1324
  %1326 = vrot.lane.b32.xlu0 %v1275, 64
  %v1327 = vpop.permute.xlu0 %1326
  %1328 = vrot.lane.b32.xlu0 %v1277, 64
  %v1329 = vpop.permute.xlu0 %1328
  %1330 = vrot.lane.b32.xlu0 %v1276, 64
  %v1331 = vpop.permute.xlu0 %1330
  %v1359 = vadd.f32 %v1199, %v1279
  %v1360 = vadd.f32 %v1200, %v1281
  %v1361 = vadd.f32 %v1201, %v1283
  %v1362 = vadd.f32 %v1202, %v1285
  %v1363 = vadd.f32 %v1203, %v1287
  %v1364 = vadd.f32 %v1204, %v1289
  %v1365 = vadd.f32 %v1205, %v1291
  %v1366 = vadd.f32 %v1206, %v1293
  %v1367 = vadd.f32 %v1207, %v1295
  %v1368 = vadd.f32 %v1208, %v1297
  %v1369 = vadd.f32 %v1209, %v1299
  %v1370 = vadd.f32 %v1210, %v1301
  %v1371 = vadd.f32 %v1211, %v1303
  %v1372 = vadd.f32 %v1212, %v1305
  %v1373 = vadd.f32 %v1213, %v1307
  %v1374 = vadd.f32 %v1214, %v1309
  %v1375 = vadd.f32 %v1215, %v1311
  %v1376 = vadd.f32 %v1216, %v1313
  %v1377 = vadd.f32 %v1217, %v1315
  %v1378 = vadd.f32 %v1218, %v1317
  %v1379 = vadd.f32 %v1219, %v1319
  %v1380 = vadd.f32 %v1220, %v1321
  %v1381 = vadd.f32 %v1221, %v1323
  %v1382 = vadd.f32 %v1222, %v1325
  %v1383 = vadd.f32 %v1223, %v1327
  %v1384 = vadd.f32 %v1224, %v1329
  %v1385 = vadd.f32 %v1225, %v1331
  %vm1413 = vcmask 1043456
  %v1414 = vrot.slane %v959, 4
  %v1415 = vrot.slane %v963, 4
  %v1416 = vsel %vm1413, %v1414, %v1415
  %v1417 = vrot.slane %v969, 4
  %v1418 = vsel %vm1413, %v1415, %v1417
  %v1419 = vrot.slane %v973, 4
  %v1420 = vsel %vm1413, %v1417, %v1419
  %v1421 = vrot.slane %v979, 4
  %v1422 = vsel %vm1413, %v1419, %v1421
  %v1423 = vrot.slane %v983, 4
  %v1424 = vsel %vm1413, %v1421, %v1423
  %v1425 = vrot.slane %v989, 4
  %v1426 = vsel %vm1413, %v1423, %v1425
  %v1427 = vrot.slane %v993, 4
  %v1428 = vsel %vm1413, %v1425, %v1427
  %v1429 = vrot.slane %v999, 4
  %v1430 = vsel %vm1413, %v1427, %v1429
  %v1431 = vrot.slane %v1003, 4
  %v1432 = vsel %vm1413, %v1429, %v1431
  %v1433 = vrot.slane %v1009, 4
  %v1434 = vsel %vm1413, %v1431, %v1433
  %v1435 = vrot.slane %v1013, 4
  %v1436 = vsel %vm1413, %v1433, %v1435
  %v1437 = vrot.slane %v1019, 4
  %v1438 = vsel %vm1413, %v1435, %v1437
  %v1439 = vrot.slane %v1023, 4
  %v1440 = vsel %vm1413, %v1437, %v1439
  %v1441 = vrot.slane %v1029, 4
  %v1442 = vsel %vm1413, %v1439, %v1441
  %v1443 = vrot.slane %v1033, 4
  %v1444 = vsel %vm1413, %v1441, %v1443
  %v1445 = vrot.slane %v1039, 4
  %v1446 = vsel %vm1413, %v1443, %v1445
  %v1447 = vrot.slane %v1043, 4
  %v1448 = vsel %vm1413, %v1445, %v1447
  %v1449 = vrot.slane %v1049, 4
  %v1450 = vsel %vm1413, %v1447, %v1449
  %v1451 = vrot.slane %v1053, 4
  %v1452 = vsel %vm1413, %v1449, %v1451
  %v1453 = vrot.slane %v1059, 4
  %v1454 = vsel %vm1413, %v1451, %v1453
  %v1455 = vrot.slane %v1063, 4
  %v1456 = vsel %vm1413, %v1453, %v1455
  %v1457 = vrot.slane %v1069, 4
  %v1458 = vsel %vm1413, %v1455, %v1457
  %v1459 = vrot.slane %v1073, 4
  %v1460 = vsel %vm1413, %v1457, %v1459
  %v1461 = vrot.slane %v1079, 4
  %v1462 = vsel %vm1413, %v1459, %v1461
  %v1463 = vrot.slane %v1083, 4
  %v1464 = vsel %vm1413, %v1461, %v1463
  %v1465 = vrot.slane %v1088, 4
  %v1466 = vsel %vm1413, %v1463, %v1465
  %v1494 = vadd.f32 %v1359, %v1414
  %v1495 = vadd.f32 %v1360, %v1416
  %v1496 = vadd.f32 %v1361, %v1418
  %v1497 = vadd.f32 %v1362, %v1420
  %v1498 = vadd.f32 %v1363, %v1422
  %v1499 = vadd.f32 %v1364, %v1424
  %v1500 = vadd.f32 %v1365, %v1426
  %v1501 = vadd.f32 %v1366, %v1428
  %v1502 = vadd.f32 %v1367, %v1430
  %v1503 = vadd.f32 %v1368, %v1432
  %v1504 = vadd.f32 %v1369, %v1434
  %v1505 = vadd.f32 %v1370, %v1436
  %v1506 = vadd.f32 %v1371, %v1438
  %v1507 = vadd.f32 %v1372, %v1440
  %v1508 = vadd.f32 %v1373, %v1442
  %v1509 = vadd.f32 %v1374, %v1444
  %v1510 = vadd.f32 %v1375, %v1446
  %v1511 = vadd.f32 %v1376, %v1448
  %v1512 = vadd.f32 %v1377, %v1450
  %v1513 = vadd.f32 %v1378, %v1452
  %v1514 = vadd.f32 %v1379, %v1454
  %v1515 = vadd.f32 %v1380, %v1456
  %v1516 = vadd.f32 %v1381, %v1458
  %v1517 = vadd.f32 %v1382, %v1460
  %v1518 = vadd.f32 %v1383, %v1462
  %v1519 = vadd.f32 %v1384, %v1464
  %v1520 = vadd.f32 %v1385, %v1466
  %s1521 = scalar_lea.vmem %s4, 128
  %v1522 = vld [vmem:[%s1521] sm:$0xff]
  %v1523 = vld [vmem:[%s1521 + $0x8] sm:$0xff]
  %v1524 = vld [vmem:[%s1521 + $0x10] sm:$0xff]
  %v1525 = vld [vmem:[%s1521 + $0x18] sm:$0xff]
  %v1526 = vld [vmem:[%s1521 + $0x20] sm:$0xff]
  %v1527 = vld [vmem:[%s1521 + $0x28] sm:$0xff]
  %v1528 = vld [vmem:[%s1521 + $0x30] sm:$0xff]
  %v1529 = vld [vmem:[%s1521 + $0x38] sm:$0xff]
  %v1538 = vunpack.c.l.b16 %v1522
  %v1539 = vunpack.c.h.b16 %v1522
  %v1540 = vunpack.c.l.b16 %v1523
  %v1541 = vunpack.c.h.b16 %v1523
  %v1542 = vunpack.c.l.b16 %v1524
  %v1543 = vunpack.c.h.b16 %v1524
  %v1544 = vunpack.c.l.b16 %v1525
  %v1545 = vunpack.c.h.b16 %v1525
  %v1546 = vunpack.c.l.b16 %v1526
  %v1547 = vunpack.c.h.b16 %v1526
  %v1548 = vunpack.c.l.b16 %v1527
  %v1549 = vunpack.c.h.b16 %v1527
  %v1550 = vunpack.c.l.b16 %v1528
  %v1551 = vunpack.c.h.b16 %v1528
  %v1552 = vunpack.c.l.b16 %v1529
  %v1553 = vunpack.c.h.b16 %v1529
  %v1554 = vpack.c.b16 %v1540, %v1538
  %v1555 = vpack.c.b16 %v1541, %v1539
  %v1556 = vpack.c.b16 %v1544, %v1542
  %v1557 = vpack.c.b16 %v1545, %v1543
  %v1558 = vpack.c.b16 %v1548, %v1546
  %v1559 = vpack.c.b16 %v1549, %v1547
  %v1560 = vpack.c.b16 %v1552, %v1550
  %v1561 = vpack.c.b16 %v1553, %v1551
  %1570 = vmatprep.subr.bf16.mxu0 0
  %1571 = vmatpush1.bf16.msra.mxu0 0
  %1572 = vmatprep.subr.bf16.mxu0 0
  %1573 = vmatpush1.bf16.msra.mxu0 0
  %1574 = vmatprep.subr.bf16.mxu0 0
  %1575 = vmatpush1.bf16.msra.mxu0 0
  %1576 = vmatprep.subr.bf16.mxu0 0
  %1577 = vmatpush1.bf16.msra.mxu0 0
  %1578 = vmatprep.subr.bf16.mxu0 %v1561
  %1579 = vmatpush1.bf16.msra.mxu0 %v1560
  %1580 = vmatprep.subr.bf16.mxu0 %v1559
  %1581 = vmatpush1.bf16.msra.mxu0 %v1558
  %1582 = vmatprep.subr.bf16.mxu0 %v1557
  %1583 = vmatpush1.bf16.msra.mxu0 %v1556
  %1584 = vmatprep.subr.bf16.mxu0 %v1555
  %1585 = vmatpush1.bf16.msra.mxu0 %v1554
  %1586 = vmatprep.subr.bf16.mxu0 0
  %1587 = vmatpush2.bf16.msra.mxu0 0
  %1588 = vmatprep.subr.bf16.mxu0 0
  %1589 = vmatpush2.bf16.msra.mxu0 0
  %1590 = vmatprep.subr.bf16.mxu0 0
  %1591 = vmatpush2.bf16.msra.mxu0 0
  %1592 = vmatprep.subr.bf16.mxu0 0
  %1593 = vmatpush2.bf16.msra.mxu0 0
  %1594 = vmatprep.subr.bf16.mxu0 0
  %1595 = vmatpush2.bf16.msra.mxu0 0
  %1596 = vmatprep.subr.bf16.mxu0 0
  %1597 = vmatpush2.bf16.msra.mxu0 0
  %1598 = vmatprep.subr.bf16.mxu0 0
  %1599 = vmatpush2.bf16.msra.mxu0 0
  %1600 = vmatprep.subr.bf16.mxu0 0
  %1601 = vmatpush2.bf16.msra.mxu0 0
  %1602 = vmatprep.mubr.bf16.mxu0 0
  %1603 = vmatmul.mubr.bf16.gmra.mxu0 %v321
  %v1604 = vpop.f32.mrf.mxu0
  %v1605 = vpop.f32.mrf.mxu0
  %v1606 = vpop.f32.mrf.mxu0
  %v1607 = vpop.f32.mrf.mxu0
  %1608 = vmatprep.mubr.bf16.mxu0 0
  %1609 = vmatmul.mubr.bf16.gmra.mxu0 %v324
  %v1610 = vpop.f32.mrf.mxu0
  %v1611 = vpop.f32.mrf.mxu0
  %v1612 = vpop.f32.mrf.mxu0
  %v1613 = vadd.f32 0.0, %v1612
  %v1614 = vpop.f32.mrf.mxu0
  %v1615 = vadd.f32 0.0, %v1614
  %1616 = vmatprep.mubr.bf16.mxu0 0
  %1617 = vmatmul.mubr.bf16.gmra.mxu0 %v327
  %v1618 = vpop.f32.mrf.mxu0
  %v1619 = vadd.f32 0.0, %v1618
  %v1620 = vpop.f32.mrf.mxu0
  %v1621 = vadd.f32 0.0, %v1620
  %v1622 = vpop.f32.mrf.mxu0
  %v1623 = vadd.f32 0.0, %v1622
  %v1624 = vpop.f32.mrf.mxu0
  %v1625 = vadd.f32 0.0, %v1624
  %1626 = vmatprep.mubr.bf16.mxu0 0
  %1627 = vmatmul.mubr.bf16.gmra.mxu0 %v330
  %v1628 = vpop.f32.mrf.mxu0
  %v1629 = vadd.f32 0.0, %v1628
  %v1630 = vpop.f32.mrf.mxu0
  %v1631 = vadd.f32 0.0, %v1630
  %v1632 = vpop.f32.mrf.mxu0
  %v1633 = vadd.f32 0.0, %v1632
  %v1634 = vpop.f32.mrf.mxu0
  %v1635 = vadd.f32 0.0, %v1634
  %1636 = vmatprep.mubr.bf16.mxu0 0
  %1637 = vmatmul.mubr.bf16.gmra.mxu0 %v333
  %v1638 = vpop.f32.mrf.mxu0
  %v1639 = vadd.f32 0.0, %v1638
  %v1640 = vpop.f32.mrf.mxu0
  %v1641 = vadd.f32 0.0, %v1640
  %v1642 = vpop.f32.mrf.mxu0
  %v1643 = vadd.f32 0.0, %v1642
  %v1644 = vpop.f32.mrf.mxu0
  %v1645 = vadd.f32 0.0, %v1644
  %1646 = vmatprep.mubr.bf16.mxu0 0
  %1647 = vmatmul.mubr.bf16.gmra.mxu0 %v336
  %v1648 = vpop.f32.mrf.mxu0
  %v1649 = vadd.f32 0.0, %v1648
  %v1650 = vpop.f32.mrf.mxu0
  %v1651 = vadd.f32 0.0, %v1650
  %v1652 = vpop.f32.mrf.mxu0
  %v1653 = vadd.f32 0.0, %v1652
  %v1654 = vpop.f32.mrf.mxu0
  %v1655 = vadd.f32 0.0, %v1654
  %1656 = vmatprep.mubr.bf16.mxu0 0
  %1657 = vmatmul.mubr.bf16.gmra.mxu0 %v339
  %v1658 = vpop.f32.mrf.mxu0
  %v1659 = vadd.f32 0.0, %v1658
  %v1660 = vpop.f32.mrf.mxu0
  %v1661 = vadd.f32 0.0, %v1660
  %v1662 = vpop.f32.mrf.mxu0
  %v1663 = vadd.f32 0.0, %v1662
  %v1664 = vpop.f32.mrf.mxu0
  %v1665 = vadd.f32 0.0, %v1664
  %1666 = vmatprep.mubr.bf16.mxu0 0
  %1667 = vmatmul.mubr.bf16.gmra.mxu0 %v342
  %v1668 = vpop.f32.mrf.mxu0
  %v1669 = vadd.f32 0.0, %v1668
  %v1670 = vpop.f32.mrf.mxu0
  %v1671 = vadd.f32 0.0, %v1670
  %v1672 = vpop.f32.mrf.mxu0
  %v1673 = vadd.f32 0.0, %v1672
  %v1674 = vpop.f32.mrf.mxu0
  %v1675 = vadd.f32 0.0, %v1674
  %1676 = vmatprep.mubr.bf16.mxu0 0
  %1677 = vmatmul.mubr.bf16.gmra.mxu0 %v345
  %v1678 = vpop.f32.mrf.mxu0
  %v1679 = vadd.f32 0.0, %v1678
  %v1680 = vpop.f32.mrf.mxu0
  %v1681 = vadd.f32 0.0, %v1680
  %v1682 = vpop.f32.mrf.mxu0
  %v1683 = vadd.f32 0.0, %v1682
  %v1684 = vpop.f32.mrf.mxu0
  %v1685 = vadd.f32 0.0, %v1684
  %1686 = vmatprep.mubr.bf16.mxu0 0
  %1687 = vmatmul.mubr.bf16.gmra.mxu0 %v348
  %v1688 = vpop.f32.mrf.mxu0
  %v1689 = vadd.f32 0.0, %v1688
  %v1690 = vpop.f32.mrf.mxu0
  %v1691 = vadd.f32 0.0, %v1690
  %v1692 = vpop.f32.mrf.mxu0
  %v1693 = vadd.f32 0.0, %v1692
  %v1694 = vpop.f32.mrf.mxu0
  %v1695 = vadd.f32 0.0, %v1694
  %1696 = vmatprep.mubr.bf16.mxu0 0
  %1697 = vmatmul.mubr.bf16.gmra.mxu0 %v351
  %v1698 = vpop.f32.mrf.mxu0
  %v1699 = vadd.f32 0.0, %v1698
  %v1700 = vpop.f32.mrf.mxu0
  %v1701 = vadd.f32 0.0, %v1700
  %v1702 = vpop.f32.mrf.mxu0
  %v1703 = vadd.f32 0.0, %v1702
  %v1704 = vpop.f32.mrf.mxu0
  %v1705 = vadd.f32 0.0, %v1704
  %1706 = vmatprep.mubr.bf16.mxu0 0
  %1707 = vmatmul.mubr.bf16.gmra.mxu0 %v354
  %v1708 = vpop.f32.mrf.mxu0
  %v1709 = vadd.f32 0.0, %v1708
  %v1710 = vpop.f32.mrf.mxu0
  %v1711 = vadd.f32 0.0, %v1710
  %v1712 = vpop.f32.mrf.mxu0
  %v1713 = vadd.f32 0.0, %v1712
  %v1714 = vpop.f32.mrf.mxu0
  %v1715 = vadd.f32 0.0, %v1714
  %1716 = vmatprep.mubr.bf16.mxu0 0
  %1717 = vmatmul.mubr.bf16.gmra.mxu0 %v357
  %v1718 = vpop.f32.mrf.mxu0
  %v1719 = vadd.f32 0.0, %v1718
  %v1720 = vpop.f32.mrf.mxu0
  %v1721 = vadd.f32 0.0, %v1720
  %v1722 = vpop.f32.mrf.mxu0
  %v1723 = vadd.f32 0.0, %v1722
  %v1724 = vpop.f32.mrf.mxu0
  %v1725 = vadd.f32 0.0, %v1724
  %1726 = vmatprep.mubr.bf16.mxu0 0
  %1727 = vmatmul.mubr.bf16.gmra.mxu0 %v360
  %v1728 = vpop.f32.mrf.mxu0
  %v1729 = vadd.f32 0.0, %v1728
  %v1730 = vpop.f32.mrf.mxu0
  %v1731 = vadd.f32 0.0, %v1730
  %v1732 = vpop.f32.mrf.mxu0
  %v1733 = vadd.f32 0.0, %v1732
  %v1734 = vpop.f32.mrf.mxu0
  %v1735 = vadd.f32 0.0, %v1734
  %1736 = vmatprep.mubr.bf16.mxu0 0
  %1737 = vmatmul.mubr.bf16.gmra.mxu0 %v363
  %v1738 = vpop.f32.mrf.mxu0
  %v1739 = vadd.f32 0.0, %v1738
  %v1740 = vpop.f32.mrf.mxu0
  %v1741 = vadd.f32 0.0, %v1740
  %v1742 = vpop.f32.mrf.mxu0
  %v1743 = vadd.f32 0.0, %v1742
  %v1744 = vpop.f32.mrf.mxu0
  %v1745 = vadd.f32 0.0, %v1744
  %1746 = vdwg.mxu0
  %v1774 = vrot.slane %v1613, 4
  %v1775 = vrot.slane %v1619, 4
  %v1776 = vsel %vm1413, %v1774, %v1775
  %v1777 = vrot.slane %v1623, 4
  %v1778 = vsel %vm1413, %v1775, %v1777
  %v1779 = vrot.slane %v1629, 4
  %v1780 = vsel %vm1413, %v1777, %v1779
  %v1781 = vrot.slane %v1633, 4
  %v1782 = vsel %vm1413, %v1779, %v1781
  %v1783 = vrot.slane %v1639, 4
  %v1784 = vsel %vm1413, %v1781, %v1783
  %v1785 = vrot.slane %v1643, 4
  %v1786 = vsel %vm1413, %v1783, %v1785
  %v1787 = vrot.slane %v1649, 4
  %v1788 = vsel %vm1413, %v1785, %v1787
  %v1789 = vrot.slane %v1653, 4
  %v1790 = vsel %vm1413, %v1787, %v1789
  %v1791 = vrot.slane %v1659, 4
  %v1792 = vsel %vm1413, %v1789, %v1791
  %v1793 = vrot.slane %v1663, 4
  %v1794 = vsel %vm1413, %v1791, %v1793
  %v1795 = vrot.slane %v1669, 4
  %v1796 = vsel %vm1413, %v1793, %v1795
  %v1797 = vrot.slane %v1673, 4
  %v1798 = vsel %vm1413, %v1795, %v1797
  %v1799 = vrot.slane %v1679, 4
  %v1800 = vsel %vm1413, %v1797, %v1799
  %v1801 = vrot.slane %v1683, 4
  %v1802 = vsel %vm1413, %v1799, %v1801
  %v1803 = vrot.slane %v1689, 4
  %v1804 = vsel %vm1413, %v1801, %v1803
  %v1805 = vrot.slane %v1693, 4
  %v1806 = vsel %vm1413, %v1803, %v1805
  %v1807 = vrot.slane %v1699, 4
  %v1808 = vsel %vm1413, %v1805, %v1807
  %v1809 = vrot.slane %v1703, 4
  %v1810 = vsel %vm1413, %v1807, %v1809
  %v1811 = vrot.slane %v1709, 4
  %v1812 = vsel %vm1413, %v1809, %v1811
  %v1813 = vrot.slane %v1713, 4
  %v1814 = vsel %vm1413, %v1811, %v1813
  %v1815 = vrot.slane %v1719, 4
  %v1816 = vsel %vm1413, %v1813, %v1815
  %v1817 = vrot.slane %v1723, 4
  %v1818 = vsel %vm1413, %v1815, %v1817
  %v1819 = vrot.slane %v1729, 4
  %v1820 = vsel %vm1413, %v1817, %v1819
  %v1821 = vrot.slane %v1733, 4
  %v1822 = vsel %vm1413, %v1819, %v1821
  %v1823 = vrot.slane %v1739, 4
  %v1824 = vsel %vm1413, %v1821, %v1823
  %v1825 = vrot.slane %v1743, 4
  %v1826 = vsel %vm1413, %v1823, %v1825
  %v1854 = vadd.f32 %v1494, %v1774
  %v1855 = vadd.f32 %v1495, %v1776
  %v1856 = vadd.f32 %v1496, %v1778
  %v1857 = vadd.f32 %v1497, %v1780
  %v1858 = vadd.f32 %v1498, %v1782
  %v1859 = vadd.f32 %v1499, %v1784
  %v1860 = vadd.f32 %v1500, %v1786
  %v1861 = vadd.f32 %v1501, %v1788
  %v1862 = vadd.f32 %v1502, %v1790
  %v1863 = vadd.f32 %v1503, %v1792
  %v1864 = vadd.f32 %v1504, %v1794
  %v1865 = vadd.f32 %v1505, %v1796
  %v1866 = vadd.f32 %v1506, %v1798
  %v1867 = vadd.f32 %v1507, %v1800
  %v1868 = vadd.f32 %v1508, %v1802
  %v1869 = vadd.f32 %v1509, %v1804
  %v1870 = vadd.f32 %v1510, %v1806
  %v1871 = vadd.f32 %v1511, %v1808
  %v1872 = vadd.f32 %v1512, %v1810
  %v1873 = vadd.f32 %v1513, %v1812
  %v1874 = vadd.f32 %v1514, %v1814
  %v1875 = vadd.f32 %v1515, %v1816
  %v1876 = vadd.f32 %v1516, %v1818
  %v1877 = vadd.f32 %v1517, %v1820
  %v1878 = vadd.f32 %v1518, %v1822
  %v1879 = vadd.f32 %v1519, %v1824
  %v1880 = vadd.f32 %v1520, %v1826
  %vm1881 = vcmask 1042432
  %v1882 = vrot.slane %v1613, 5
  %v1883 = vrot.slane %v1619, 5
  %v1884 = vsel %vm1881, %v1882, %v1883
  %v1885 = vrot.slane %v1623, 5
  %v1886 = vsel %vm1881, %v1883, %v1885
  %v1887 = vrot.slane %v1629, 5
  %v1888 = vsel %vm1881, %v1885, %v1887
  %v1889 = vrot.slane %v1633, 5
  %v1890 = vsel %vm1881, %v1887, %v1889
  %v1891 = vrot.slane %v1639, 5
  %v1892 = vsel %vm1881, %v1889, %v1891
  %v1893 = vrot.slane %v1643, 5
  %v1894 = vsel %vm1881, %v1891, %v1893
  %v1895 = vrot.slane %v1649, 5
  %v1896 = vsel %vm1881, %v1893, %v1895
  %v1897 = vrot.slane %v1653, 5
  %v1898 = vsel %vm1881, %v1895, %v1897
  %v1899 = vrot.slane %v1659, 5
  %v1900 = vsel %vm1881, %v1897, %v1899
  %v1901 = vrot.slane %v1663, 5
  %v1902 = vsel %vm1881, %v1899, %v1901
  %v1903 = vrot.slane %v1669, 5
  %v1904 = vsel %vm1881, %v1901, %v1903
  %v1905 = vrot.slane %v1673, 5
  %v1906 = vsel %vm1881, %v1903, %v1905
  %v1907 = vrot.slane %v1679, 5
  %v1908 = vsel %vm1881, %v1905, %v1907
  %v1909 = vrot.slane %v1683, 5
  %v1910 = vsel %vm1881, %v1907, %v1909
  %v1911 = vrot.slane %v1689, 5
  %v1912 = vsel %vm1881, %v1909, %v1911
  %v1913 = vrot.slane %v1693, 5
  %v1914 = vsel %vm1881, %v1911, %v1913
  %v1915 = vrot.slane %v1699, 5
  %v1916 = vsel %vm1881, %v1913, %v1915
  %v1917 = vrot.slane %v1703, 5
  %v1918 = vsel %vm1881, %v1915, %v1917
  %v1919 = vrot.slane %v1709, 5
  %v1920 = vsel %vm1881, %v1917, %v1919
  %v1921 = vrot.slane %v1713, 5
  %v1922 = vsel %vm1881, %v1919, %v1921
  %v1923 = vrot.slane %v1719, 5
  %v1924 = vsel %vm1881, %v1921, %v1923
  %v1925 = vrot.slane %v1723, 5
  %v1926 = vsel %vm1881, %v1923, %v1925
  %v1927 = vrot.slane %v1729, 5
  %v1928 = vsel %vm1881, %v1925, %v1927
  %v1929 = vrot.slane %v1733, 5
  %v1930 = vsel %vm1881, %v1927, %v1929
  %v1931 = vrot.slane %v1739, 5
  %v1932 = vsel %vm1881, %v1929, %v1931
  %v1933 = vrot.slane %v1743, 5
  %v1934 = vsel %vm1881, %v1931, %v1933
  %1935 = vrot.lane.b32.xlu0 %v1882, 64
  %v1936 = vpop.permute.xlu0 %1935
  %1937 = vrot.lane.b32.xlu0 %v1884, 64
  %v1938 = vpop.permute.xlu0 %1937
  %1939 = vrot.lane.b32.xlu0 %v1886, 64
  %v1940 = vpop.permute.xlu0 %1939
  %1941 = vrot.lane.b32.xlu0 %v1888, 64
  %v1942 = vpop.permute.xlu0 %1941
  %1943 = vrot.lane.b32.xlu0 %v1890, 64
  %v1944 = vpop.permute.xlu0 %1943
  %1945 = vrot.lane.b32.xlu0 %v1892, 64
  %v1946 = vpop.permute.xlu0 %1945
  %1947 = vrot.lane.b32.xlu0 %v1894, 64
  %v1948 = vpop.permute.xlu0 %1947
  %1949 = vrot.lane.b32.xlu0 %v1896, 64
  %v1950 = vpop.permute.xlu0 %1949
  %1951 = vrot.lane.b32.xlu0 %v1898, 64
  %v1952 = vpop.permute.xlu0 %1951
  %1953 = vrot.lane.b32.xlu0 %v1900, 64
  %v1954 = vpop.permute.xlu0 %1953
  %1955 = vrot.lane.b32.xlu0 %v1902, 64
  %v1956 = vpop.permute.xlu0 %1955
  %1957 = vrot.lane.b32.xlu0 %v1904, 64
  %v1958 = vpop.permute.xlu0 %1957
  %1959 = vrot.lane.b32.xlu0 %v1906, 64
  %v1960 = vpop.permute.xlu0 %1959
  %1961 = vrot.lane.b32.xlu0 %v1908, 64
  %v1962 = vpop.permute.xlu0 %1961
  %1963 = vrot.lane.b32.xlu0 %v1910, 64
  %v1964 = vpop.permute.xlu0 %1963
  %1965 = vrot.lane.b32.xlu0 %v1912, 64
  %v1966 = vpop.permute.xlu0 %1965
  %1967 = vrot.lane.b32.xlu0 %v1914, 64
  %v1968 = vpop.permute.xlu0 %1967
  %1969 = vrot.lane.b32.xlu0 %v1916, 64
  %v1970 = vpop.permute.xlu0 %1969
  %1971 = vrot.lane.b32.xlu0 %v1918, 64
  %v1972 = vpop.permute.xlu0 %1971
  %1973 = vrot.lane.b32.xlu0 %v1920, 64
  %v1974 = vpop.permute.xlu0 %1973
  %1975 = vrot.lane.b32.xlu0 %v1922, 64
  %v1976 = vpop.permute.xlu0 %1975
  %1977 = vrot.lane.b32.xlu0 %v1924, 64
  %v1978 = vpop.permute.xlu0 %1977
  %1979 = vrot.lane.b32.xlu0 %v1926, 64
  %v1980 = vpop.permute.xlu0 %1979
  %1981 = vrot.lane.b32.xlu0 %v1928, 64
  %v1982 = vpop.permute.xlu0 %1981
  %1983 = vrot.lane.b32.xlu0 %v1930, 64
  %v1984 = vpop.permute.xlu0 %1983
  %1985 = vrot.lane.b32.xlu0 %v1932, 64
  %v1986 = vpop.permute.xlu0 %1985
  %1987 = vrot.lane.b32.xlu0 %v1934, 64
  %v1988 = vpop.permute.xlu0 %1987
  %v2016 = vadd.f32 %v1854, %v1936
  %v2017 = vadd.f32 %v1855, %v1938
  %v2018 = vadd.f32 %v1856, %v1940
  %v2019 = vadd.f32 %v1857, %v1942
  %v2020 = vadd.f32 %v1858, %v1944
  %v2021 = vadd.f32 %v1859, %v1946
  %v2022 = vadd.f32 %v1860, %v1948
  %v2023 = vadd.f32 %v1861, %v1950
  %v2024 = vadd.f32 %v1862, %v1952
  %v2025 = vadd.f32 %v1863, %v1954
  %v2026 = vadd.f32 %v1864, %v1956
  %v2027 = vadd.f32 %v1865, %v1958
  %v2028 = vadd.f32 %v1866, %v1960
  %v2029 = vadd.f32 %v1867, %v1962
  %v2030 = vadd.f32 %v1868, %v1964
  %v2031 = vadd.f32 %v1869, %v1966
  %v2032 = vadd.f32 %v1870, %v1968
  %v2033 = vadd.f32 %v1871, %v1970
  %v2034 = vadd.f32 %v1872, %v1972
  %v2035 = vadd.f32 %v1873, %v1974
  %v2036 = vadd.f32 %v1874, %v1976
  %v2037 = vadd.f32 %v1875, %v1978
  %v2038 = vadd.f32 %v1876, %v1980
  %v2039 = vadd.f32 %v1877, %v1982
  %v2040 = vadd.f32 %v1878, %v1984
  %v2041 = vadd.f32 %v1879, %v1986
  %v2042 = vadd.f32 %v1880, %v1988
  %vm2070 = vcmask 1041408
  %v2071 = vrot.slane %v1615, 6
  %v2072 = vrot.slane %v1621, 6
  %v2073 = vsel %vm2070, %v2071, %v2072
  %v2074 = vrot.slane %v1625, 6
  %v2075 = vsel %vm2070, %v2072, %v2074
  %v2076 = vrot.slane %v1631, 6
  %v2077 = vsel %vm2070, %v2074, %v2076
  %v2078 = vrot.slane %v1635, 6
  %v2079 = vsel %vm2070, %v2076, %v2078
  %v2080 = vrot.slane %v1641, 6
  %v2081 = vsel %vm2070, %v2078, %v2080
  %v2082 = vrot.slane %v1645, 6
  %v2083 = vsel %vm2070, %v2080, %v2082
  %v2084 = vrot.slane %v1651, 6
  %v2085 = vsel %vm2070, %v2082, %v2084
  %v2086 = vrot.slane %v1655, 6
  %v2087 = vsel %vm2070, %v2084, %v2086
  %v2088 = vrot.slane %v1661, 6
  %v2089 = vsel %vm2070, %v2086, %v2088
  %v2090 = vrot.slane %v1665, 6
  %v2091 = vsel %vm2070, %v2088, %v2090
  %v2092 = vrot.slane %v1671, 6
  %v2093 = vsel %vm2070, %v2090, %v2092
  %v2094 = vrot.slane %v1675, 6
  %v2095 = vsel %vm2070, %v2092, %v2094
  %v2096 = vrot.slane %v1681, 6
  %v2097 = vsel %vm2070, %v2094, %v2096
  %v2098 = vrot.slane %v1685, 6
  %v2099 = vsel %vm2070, %v2096, %v2098
  %v2100 = vrot.slane %v1691, 6
  %v2101 = vsel %vm2070, %v2098, %v2100
  %v2102 = vrot.slane %v1695, 6
  %v2103 = vsel %vm2070, %v2100, %v2102
  %v2104 = vrot.slane %v1701, 6
  %v2105 = vsel %vm2070, %v2102, %v2104
  %v2106 = vrot.slane %v1705, 6
  %v2107 = vsel %vm2070, %v2104, %v2106
  %v2108 = vrot.slane %v1711, 6
  %v2109 = vsel %vm2070, %v2106, %v2108
  %v2110 = vrot.slane %v1715, 6
  %v2111 = vsel %vm2070, %v2108, %v2110
  %v2112 = vrot.slane %v1721, 6
  %v2113 = vsel %vm2070, %v2110, %v2112
  %v2114 = vrot.slane %v1725, 6
  %v2115 = vsel %vm2070, %v2112, %v2114
  %v2116 = vrot.slane %v1731, 6
  %v2117 = vsel %vm2070, %v2114, %v2116
  %v2118 = vrot.slane %v1735, 6
  %v2119 = vsel %vm2070, %v2116, %v2118
  %v2120 = vrot.slane %v1741, 6
  %v2121 = vsel %vm2070, %v2118, %v2120
  %v2122 = vrot.slane %v1745, 6
  %v2123 = vsel %vm2070, %v2120, %v2122
  %v2151 = vadd.f32 %v2016, %v2071
  %v2152 = vadd.f32 %v2017, %v2073
  %v2153 = vadd.f32 %v2018, %v2075
  %v2154 = vadd.f32 %v2019, %v2077
  %v2155 = vadd.f32 %v2020, %v2079
  %v2156 = vadd.f32 %v2021, %v2081
  %v2157 = vadd.f32 %v2022, %v2083
  %v2158 = vadd.f32 %v2023, %v2085
  %v2159 = vadd.f32 %v2024, %v2087
  %v2160 = vadd.f32 %v2025, %v2089
  %v2161 = vadd.f32 %v2026, %v2091
  %v2162 = vadd.f32 %v2027, %v2093
  %v2163 = vadd.f32 %v2028, %v2095
  %v2164 = vadd.f32 %v2029, %v2097
  %v2165 = vadd.f32 %v2030, %v2099
  %v2166 = vadd.f32 %v2031, %v2101
  %v2167 = vadd.f32 %v2032, %v2103
  %v2168 = vadd.f32 %v2033, %v2105
  %v2169 = vadd.f32 %v2034, %v2107
  %v2170 = vadd.f32 %v2035, %v2109
  %v2171 = vadd.f32 %v2036, %v2111
  %v2172 = vadd.f32 %v2037, %v2113
  %v2173 = vadd.f32 %v2038, %v2115
  %v2174 = vadd.f32 %v2039, %v2117
  %v2175 = vadd.f32 %v2040, %v2119
  %v2176 = vadd.f32 %v2041, %v2121
  %v2177 = vadd.f32 %v2042, %v2123
  %v2178 = vrot.slane %v65, 3
  %v2179 = vrot.slane %v69, 3
  %v2180 = vsel %vm1226, %v2178, %v2179
  %v2181 = vrot.slane %v73, 3
  %v2182 = vsel %vm1226, %v2179, %v2181
  %v2183 = vrot.slane %v77, 3
  %v2184 = vsel %vm1226, %v2181, %v2183
  %v2185 = vrot.slane %v81, 3
  %v2186 = vsel %vm1226, %v2183, %v2185
  %v2187 = vrot.slane %v85, 3
  %v2188 = vsel %vm1226, %v2185, %v2187
  %v2189 = vrot.slane %v89, 3
  %v2190 = vsel %vm1226, %v2187, %v2189
  %v2191 = vrot.slane %v93, 3
  %v2192 = vsel %vm1226, %v2189, %v2191
  %v2193 = vrot.slane %v97, 3
  %v2194 = vsel %vm1226, %v2191, %v2193
  %v2195 = vrot.slane %v101, 3
  %v2196 = vsel %vm1226, %v2193, %v2195
  %v2197 = vrot.slane %v105, 3
  %v2198 = vsel %vm1226, %v2195, %v2197
  %v2199 = vrot.slane %v109, 3
  %v2200 = vsel %vm1226, %v2197, %v2199
  %v2201 = vrot.slane %v113, 3
  %v2202 = vsel %vm1226, %v2199, %v2201
  %v2203 = vrot.slane %v117, 3
  %v2204 = vsel %vm1226, %v2201, %v2203
  %v2205 = vrot.slane %v121, 3
  %v2206 = vsel %vm1226, %v2203, %v2205
  %v2207 = vrot.slane %v125, 3
  %v2208 = vsel %vm1226, %v2205, %v2207
  %v2209 = vrot.slane %v129, 3
  %v2210 = vsel %vm1226, %v2207, %v2209
  %v2211 = vrot.slane %v133, 3
  %v2212 = vsel %vm1226, %v2209, %v2211
  %v2213 = vrot.slane %v137, 3
  %v2214 = vsel %vm1226, %v2211, %v2213
  %v2215 = vrot.slane %v141, 3
  %v2216 = vsel %vm1226, %v2213, %v2215
  %v2217 = vrot.slane %v145, 3
  %v2218 = vsel %vm1226, %v2215, %v2217
  %v2219 = vrot.slane %v149, 3
  %v2220 = vsel %vm1226, %v2217, %v2219
  %v2221 = vrot.slane %v153, 3
  %v2222 = vsel %vm1226, %v2219, %v2221
  %v2223 = vrot.slane %v157, 3
  %v2224 = vsel %vm1226, %v2221, %v2223
  %v2225 = vrot.slane %v161, 3
  %v2226 = vsel %vm1226, %v2223, %v2225
  %v2227 = vrot.slane %v165, 3
  %v2228 = vsel %vm1226, %v2225, %v2227
  %v2256 = vmul.f32 %v2151, %v2178
  %v2257 = vmul.f32 %v2152, %v2180
  %v2258 = vmul.f32 %v2153, %v2182
  %v2259 = vmul.f32 %v2154, %v2184
  %v2260 = vmul.f32 %v2155, %v2186
  %v2261 = vmul.f32 %v2156, %v2188
  %v2262 = vmul.f32 %v2157, %v2190
  %v2263 = vmul.f32 %v2158, %v2192
  %v2264 = vmul.f32 %v2159, %v2194
  %v2265 = vmul.f32 %v2160, %v2196
  %v2266 = vmul.f32 %v2161, %v2198
  %v2267 = vmul.f32 %v2162, %v2200
  %v2268 = vmul.f32 %v2163, %v2202
  %v2269 = vmul.f32 %v2164, %v2204
  %v2270 = vmul.f32 %v2165, %v2206
  %v2271 = vmul.f32 %v2166, %v2208
  %v2272 = vmul.f32 %v2167, %v2210
  %v2273 = vmul.f32 %v2168, %v2212
  %v2274 = vmul.f32 %v2169, %v2214
  %v2275 = vmul.f32 %v2170, %v2216
  %v2276 = vmul.f32 %v2171, %v2218
  %v2277 = vmul.f32 %v2172, %v2220
  %v2278 = vmul.f32 %v2173, %v2222
  %v2279 = vmul.f32 %v2174, %v2224
  %v2280 = vmul.f32 %v2175, %v2226
  %v2281 = vmul.f32 %v2176, %v2228
  %v2282 = vmul.f32 %v2177, %v2227
  %v2310 = vrot.slane %v2256, 5
  %v2311 = vrot.slane %v2257, 5
  %v2312 = vsel %vm1881, %v2310, %v2311
  %v2313 = vrot.slane %v2258, 5
  %v2314 = vsel %vm1881, %v2311, %v2313
  %v2315 = vrot.slane %v2259, 5
  %v2316 = vsel %vm1881, %v2313, %v2315
  %v2317 = vrot.slane %v2260, 5
  %v2318 = vsel %vm1881, %v2315, %v2317
  %v2319 = vrot.slane %v2261, 5
  %v2320 = vsel %vm1881, %v2317, %v2319
  %v2321 = vrot.slane %v2262, 5
  %v2322 = vsel %vm1881, %v2319, %v2321
  %v2323 = vrot.slane %v2263, 5
  %v2324 = vsel %vm1881, %v2321, %v2323
  %v2325 = vrot.slane %v2264, 5
  %v2326 = vsel %vm1881, %v2323, %v2325
  %v2327 = vrot.slane %v2265, 5
  %v2328 = vsel %vm1881, %v2325, %v2327
  %v2329 = vrot.slane %v2266, 5
  %v2330 = vsel %vm1881, %v2327, %v2329
  %v2331 = vrot.slane %v2267, 5
  %v2332 = vsel %vm1881, %v2329, %v2331
  %v2333 = vrot.slane %v2268, 5
  %v2334 = vsel %vm1881, %v2331, %v2333
  %v2335 = vrot.slane %v2269, 5
  %v2336 = vsel %vm1881, %v2333, %v2335
  %v2337 = vrot.slane %v2270, 5
  %v2338 = vsel %vm1881, %v2335, %v2337
  %v2339 = vrot.slane %v2271, 5
  %v2340 = vsel %vm1881, %v2337, %v2339
  %v2341 = vrot.slane %v2272, 5
  %v2342 = vsel %vm1881, %v2339, %v2341
  %v2343 = vrot.slane %v2273, 5
  %v2344 = vsel %vm1881, %v2341, %v2343
  %v2345 = vrot.slane %v2274, 5
  %v2346 = vsel %vm1881, %v2343, %v2345
  %v2347 = vrot.slane %v2275, 5
  %v2348 = vsel %vm1881, %v2345, %v2347
  %v2349 = vrot.slane %v2276, 5
  %v2350 = vsel %vm1881, %v2347, %v2349
  %v2351 = vrot.slane %v2277, 5
  %v2352 = vsel %vm1881, %v2349, %v2351
  %v2353 = vrot.slane %v2278, 5
  %v2354 = vsel %vm1881, %v2351, %v2353
  %v2355 = vrot.slane %v2279, 5
  %v2356 = vsel %vm1881, %v2353, %v2355
  %v2357 = vrot.slane %v2280, 5
  %v2358 = vsel %vm1881, %v2355, %v2357
  %v2359 = vrot.slane %v2281, 5
  %v2360 = vsel %vm1881, %v2357, %v2359
  %v2361 = vrot.slane %v2282, 5
  %v2362 = vsel %vm1881, %v2359, %v2361
  %v2389 = vsel %vm319, %v2312, 0.0
  %v2390 = vsel %vm319, %v2314, 0.0
  %v2391 = vadd.f32 %v2389, %v2390
  %v2392 = vsel %vm319, %v2316, 0.0
  %v2393 = vadd.f32 %v2391, %v2392
  %v2394 = vsel %vm319, %v2318, 0.0
  %v2395 = vadd.f32 %v2393, %v2394
  %v2396 = vsel %vm319, %v2320, 0.0
  %v2397 = vadd.f32 %v2395, %v2396
  %v2398 = vsel %vm319, %v2322, 0.0
  %v2399 = vadd.f32 %v2397, %v2398
  %v2400 = vsel %vm319, %v2324, 0.0
  %v2401 = vadd.f32 %v2399, %v2400
  %v2402 = vsel %vm319, %v2326, 0.0
  %v2403 = vadd.f32 %v2401, %v2402
  %v2404 = vsel %vm319, %v2328, 0.0
  %v2405 = vadd.f32 %v2403, %v2404
  %v2406 = vsel %vm319, %v2330, 0.0
  %v2407 = vadd.f32 %v2405, %v2406
  %v2408 = vsel %vm319, %v2332, 0.0
  %v2409 = vadd.f32 %v2407, %v2408
  %v2410 = vsel %vm319, %v2334, 0.0
  %v2411 = vadd.f32 %v2409, %v2410
  %v2412 = vsel %vm319, %v2336, 0.0
  %v2413 = vadd.f32 %v2411, %v2412
  %v2414 = vsel %vm319, %v2338, 0.0
  %v2415 = vadd.f32 %v2413, %v2414
  %v2416 = vsel %vm319, %v2340, 0.0
  %v2417 = vadd.f32 %v2415, %v2416
  %v2418 = vsel %vm319, %v2342, 0.0
  %v2419 = vadd.f32 %v2417, %v2418
  %v2420 = vsel %vm319, %v2344, 0.0
  %v2421 = vadd.f32 %v2419, %v2420
  %v2422 = vsel %vm319, %v2346, 0.0
  %v2423 = vadd.f32 %v2421, %v2422
  %v2424 = vsel %vm319, %v2348, 0.0
  %v2425 = vadd.f32 %v2423, %v2424
  %v2426 = vsel %vm319, %v2350, 0.0
  %v2427 = vadd.f32 %v2425, %v2426
  %v2428 = vsel %vm319, %v2352, 0.0
  %v2429 = vadd.f32 %v2427, %v2428
  %v2430 = vsel %vm319, %v2354, 0.0
  %v2431 = vadd.f32 %v2429, %v2430
  %v2432 = vsel %vm319, %v2356, 0.0
  %v2433 = vadd.f32 %v2431, %v2432
  %v2434 = vsel %vm319, %v2358, 0.0
  %v2435 = vadd.f32 %v2433, %v2434
  %v2436 = vsel %vm319, %v2360, 0.0
  %v2437 = vadd.f32 %v2435, %v2436
  %v2438 = vsel %vm319, %v2362, 0.0
  %v2439 = vadd.f32 %v2437, %v2438
  %v2440 = vrot.slane %v2439, 4
  %v2441 = vadd.f32 %v2439, %v2440
  %v2442 = vrot.slane %v2441, 2
  %v2443 = vadd.f32 %v2441, %v2442
  %v2444 = vrot.slane %v2443, 1
  %v2445 = vadd.f32 %v2443, %v2444
  %v2446 = vmul.f32 %v2445, 0.0078125
  %v2447 = vsub.f32 %v2151, %v2446
  %v2448 = vsub.f32 %v2152, %v2446
  %v2449 = vsub.f32 %v2153, %v2446
  %v2450 = vsub.f32 %v2154, %v2446
  %v2451 = vsub.f32 %v2155, %v2446
  %v2452 = vsub.f32 %v2156, %v2446
  %v2453 = vsub.f32 %v2157, %v2446
  %v2454 = vsub.f32 %v2158, %v2446
  %v2455 = vsub.f32 %v2159, %v2446
  %v2456 = vsub.f32 %v2160, %v2446
  %v2457 = vsub.f32 %v2161, %v2446
  %v2458 = vsub.f32 %v2162, %v2446
  %v2459 = vsub.f32 %v2163, %v2446
  %v2460 = vsub.f32 %v2164, %v2446
  %v2461 = vsub.f32 %v2165, %v2446
  %v2462 = vsub.f32 %v2166, %v2446
  %v2463 = vsub.f32 %v2167, %v2446
  %v2464 = vsub.f32 %v2168, %v2446
  %v2465 = vsub.f32 %v2169, %v2446
  %v2466 = vsub.f32 %v2170, %v2446
  %v2467 = vsub.f32 %v2171, %v2446
  %v2468 = vsub.f32 %v2172, %v2446
  %v2469 = vsub.f32 %v2173, %v2446
  %v2470 = vsub.f32 %v2174, %v2446
  %v2471 = vsub.f32 %v2175, %v2446
  %v2472 = vsub.f32 %v2176, %v2446
  %v2473 = vsub.f32 %v2177, %v2446
  %v2474 = vmul.f32 %v2447, %v2178
  %v2475 = vmul.f32 %v2448, %v2180
  %v2476 = vmul.f32 %v2449, %v2182
  %v2477 = vmul.f32 %v2450, %v2184
  %v2478 = vmul.f32 %v2451, %v2186
  %v2479 = vmul.f32 %v2452, %v2188
  %v2480 = vmul.f32 %v2453, %v2190
  %v2481 = vmul.f32 %v2454, %v2192
  %v2482 = vmul.f32 %v2455, %v2194
  %v2483 = vmul.f32 %v2456, %v2196
  %v2484 = vmul.f32 %v2457, %v2198
  %v2485 = vmul.f32 %v2458, %v2200
  %v2486 = vmul.f32 %v2459, %v2202
  %v2487 = vmul.f32 %v2460, %v2204
  %v2488 = vmul.f32 %v2461, %v2206
  %v2489 = vmul.f32 %v2462, %v2208
  %v2490 = vmul.f32 %v2463, %v2210
  %v2491 = vmul.f32 %v2464, %v2212
  %v2492 = vmul.f32 %v2465, %v2214
  %v2493 = vmul.f32 %v2466, %v2216
  %v2494 = vmul.f32 %v2467, %v2218
  %v2495 = vmul.f32 %v2468, %v2220
  %v2496 = vmul.f32 %v2469, %v2222
  %v2497 = vmul.f32 %v2470, %v2224
  %v2498 = vmul.f32 %v2471, %v2226
  %v2499 = vmul.f32 %v2472, %v2228
  %v2500 = vmul.f32 %v2473, %v2227
  %v2501 = vmul.f32 %v2474, %v2474
  %v2502 = vmul.f32 %v2475, %v2475
  %v2503 = vmul.f32 %v2476, %v2476
  %v2504 = vmul.f32 %v2477, %v2477
  %v2505 = vmul.f32 %v2478, %v2478
  %v2506 = vmul.f32 %v2479, %v2479
  %v2507 = vmul.f32 %v2480, %v2480
  %v2508 = vmul.f32 %v2481, %v2481
  %v2509 = vmul.f32 %v2482, %v2482
  %v2510 = vmul.f32 %v2483, %v2483
  %v2511 = vmul.f32 %v2484, %v2484
  %v2512 = vmul.f32 %v2485, %v2485
  %v2513 = vmul.f32 %v2486, %v2486
  %v2514 = vmul.f32 %v2487, %v2487
  %v2515 = vmul.f32 %v2488, %v2488
  %v2516 = vmul.f32 %v2489, %v2489
  %v2517 = vmul.f32 %v2490, %v2490
  %v2518 = vmul.f32 %v2491, %v2491
  %v2519 = vmul.f32 %v2492, %v2492
  %v2520 = vmul.f32 %v2493, %v2493
  %v2521 = vmul.f32 %v2494, %v2494
  %v2522 = vmul.f32 %v2495, %v2495
  %v2523 = vmul.f32 %v2496, %v2496
  %v2524 = vmul.f32 %v2497, %v2497
  %v2525 = vmul.f32 %v2498, %v2498
  %v2526 = vmul.f32 %v2499, %v2499
  %v2527 = vmul.f32 %v2500, %v2500
  %v2555 = vrot.slane %v2501, 5
  %v2556 = vrot.slane %v2502, 5
  %v2557 = vsel %vm1881, %v2555, %v2556
  %v2558 = vrot.slane %v2503, 5
  %v2559 = vsel %vm1881, %v2556, %v2558
  %v2560 = vrot.slane %v2504, 5
  %v2561 = vsel %vm1881, %v2558, %v2560
  %v2562 = vrot.slane %v2505, 5
  %v2563 = vsel %vm1881, %v2560, %v2562
  %v2564 = vrot.slane %v2506, 5
  %v2565 = vsel %vm1881, %v2562, %v2564
  %v2566 = vrot.slane %v2507, 5
  %v2567 = vsel %vm1881, %v2564, %v2566
  %v2568 = vrot.slane %v2508, 5
  %v2569 = vsel %vm1881, %v2566, %v2568
  %v2570 = vrot.slane %v2509, 5
  %v2571 = vsel %vm1881, %v2568, %v2570
  %v2572 = vrot.slane %v2510, 5
  %v2573 = vsel %vm1881, %v2570, %v2572
  %v2574 = vrot.slane %v2511, 5
  %v2575 = vsel %vm1881, %v2572, %v2574
  %v2576 = vrot.slane %v2512, 5
  %v2577 = vsel %vm1881, %v2574, %v2576
  %v2578 = vrot.slane %v2513, 5
  %v2579 = vsel %vm1881, %v2576, %v2578
  %v2580 = vrot.slane %v2514, 5
  %v2581 = vsel %vm1881, %v2578, %v2580
  %v2582 = vrot.slane %v2515, 5
  %v2583 = vsel %vm1881, %v2580, %v2582
  %v2584 = vrot.slane %v2516, 5
  %v2585 = vsel %vm1881, %v2582, %v2584
  %v2586 = vrot.slane %v2517, 5
  %v2587 = vsel %vm1881, %v2584, %v2586
  %v2588 = vrot.slane %v2518, 5
  %v2589 = vsel %vm1881, %v2586, %v2588
  %v2590 = vrot.slane %v2519, 5
  %v2591 = vsel %vm1881, %v2588, %v2590
  %v2592 = vrot.slane %v2520, 5
  %v2593 = vsel %vm1881, %v2590, %v2592
  %v2594 = vrot.slane %v2521, 5
  %v2595 = vsel %vm1881, %v2592, %v2594
  %v2596 = vrot.slane %v2522, 5
  %v2597 = vsel %vm1881, %v2594, %v2596
  %v2598 = vrot.slane %v2523, 5
  %v2599 = vsel %vm1881, %v2596, %v2598
  %v2600 = vrot.slane %v2524, 5
  %v2601 = vsel %vm1881, %v2598, %v2600
  %v2602 = vrot.slane %v2525, 5
  %v2603 = vsel %vm1881, %v2600, %v2602
  %v2604 = vrot.slane %v2526, 5
  %v2605 = vsel %vm1881, %v2602, %v2604
  %v2606 = vrot.slane %v2527, 5
  %v2607 = vsel %vm1881, %v2604, %v2606
  %v2634 = vsel %vm319, %v2557, 0.0
  %v2635 = vsel %vm319, %v2559, 0.0
  %v2636 = vadd.f32 %v2634, %v2635
  %v2637 = vsel %vm319, %v2561, 0.0
  %v2638 = vadd.f32 %v2636, %v2637
  %v2639 = vsel %vm319, %v2563, 0.0
  %v2640 = vadd.f32 %v2638, %v2639
  %v2641 = vsel %vm319, %v2565, 0.0
  %v2642 = vadd.f32 %v2640, %v2641
  %v2643 = vsel %vm319, %v2567, 0.0
  %v2644 = vadd.f32 %v2642, %v2643
  %v2645 = vsel %vm319, %v2569, 0.0
  %v2646 = vadd.f32 %v2644, %v2645
  %v2647 = vsel %vm319, %v2571, 0.0
  %v2648 = vadd.f32 %v2646, %v2647
  %v2649 = vsel %vm319, %v2573, 0.0
  %v2650 = vadd.f32 %v2648, %v2649
  %v2651 = vsel %vm319, %v2575, 0.0
  %v2652 = vadd.f32 %v2650, %v2651
  %v2653 = vsel %vm319, %v2577, 0.0
  %v2654 = vadd.f32 %v2652, %v2653
  %v2655 = vsel %vm319, %v2579, 0.0
  %v2656 = vadd.f32 %v2654, %v2655
  %v2657 = vsel %vm319, %v2581, 0.0
  %v2658 = vadd.f32 %v2656, %v2657
  %v2659 = vsel %vm319, %v2583, 0.0
  %v2660 = vadd.f32 %v2658, %v2659
  %v2661 = vsel %vm319, %v2585, 0.0
  %v2662 = vadd.f32 %v2660, %v2661
  %v2663 = vsel %vm319, %v2587, 0.0
  %v2664 = vadd.f32 %v2662, %v2663
  %v2665 = vsel %vm319, %v2589, 0.0
  %v2666 = vadd.f32 %v2664, %v2665
  %v2667 = vsel %vm319, %v2591, 0.0
  %v2668 = vadd.f32 %v2666, %v2667
  %v2669 = vsel %vm319, %v2593, 0.0
  %v2670 = vadd.f32 %v2668, %v2669
  %v2671 = vsel %vm319, %v2595, 0.0
  %v2672 = vadd.f32 %v2670, %v2671
  %v2673 = vsel %vm319, %v2597, 0.0
  %v2674 = vadd.f32 %v2672, %v2673
  %v2675 = vsel %vm319, %v2599, 0.0
  %v2676 = vadd.f32 %v2674, %v2675
  %v2677 = vsel %vm319, %v2601, 0.0
  %v2678 = vadd.f32 %v2676, %v2677
  %v2679 = vsel %vm319, %v2603, 0.0
  %v2680 = vadd.f32 %v2678, %v2679
  %v2681 = vsel %vm319, %v2605, 0.0
  %v2682 = vadd.f32 %v2680, %v2681
  %v2683 = vsel %vm319, %v2607, 0.0
  %v2684 = vadd.f32 %v2682, %v2683
  %v2685 = vrot.slane %v2684, 4
  %v2686 = vadd.f32 %v2684, %v2685
  %v2687 = vrot.slane %v2686, 2
  %v2688 = vadd.f32 %v2686, %v2687
  %v2689 = vrot.slane %v2688, 1
  %v2690 = vadd.f32 %v2688, %v2689
  %v2691 = vmul.f32 %v2690, 0.0078125
  %v2692 = vadd.f32 %v2691, 1e-05
  %v2693 = vrsqrt.pop %v2692
  %v2694 = vld [vmem:[%s5] sm:$0x1]
  %v2695 = vmul.f32 %v2693, %v2694
  %v2696 = vlaneseq
  %v2697 = vshrl.u32 %v2696, 7
  %v2698 = vsub.s32 0, %v2697
  %v2699 = vrot.slane %v2695, %v2698
  %v2700 = vmul.f32 %v2447, %v2699
  %v2701 = vmul.f32 %v2448, %v2699
  %v2702 = vmul.f32 %v2449, %v2699
  %v2703 = vmul.f32 %v2450, %v2699
  %v2704 = vmul.f32 %v2451, %v2699
  %v2705 = vmul.f32 %v2452, %v2699
  %v2706 = vmul.f32 %v2453, %v2699
  %v2707 = vmul.f32 %v2454, %v2699
  %v2708 = vmul.f32 %v2455, %v2699
  %v2709 = vmul.f32 %v2456, %v2699
  %v2710 = vmul.f32 %v2457, %v2699
  %v2711 = vmul.f32 %v2458, %v2699
  %v2712 = vmul.f32 %v2459, %v2699
  %v2713 = vmul.f32 %v2460, %v2699
  %v2714 = vmul.f32 %v2461, %v2699
  %v2715 = vmul.f32 %v2462, %v2699
  %v2716 = vmul.f32 %v2463, %v2699
  %v2717 = vmul.f32 %v2464, %v2699
  %v2718 = vmul.f32 %v2465, %v2699
  %v2719 = vmul.f32 %v2466, %v2699
  %v2720 = vmul.f32 %v2467, %v2699
  %v2721 = vmul.f32 %v2468, %v2699
  %v2722 = vmul.f32 %v2469, %v2699
  %v2723 = vmul.f32 %v2470, %v2699
  %v2724 = vmul.f32 %v2471, %v2699
  %v2725 = vmul.f32 %v2472, %v2699
  %v2726 = vmul.f32 %v2473, %v2699
  %v2727 = vld [vmem:[%s6] sm:$0x1]
  %v2729 = vlaneseq
  %v2730 = vshrl.u32 %v2729, 7
  %v2731 = vsub.s32 0, %v2730
  %v2732 = vrot.slane %v2727, %v2731
  %v2734 = vadd.f32 %v2700, %v2732
  %v2735 = vadd.f32 %v2701, %v2732
  %v2736 = vadd.f32 %v2702, %v2732
  %v2737 = vadd.f32 %v2703, %v2732
  %v2738 = vadd.f32 %v2704, %v2732
  %v2739 = vadd.f32 %v2705, %v2732
  %v2740 = vadd.f32 %v2706, %v2732
  %v2741 = vadd.f32 %v2707, %v2732
  %v2742 = vadd.f32 %v2708, %v2732
  %v2743 = vadd.f32 %v2709, %v2732
  %v2744 = vadd.f32 %v2710, %v2732
  %v2745 = vadd.f32 %v2711, %v2732
  %v2746 = vadd.f32 %v2712, %v2732
  %v2747 = vadd.f32 %v2713, %v2732
  %v2748 = vadd.f32 %v2714, %v2732
  %v2749 = vadd.f32 %v2715, %v2732
  %v2750 = vadd.f32 %v2716, %v2732
  %v2751 = vadd.f32 %v2717, %v2732
  %v2752 = vadd.f32 %v2718, %v2732
  %v2753 = vadd.f32 %v2719, %v2732
  %v2754 = vadd.f32 %v2720, %v2732
  %v2755 = vadd.f32 %v2721, %v2732
  %v2756 = vadd.f32 %v2722, %v2732
  %v2757 = vadd.f32 %v2723, %v2732
  %v2758 = vadd.f32 %v2724, %v2732
  %v2759 = vadd.f32 %v2725, %v2732
  %v2760 = vadd.f32 %v2726, %v2732
  %v2761 = vmax.f32 %v2734, 0.0
  %v2762 = vmax.f32 %v2735, 0.0
  %v2763 = vmax.f32 %v2736, 0.0
  %v2764 = vmax.f32 %v2737, 0.0
  %v2765 = vmax.f32 %v2738, 0.0
  %v2766 = vmax.f32 %v2739, 0.0
  %v2767 = vmax.f32 %v2740, 0.0
  %v2768 = vmax.f32 %v2741, 0.0
  %v2769 = vmax.f32 %v2742, 0.0
  %v2770 = vmax.f32 %v2743, 0.0
  %v2771 = vmax.f32 %v2744, 0.0
  %v2772 = vmax.f32 %v2745, 0.0
  %v2773 = vmax.f32 %v2746, 0.0
  %v2774 = vmax.f32 %v2747, 0.0
  %v2775 = vmax.f32 %v2748, 0.0
  %v2776 = vmax.f32 %v2749, 0.0
  %v2777 = vmax.f32 %v2750, 0.0
  %v2778 = vmax.f32 %v2751, 0.0
  %v2779 = vmax.f32 %v2752, 0.0
  %v2780 = vmax.f32 %v2753, 0.0
  %v2781 = vmax.f32 %v2754, 0.0
  %v2782 = vmax.f32 %v2755, 0.0
  %v2783 = vmax.f32 %v2756, 0.0
  %v2784 = vmax.f32 %v2757, 0.0
  %v2785 = vmax.f32 %v2758, 0.0
  %v2786 = vmax.f32 %v2759, 0.0
  %v2787 = vmax.f32 %v2760, 0.0
  %v2788 = vmul.f32 %v2761, %v2178
  %v2789 = vmul.f32 %v2762, %v2180
  %v2790 = vmul.f32 %v2763, %v2182
  %v2791 = vmul.f32 %v2764, %v2184
  %v2792 = vmul.f32 %v2765, %v2186
  %v2793 = vmul.f32 %v2766, %v2188
  %v2794 = vmul.f32 %v2767, %v2190
  %v2795 = vmul.f32 %v2768, %v2192
  %v2796 = vmul.f32 %v2769, %v2194
  %v2797 = vmul.f32 %v2770, %v2196
  %v2798 = vmul.f32 %v2771, %v2198
  %v2799 = vmul.f32 %v2772, %v2200
  %v2800 = vmul.f32 %v2773, %v2202
  %v2801 = vmul.f32 %v2774, %v2204
  %v2802 = vmul.f32 %v2775, %v2206
  %v2803 = vmul.f32 %v2776, %v2208
  %v2804 = vmul.f32 %v2777, %v2210
  %v2805 = vmul.f32 %v2778, %v2212
  %v2806 = vmul.f32 %v2779, %v2214
  %v2807 = vmul.f32 %v2780, %v2216
  %v2808 = vmul.f32 %v2781, %v2218
  %v2809 = vmul.f32 %v2782, %v2220
  %v2810 = vmul.f32 %v2783, %v2222
  %v2811 = vmul.f32 %v2784, %v2224
  %v2812 = vmul.f32 %v2785, %v2226
  %v2813 = vmul.f32 %v2786, %v2228
  %v2814 = vmul.f32 %v2787, %v2227
  %vm2815 = vcmask 519168
  %2816 = vst.msk [vmem:[#allocation2] sm:$0xf] %vm2815, 0
  %2817 = vst.msk [vmem:[#allocation2 + $0x4] sm:$0xf] %vm2815, 0
  %2818 = vst.msk [vmem:[#allocation2 + $0x70] sm:$0xf] %vm2815, 0
  %2819 = vst.msk [vmem:[#allocation2 + $0x74] sm:$0xf] %vm2815, 0
  %v2820 = vpack.c.bf16 %v2789, %v2788
  %v2821 = vpack.c.bf16 %v2791, %v2790
  %v2822 = vpack.c.bf16 %v2793, %v2792
  %v2823 = vpack.c.bf16 %v2795, %v2794
  %v2824 = vpack.c.bf16 %v2797, %v2796
  %v2825 = vpack.c.bf16 %v2799, %v2798
  %v2826 = vpack.c.bf16 %v2801, %v2800
  %v2827 = vpack.c.bf16 %v2803, %v2802
  %v2828 = vpack.c.bf16 %v2805, %v2804
  %v2829 = vpack.c.bf16 %v2807, %v2806
  %v2830 = vpack.c.bf16 %v2809, %v2808
  %v2831 = vpack.c.bf16 %v2811, %v2810
  %v2832 = vpack.c.bf16 %v2813, %v2812
  %v2833 = vpack.c.bf16 %v2814, %v2814
  %v2848 = vunpack.c.l.b16 %v2820
  %v2849 = vunpack.c.h.b16 %v2820
  %v2850 = vunpack.c.l.b16 %v2821
  %v2851 = vunpack.c.h.b16 %v2821
  %v2852 = vunpack.c.l.b16 %v2822
  %v2853 = vunpack.c.h.b16 %v2822
  %v2854 = vunpack.c.l.b16 %v2823
  %v2855 = vunpack.c.h.b16 %v2823
  %v2856 = vunpack.c.l.b16 %v2824
  %v2857 = vunpack.c.h.b16 %v2824
  %v2858 = vunpack.c.l.b16 %v2825
  %v2859 = vunpack.c.h.b16 %v2825
  %v2860 = vunpack.c.l.b16 %v2826
  %v2861 = vunpack.c.h.b16 %v2826
  %v2862 = vunpack.c.l.b16 %v2827
  %v2863 = vunpack.c.h.b16 %v2827
  %v2864 = vunpack.c.l.b16 %v2828
  %v2865 = vunpack.c.h.b16 %v2828
  %v2866 = vunpack.c.l.b16 %v2829
  %v2867 = vunpack.c.h.b16 %v2829
  %v2868 = vunpack.c.l.b16 %v2830
  %v2869 = vunpack.c.h.b16 %v2830
  %v2870 = vunpack.c.l.b16 %v2831
  %v2871 = vunpack.c.h.b16 %v2831
  %v2872 = vunpack.c.l.b16 %v2832
  %v2873 = vunpack.c.h.b16 %v2832
  %v2874 = vunpack.c.l.b16 %v2833
  %v2875 = vpack.c.b16 %v2848, %v2848
  %v2876 = vpack.c.b16 %v2849, %v2849
  %v2877 = vpack.c.b16 %v2850, %v2850
  %v2878 = vpack.c.b16 %v2851, %v2851
  %v2879 = vpack.c.b16 %v2852, %v2852
  %v2880 = vpack.c.b16 %v2853, %v2853
  %v2881 = vpack.c.b16 %v2854, %v2854
  %v2882 = vpack.c.b16 %v2855, %v2855
  %v2883 = vpack.c.b16 %v2856, %v2856
  %v2884 = vpack.c.b16 %v2857, %v2857
  %v2885 = vpack.c.b16 %v2858, %v2858
  %v2886 = vpack.c.b16 %v2859, %v2859
  %v2887 = vpack.c.b16 %v2860, %v2860
  %v2888 = vpack.c.b16 %v2861, %v2861
  %v2889 = vpack.c.b16 %v2862, %v2862
  %v2890 = vpack.c.b16 %v2863, %v2863
  %v2891 = vpack.c.b16 %v2864, %v2864
  %v2892 = vpack.c.b16 %v2865, %v2865
  %v2893 = vpack.c.b16 %v2866, %v2866
  %v2894 = vpack.c.b16 %v2867, %v2867
  %v2895 = vpack.c.b16 %v2868, %v2868
  %v2896 = vpack.c.b16 %v2869, %v2869
  %v2897 = vpack.c.b16 %v2870, %v2870
  %v2898 = vpack.c.b16 %v2871, %v2871
  %v2899 = vpack.c.b16 %v2872, %v2872
  %v2900 = vpack.c.b16 %v2873, %v2873
  %v2901 = vpack.c.b16 %v2874, %v2874
  %vm2902 = vsmask.f32 1280
  %vm2903 = vsmask.f32 5392
  %vm2904 = vmor %vm2902, %vm2903
  %v2906 = vshrl.u32 %v2875, 16
  %v2908 = vrot.slane %v2906, 6
  %v2909 = vshll.u32 %v2875, 16
  %v2911 = vrot.slane %v2909, 7
  %v2912 = vor.u32 %v2908, %v2911
  %v2913 = vrot.slane %v2912, 4
  %v2915 = vshrl.u32 %v2876, 16
  %v2917 = vrot.slane %v2915, 6
  %v2918 = vshll.u32 %v2876, 16
  %v2920 = vrot.slane %v2918, 7
  %v2921 = vor.u32 %v2917, %v2920
  %v2922 = vsel %vm2904, %v2913, %v2921
  %v2923 = vrot.slane %v2921, 4
  %v2925 = vshrl.u32 %v2877, 16
  %v2927 = vrot.slane %v2925, 6
  %v2928 = vshll.u32 %v2877, 16
  %v2930 = vrot.slane %v2928, 7
  %v2931 = vor.u32 %v2927, %v2930
  %v2932 = vsel %vm2904, %v2923, %v2931
  %v2933 = vrot.slane %v2931, 4
  %v2935 = vshrl.u32 %v2878, 16
  %v2937 = vrot.slane %v2935, 6
  %v2938 = vshll.u32 %v2878, 16
  %v2940 = vrot.slane %v2938, 7
  %v2941 = vor.u32 %v2937, %v2940
  %v2942 = vsel %vm2904, %v2933, %v2941
  %v2943 = vrot.slane %v2941, 4
  %v2945 = vshrl.u32 %v2879, 16
  %v2947 = vrot.slane %v2945, 6
  %v2948 = vshll.u32 %v2879, 16
  %v2950 = vrot.slane %v2948, 7
  %v2951 = vor.u32 %v2947, %v2950
  %v2952 = vsel %vm2904, %v2943, %v2951
  %v2953 = vrot.slane %v2951, 4
  %v2955 = vshrl.u32 %v2880, 16
  %v2957 = vrot.slane %v2955, 6
  %v2958 = vshll.u32 %v2880, 16
  %v2960 = vrot.slane %v2958, 7
  %v2961 = vor.u32 %v2957, %v2960
  %v2962 = vsel %vm2904, %v2953, %v2961
  %v2963 = vrot.slane %v2961, 4
  %v2965 = vshrl.u32 %v2881, 16
  %v2967 = vrot.slane %v2965, 6
  %v2968 = vshll.u32 %v2881, 16
  %v2970 = vrot.slane %v2968, 7
  %v2971 = vor.u32 %v2967, %v2970
  %v2972 = vsel %vm2904, %v2963, %v2971
  %v2973 = vrot.slane %v2971, 4
  %v2975 = vshrl.u32 %v2882, 16
  %v2977 = vrot.slane %v2975, 6
  %v2978 = vshll.u32 %v2882, 16
  %v2980 = vrot.slane %v2978, 7
  %v2981 = vor.u32 %v2977, %v2980
  %v2982 = vsel %vm2904, %v2973, %v2981
  %v2983 = vrot.slane %v2981, 4
  %v2985 = vshrl.u32 %v2883, 16
  %v2987 = vrot.slane %v2985, 6
  %v2988 = vshll.u32 %v2883, 16
  %v2990 = vrot.slane %v2988, 7
  %v2991 = vor.u32 %v2987, %v2990
  %v2992 = vsel %vm2904, %v2983, %v2991
  %v2993 = vrot.slane %v2991, 4
  %v2995 = vshrl.u32 %v2884, 16
  %v2997 = vrot.slane %v2995, 6
  %v2998 = vshll.u32 %v2884, 16
  %v3000 = vrot.slane %v2998, 7
  %v3001 = vor.u32 %v2997, %v3000
  %v3002 = vsel %vm2904, %v2993, %v3001
  %v3003 = vrot.slane %v3001, 4
  %v3005 = vshrl.u32 %v2885, 16
  %v3007 = vrot.slane %v3005, 6
  %v3008 = vshll.u32 %v2885, 16
  %v3010 = vrot.slane %v3008, 7
  %v3011 = vor.u32 %v3007, %v3010
  %v3012 = vsel %vm2904, %v3003, %v3011
  %v3013 = vrot.slane %v3011, 4
  %v3015 = vshrl.u32 %v2886, 16
  %v3017 = vrot.slane %v3015, 6
  %v3018 = vshll.u32 %v2886, 16
  %v3020 = vrot.slane %v3018, 7
  %v3021 = vor.u32 %v3017, %v3020
  %v3022 = vsel %vm2904, %v3013, %v3021
  %v3023 = vrot.slane %v3021, 4
  %v3025 = vshrl.u32 %v2887, 16
  %v3027 = vrot.slane %v3025, 6
  %v3028 = vshll.u32 %v2887, 16
  %v3030 = vrot.slane %v3028, 7
  %v3031 = vor.u32 %v3027, %v3030
  %v3032 = vsel %vm2904, %v3023, %v3031
  %v3033 = vrot.slane %v3031, 4
  %v3035 = vshrl.u32 %v2888, 16
  %v3037 = vrot.slane %v3035, 6
  %v3038 = vshll.u32 %v2888, 16
  %v3040 = vrot.slane %v3038, 7
  %v3041 = vor.u32 %v3037, %v3040
  %v3042 = vsel %vm2904, %v3033, %v3041
  %v3043 = vrot.slane %v3041, 4
  %v3045 = vshrl.u32 %v2889, 16
  %v3047 = vrot.slane %v3045, 6
  %v3048 = vshll.u32 %v2889, 16
  %v3050 = vrot.slane %v3048, 7
  %v3051 = vor.u32 %v3047, %v3050
  %v3052 = vsel %vm2904, %v3043, %v3051
  %v3053 = vrot.slane %v3051, 4
  %v3055 = vshrl.u32 %v2890, 16
  %v3057 = vrot.slane %v3055, 6
  %v3058 = vshll.u32 %v2890, 16
  %v3060 = vrot.slane %v3058, 7
  %v3061 = vor.u32 %v3057, %v3060
  %v3062 = vsel %vm2904, %v3053, %v3061
  %v3063 = vrot.slane %v3061, 4
  %v3065 = vshrl.u32 %v2891, 16
  %v3067 = vrot.slane %v3065, 6
  %v3068 = vshll.u32 %v2891, 16
  %v3070 = vrot.slane %v3068, 7
  %v3071 = vor.u32 %v3067, %v3070
  %v3072 = vsel %vm2904, %v3063, %v3071
  %v3073 = vrot.slane %v3071, 4
  %v3075 = vshrl.u32 %v2892, 16
  %v3077 = vrot.slane %v3075, 6
  %v3078 = vshll.u32 %v2892, 16
  %v3080 = vrot.slane %v3078, 7
  %v3081 = vor.u32 %v3077, %v3080
  %v3082 = vsel %vm2904, %v3073, %v3081
  %v3083 = vrot.slane %v3081, 4
  %v3085 = vshrl.u32 %v2893, 16
  %v3087 = vrot.slane %v3085, 6
  %v3088 = vshll.u32 %v2893, 16
  %v3090 = vrot.slane %v3088, 7
  %v3091 = vor.u32 %v3087, %v3090
  %v3092 = vsel %vm2904, %v3083, %v3091
  %v3093 = vrot.slane %v3091, 4
  %v3095 = vshrl.u32 %v2894, 16
  %v3097 = vrot.slane %v3095, 6
  %v3098 = vshll.u32 %v2894, 16
  %v3100 = vrot.slane %v3098, 7
  %v3101 = vor.u32 %v3097, %v3100
  %v3102 = vsel %vm2904, %v3093, %v3101
  %v3103 = vrot.slane %v3101, 4
  %v3105 = vshrl.u32 %v2895, 16
  %v3107 = vrot.slane %v3105, 6
  %v3108 = vshll.u32 %v2895, 16
  %v3110 = vrot.slane %v3108, 7
  %v3111 = vor.u32 %v3107, %v3110
  %v3112 = vsel %vm2904, %v3103, %v3111
  %v3113 = vrot.slane %v3111, 4
  %v3115 = vshrl.u32 %v2896, 16
  %v3117 = vrot.slane %v3115, 6
  %v3118 = vshll.u32 %v2896, 16
  %v3120 = vrot.slane %v3118, 7
  %v3121 = vor.u32 %v3117, %v3120
  %v3122 = vsel %vm2904, %v3113, %v3121
  %v3123 = vrot.slane %v3121, 4
  %v3125 = vshrl.u32 %v2897, 16
  %v3127 = vrot.slane %v3125, 6
  %v3128 = vshll.u32 %v2897, 16
  %v3130 = vrot.slane %v3128, 7
  %v3131 = vor.u32 %v3127, %v3130
  %v3132 = vsel %vm2904, %v3123, %v3131
  %v3133 = vrot.slane %v3131, 4
  %v3135 = vshrl.u32 %v2898, 16
  %v3137 = vrot.slane %v3135, 6
  %v3138 = vshll.u32 %v2898, 16
  %v3140 = vrot.slane %v3138, 7
  %v3141 = vor.u32 %v3137, %v3140
  %v3142 = vsel %vm2904, %v3133, %v3141
  %v3143 = vrot.slane %v3141, 4
  %v3145 = vshrl.u32 %v2899, 16
  %v3147 = vrot.slane %v3145, 6
  %v3148 = vshll.u32 %v2899, 16
  %v3150 = vrot.slane %v3148, 7
  %v3151 = vor.u32 %v3147, %v3150
  %v3152 = vsel %vm2904, %v3143, %v3151
  %v3153 = vrot.slane %v3151, 4
  %v3155 = vshrl.u32 %v2900, 16
  %v3157 = vrot.slane %v3155, 6
  %v3158 = vshll.u32 %v2900, 16
  %v3160 = vrot.slane %v3158, 7
  %v3161 = vor.u32 %v3157, %v3160
  %v3162 = vsel %vm2904, %v3153, %v3161
  %v3163 = vrot.slane %v3161, 4
  %v3165 = vshrl.u32 %v2901, 16
  %v3167 = vrot.slane %v3165, 6
  %v3168 = vshll.u32 %v2901, 16
  %v3170 = vrot.slane %v3168, 7
  %v3171 = vor.u32 %v3167, %v3170
  %v3172 = vsel %vm2904, %v3163, %v3171
  %3199 = vst.msk [vmem:[#allocation2 + $0x8] sm:$0xf] %vm2815, %v2922
  %3200 = vst.msk [vmem:[#allocation2 + $0xc] sm:$0xf] %vm2815, %v2932
  %3201 = vst.msk [vmem:[#allocation2 + $0x10] sm:$0xf] %vm2815, %v2942
  %3202 = vst.msk [vmem:[#allocation2 + $0x14] sm:$0xf] %vm2815, %v2952
  %3203 = vst.msk [vmem:[#allocation2 + $0x18] sm:$0xf] %vm2815, %v2962
  %3204 = vst.msk [vmem:[#allocation2 + $0x1c] sm:$0xf] %vm2815, %v2972
  %3205 = vst.msk [vmem:[#allocation2 + $0x20] sm:$0xf] %vm2815, %v2982
  %3206 = vst.msk [vmem:[#allocation2 + $0x24] sm:$0xf] %vm2815, %v2992
  %3207 = vst.msk [vmem:[#allocation2 + $0x28] sm:$0xf] %vm2815, %v3002
  %3208 = vst.msk [vmem:[#allocation2 + $0x2c] sm:$0xf] %vm2815, %v3012
  %3209 = vst.msk [vmem:[#allocation2 + $0x30] sm:$0xf] %vm2815, %v3022
  %3210 = vst.msk [vmem:[#allocation2 + $0x34] sm:$0xf] %vm2815, %v3032
  %3211 = vst.msk [vmem:[#allocation2 + $0x38] sm:$0xf] %vm2815, %v3042
  %3212 = vst.msk [vmem:[#allocation2 + $0x3c] sm:$0xf] %vm2815, %v3052
  %3213 = vst.msk [vmem:[#allocation2 + $0x40] sm:$0xf] %vm2815, %v3062
  %3214 = vst.msk [vmem:[#allocation2 + $0x44] sm:$0xf] %vm2815, %v3072
  %3215 = vst.msk [vmem:[#allocation2 + $0x48] sm:$0xf] %vm2815, %v3082
  %3216 = vst.msk [vmem:[#allocation2 + $0x4c] sm:$0xf] %vm2815, %v3092
  %3217 = vst.msk [vmem:[#allocation2 + $0x50] sm:$0xf] %vm2815, %v3102
  %3218 = vst.msk [vmem:[#allocation2 + $0x54] sm:$0xf] %vm2815, %v3112
  %3219 = vst.msk [vmem:[#allocation2 + $0x58] sm:$0xf] %vm2815, %v3122
  %3220 = vst.msk [vmem:[#allocation2 + $0x5c] sm:$0xf] %vm2815, %v3132
  %3221 = vst.msk [vmem:[#allocation2 + $0x60] sm:$0xf] %vm2815, %v3142
  %3222 = vst.msk [vmem:[#allocation2 + $0x64] sm:$0xf] %vm2815, %v3152
  %3223 = vst.msk [vmem:[#allocation2 + $0x68] sm:$0xf] %vm2815, %v3162
  %3224 = vst.msk [vmem:[#allocation2 + $0x6c] sm:$0xf] %vm2815, %v3172
  %v3225 = vld [vmem:[#allocation2] sm:$0xf]
  %v3226 = vld [vmem:[#allocation2 + $0x4] sm:$0xf]
  %v3227 = vld [vmem:[#allocation2 + $0x8] sm:$0xf]
  %v3228 = vld [vmem:[#allocation2 + $0xc] sm:$0xf]
  %v3229 = vld [vmem:[#allocation2 + $0x10] sm:$0xf]
  %v3230 = vld [vmem:[#allocation2 + $0x14] sm:$0xf]
  %v3231 = vld [vmem:[#allocation2 + $0x18] sm:$0xf]
  %v3232 = vld [vmem:[#allocation2 + $0x1c] sm:$0xf]
  %v3233 = vld [vmem:[#allocation2 + $0x20] sm:$0xf]
  %v3234 = vld [vmem:[#allocation2 + $0x24] sm:$0xf]
  %v3235 = vld [vmem:[#allocation2 + $0x28] sm:$0xf]
  %v3236 = vld [vmem:[#allocation2 + $0x2c] sm:$0xf]
  %v3237 = vld [vmem:[#allocation2 + $0x30] sm:$0xf]
  %v3238 = vld [vmem:[#allocation2 + $0x34] sm:$0xf]
  %v3239 = vld [vmem:[#allocation2 + $0x38] sm:$0xf]
  %v3240 = vld [vmem:[#allocation2 + $0x3c] sm:$0xf]
  %v3241 = vld [vmem:[#allocation2 + $0x40] sm:$0xf]
  %v3242 = vld [vmem:[#allocation2 + $0x44] sm:$0xf]
  %v3243 = vld [vmem:[#allocation2 + $0x48] sm:$0xf]
  %v3244 = vld [vmem:[#allocation2 + $0x4c] sm:$0xf]
  %v3245 = vld [vmem:[#allocation2 + $0x50] sm:$0xf]
  %v3246 = vld [vmem:[#allocation2 + $0x54] sm:$0xf]
  %v3247 = vld [vmem:[#allocation2 + $0x58] sm:$0xf]
  %v3248 = vld [vmem:[#allocation2 + $0x5c] sm:$0xf]
  %v3249 = vld [vmem:[#allocation2 + $0x60] sm:$0xf]
  %v3250 = vld [vmem:[#allocation2 + $0x64] sm:$0xf]
  %v3251 = vld [vmem:[#allocation2 + $0x68] sm:$0xf]
  %v3252 = vld [vmem:[#allocation2 + $0x6c] sm:$0xf]
  %v3253 = vld [vmem:[#allocation2 + $0x70] sm:$0xf]
  %v3254 = vld [vmem:[#allocation2 + $0x74] sm:$0xf]
  %v3255 = vld [vmem:[%s7] sm:$0xff]
  %v3256 = vld [vmem:[%s7 + $0x8] sm:$0xff]
  %v3257 = vld [vmem:[%s7 + $0x10] sm:$0xff]
  %v3258 = vld [vmem:[%s7 + $0x18] sm:$0xff]
  %v3259 = vld [vmem:[%s7 + $0x20] sm:$0xff]
  %v3260 = vld [vmem:[%s7 + $0x28] sm:$0xff]
  %v3261 = vld [vmem:[%s7 + $0x30] sm:$0xff]
  %v3262 = vld [vmem:[%s7 + $0x38] sm:$0xff]
  %v3293 = vunpack.c.l.b16 %v3225
  %v3294 = vunpack.c.l.b16 %v3226
  %v3295 = vunpack.c.l.b16 %v3227
  %v3296 = vunpack.c.l.b16 %v3228
  %v3297 = vunpack.c.l.b16 %v3229
  %v3298 = vunpack.c.l.b16 %v3230
  %v3299 = vunpack.c.l.b16 %v3231
  %v3300 = vunpack.c.l.b16 %v3232
  %v3301 = vunpack.c.l.b16 %v3233
  %v3302 = vunpack.c.l.b16 %v3234
  %v3303 = vunpack.c.l.b16 %v3235
  %v3304 = vunpack.c.l.b16 %v3236
  %v3305 = vunpack.c.l.b16 %v3237
  %v3306 = vunpack.c.l.b16 %v3238
  %v3307 = vunpack.c.l.b16 %v3239
  %v3308 = vunpack.c.l.b16 %v3240
  %v3309 = vunpack.c.l.b16 %v3241
  %v3310 = vunpack.c.l.b16 %v3242
  %v3311 = vunpack.c.l.b16 %v3243
  %v3312 = vunpack.c.l.b16 %v3244
  %v3313 = vunpack.c.l.b16 %v3245
  %v3314 = vunpack.c.l.b16 %v3246
  %v3315 = vunpack.c.l.b16 %v3247
  %v3316 = vunpack.c.l.b16 %v3248
  %v3317 = vunpack.c.l.b16 %v3249
  %v3318 = vunpack.c.l.b16 %v3250
  %v3319 = vunpack.c.l.b16 %v3251
  %v3320 = vunpack.c.l.b16 %v3252
  %v3321 = vunpack.c.l.b16 %v3253
  %v3322 = vunpack.c.l.b16 %v3254
  %v3323 = vpack.c.b16 %v3294, %v3293
  %v3324 = vpack.c.b16 %v3296, %v3295
  %v3325 = vpack.c.b16 %v3298, %v3297
  %v3326 = vpack.c.b16 %v3300, %v3299
  %v3327 = vpack.c.b16 %v3302, %v3301
  %v3328 = vpack.c.b16 %v3304, %v3303
  %v3329 = vpack.c.b16 %v3306, %v3305
  %v3330 = vpack.c.b16 %v3308, %v3307
  %v3331 = vpack.c.b16 %v3310, %v3309
  %v3332 = vpack.c.b16 %v3312, %v3311
  %v3333 = vpack.c.b16 %v3314, %v3313
  %v3334 = vpack.c.b16 %v3316, %v3315
  %v3335 = vpack.c.b16 %v3318, %v3317
  %v3336 = vpack.c.b16 %v3320, %v3319
  %v3337 = vpack.c.b16 %v3322, %v3321
  %v3346 = vunpack.c.l.b16 %v3255
  %v3347 = vunpack.c.h.b16 %v3255
  %v3348 = vunpack.c.l.b16 %v3256
  %v3349 = vunpack.c.h.b16 %v3256
  %v3350 = vunpack.c.l.b16 %v3257
  %v3351 = vunpack.c.h.b16 %v3257
  %v3352 = vunpack.c.l.b16 %v3258
  %v3353 = vunpack.c.h.b16 %v3258
  %v3354 = vunpack.c.l.b16 %v3259
  %v3355 = vunpack.c.h.b16 %v3259
  %v3356 = vunpack.c.l.b16 %v3260
  %v3357 = vunpack.c.h.b16 %v3260
  %v3358 = vunpack.c.l.b16 %v3261
  %v3359 = vunpack.c.h.b16 %v3261
  %v3360 = vunpack.c.l.b16 %v3262
  %v3361 = vunpack.c.h.b16 %v3262
  %v3362 = vpack.c.b16 %v3348, %v3346
  %v3363 = vpack.c.b16 %v3349, %v3347
  %v3364 = vpack.c.b16 %v3352, %v3350
  %v3365 = vpack.c.b16 %v3353, %v3351
  %v3366 = vpack.c.b16 %v3356, %v3354
  %v3367 = vpack.c.b16 %v3357, %v3355
  %v3368 = vpack.c.b16 %v3360, %v3358
  %v3369 = vpack.c.b16 %v3361, %v3359
  %v3379 = vsel %vm319, %v3323, 0
  %v3382 = vsel %vm319, %v3324, 0
  %v3385 = vsel %vm319, %v3325, 0
  %v3388 = vsel %vm319, %v3326, 0
  %v3391 = vsel %vm319, %v3327, 0
  %v3394 = vsel %vm319, %v3328, 0
  %v3397 = vsel %vm319, %v3329, 0
  %v3400 = vsel %vm319, %v3330, 0
  %v3403 = vsel %vm319, %v3331, 0
  %v3406 = vsel %vm319, %v3332, 0
  %v3409 = vsel %vm319, %v3333, 0
  %v3412 = vsel %vm319, %v3334, 0
  %v3415 = vsel %vm319, %v3335, 0
  %v3418 = vsel %vm319, %v3336, 0
  %v3421 = vsel %vm319, %v3337, 0
  %3423 = vmatprep.subr.bf16.mxu0 0
  %3424 = vmatpush1.bf16.msra.mxu0 0
  %3425 = vmatprep.subr.bf16.mxu0 0
  %3426 = vmatpush1.bf16.msra.mxu0 0
  %3427 = vmatprep.subr.bf16.mxu0 0
  %3428 = vmatpush1.bf16.msra.mxu0 0
  %3429 = vmatprep.subr.bf16.mxu0 0
  %3430 = vmatpush1.bf16.msra.mxu0 0
  %3431 = vmatprep.subr.bf16.mxu0 %v3369
  %3432 = vmatpush1.bf16.msra.mxu0 %v3368
  %3433 = vmatprep.subr.bf16.mxu0 %v3367
  %3434 = vmatpush1.bf16.msra.mxu0 %v3366
  %3435 = vmatprep.subr.bf16.mxu0 %v3365
  %3436 = vmatpush1.bf16.msra.mxu0 %v3364
  %3437 = vmatprep.subr.bf16.mxu0 %v3363
  %3438 = vmatpush1.bf16.msra.mxu0 %v3362
  %3439 = vmatprep.subr.bf16.mxu0 0
  %3440 = vmatpush2.bf16.msra.mxu0 0
  %3441 = vmatprep.subr.bf16.mxu0 0
  %3442 = vmatpush2.bf16.msra.mxu0 0
  %3443 = vmatprep.subr.bf16.mxu0 0
  %3444 = vmatpush2.bf16.msra.mxu0 0
  %3445 = vmatprep.subr.bf16.mxu0 0
  %3446 = vmatpush2.bf16.msra.mxu0 0
  %3447 = vmatprep.subr.bf16.mxu0 0
  %3448 = vmatpush2.bf16.msra.mxu0 0
  %3449 = vmatprep.subr.bf16.mxu0 0
  %3450 = vmatpush2.bf16.msra.mxu0 0
  %3451 = vmatprep.subr.bf16.mxu0 0
  %3452 = vmatpush2.bf16.msra.mxu0 0
  %3453 = vmatprep.subr.bf16.mxu0 0
  %3454 = vmatpush2.bf16.msra.mxu0 0
  %3455 = vmatprep.mubr.bf16.mxu0 0
  %3456 = vmatmul.mubr.bf16.gmra.mxu0 %v3379
  %v3457 = vpop.f32.mrf.mxu0
  %v3458 = vadd.f32 0.0, %v3457
  %v3459 = vpop.f32.mrf.mxu0
  %v3460 = vadd.f32 0.0, %v3459
  %v3461 = vpop.f32.mrf.mxu0
  %v3462 = vadd.f32 0.0, %v3461
  %v3463 = vpop.f32.mrf.mxu0
  %v3464 = vadd.f32 0.0, %v3463
  %3465 = vmatprep.mubr.bf16.mxu0 0
  %3466 = vmatmul.mubr.bf16.gmra.mxu0 %v3382
  %v3467 = vpop.f32.mrf.mxu0
  %v3468 = vadd.f32 0.0, %v3467
  %v3469 = vpop.f32.mrf.mxu0
  %v3470 = vadd.f32 0.0, %v3469
  %v3471 = vpop.f32.mrf.mxu0
  %v3472 = vadd.f32 0.0, %v3471
  %v3473 = vpop.f32.mrf.mxu0
  %v3474 = vadd.f32 0.0, %v3473
  %3475 = vmatprep.mubr.bf16.mxu0 0
  %3476 = vmatmul.mubr.bf16.gmra.mxu0 %v3385
  %v3477 = vpop.f32.mrf.mxu0
  %v3478 = vadd.f32 0.0, %v3477
  %v3479 = vpop.f32.mrf.mxu0
  %v3480 = vadd.f32 0.0, %v3479
  %v3481 = vpop.f32.mrf.mxu0
  %v3482 = vadd.f32 0.0, %v3481
  %v3483 = vpop.f32.mrf.mxu0
  %v3484 = vadd.f32 0.0, %v3483
  %3485 = vmatprep.mubr.bf16.mxu0 0
  %3486 = vmatmul.mubr.bf16.gmra.mxu0 %v3388
  %v3487 = vpop.f32.mrf.mxu0
  %v3488 = vadd.f32 0.0, %v3487
  %v3489 = vpop.f32.mrf.mxu0
  %v3490 = vadd.f32 0.0, %v3489
  %v3491 = vpop.f32.mrf.mxu0
  %v3492 = vadd.f32 0.0, %v3491
  %v3493 = vpop.f32.mrf.mxu0
  %v3494 = vadd.f32 0.0, %v3493
  %3495 = vmatprep.mubr.bf16.mxu0 0
  %3496 = vmatmul.mubr.bf16.gmra.mxu0 %v3391
  %v3497 = vpop.f32.mrf.mxu0
  %v3498 = vadd.f32 0.0, %v3497
  %v3499 = vpop.f32.mrf.mxu0
  %v3500 = vadd.f32 0.0, %v3499
  %v3501 = vpop.f32.mrf.mxu0
  %v3502 = vadd.f32 0.0, %v3501
  %v3503 = vpop.f32.mrf.mxu0
  %v3504 = vadd.f32 0.0, %v3503
  %3505 = vmatprep.mubr.bf16.mxu0 0
  %3506 = vmatmul.mubr.bf16.gmra.mxu0 %v3394
  %v3507 = vpop.f32.mrf.mxu0
  %v3508 = vadd.f32 0.0, %v3507
  %v3509 = vpop.f32.mrf.mxu0
  %v3510 = vadd.f32 0.0, %v3509
  %v3511 = vpop.f32.mrf.mxu0
  %v3512 = vadd.f32 0.0, %v3511
  %v3513 = vpop.f32.mrf.mxu0
  %v3514 = vadd.f32 0.0, %v3513
  %3515 = vmatprep.mubr.bf16.mxu0 0
  %3516 = vmatmul.mubr.bf16.gmra.mxu0 %v3397
  %v3517 = vpop.f32.mrf.mxu0
  %v3518 = vadd.f32 0.0, %v3517
  %v3519 = vpop.f32.mrf.mxu0
  %v3520 = vadd.f32 0.0, %v3519
  %v3521 = vpop.f32.mrf.mxu0
  %v3522 = vadd.f32 0.0, %v3521
  %v3523 = vpop.f32.mrf.mxu0
  %v3524 = vadd.f32 0.0, %v3523
  %3525 = vmatprep.mubr.bf16.mxu0 0
  %3526 = vmatmul.mubr.bf16.gmra.mxu0 %v3400
  %v3527 = vpop.f32.mrf.mxu0
  %v3528 = vadd.f32 0.0, %v3527
  %v3529 = vpop.f32.mrf.mxu0
  %v3530 = vadd.f32 0.0, %v3529
  %v3531 = vpop.f32.mrf.mxu0
  %v3532 = vadd.f32 0.0, %v3531
  %v3533 = vpop.f32.mrf.mxu0
  %v3534 = vadd.f32 0.0, %v3533
  %3535 = vmatprep.mubr.bf16.mxu0 0
  %3536 = vmatmul.mubr.bf16.gmra.mxu0 %v3403
  %v3537 = vpop.f32.mrf.mxu0
  %v3538 = vadd.f32 0.0, %v3537
  %v3539 = vpop.f32.mrf.mxu0
  %v3540 = vadd.f32 0.0, %v3539
  %v3541 = vpop.f32.mrf.mxu0
  %v3542 = vadd.f32 0.0, %v3541
  %v3543 = vpop.f32.mrf.mxu0
  %v3544 = vadd.f32 0.0, %v3543
  %3545 = vmatprep.mubr.bf16.mxu0 0
  %3546 = vmatmul.mubr.bf16.gmra.mxu0 %v3406
  %v3547 = vpop.f32.mrf.mxu0
  %v3548 = vadd.f32 0.0, %v3547
  %v3549 = vpop.f32.mrf.mxu0
  %v3550 = vadd.f32 0.0, %v3549
  %v3551 = vpop.f32.mrf.mxu0
  %v3552 = vadd.f32 0.0, %v3551
  %v3553 = vpop.f32.mrf.mxu0
  %v3554 = vadd.f32 0.0, %v3553
  %3555 = vmatprep.mubr.bf16.mxu0 0
  %3556 = vmatmul.mubr.bf16.gmra.mxu0 %v3409
  %v3557 = vpop.f32.mrf.mxu0
  %v3558 = vadd.f32 0.0, %v3557
  %v3559 = vpop.f32.mrf.mxu0
  %v3560 = vadd.f32 0.0, %v3559
  %v3561 = vpop.f32.mrf.mxu0
  %v3562 = vadd.f32 0.0, %v3561
  %v3563 = vpop.f32.mrf.mxu0
  %v3564 = vadd.f32 0.0, %v3563
  %3565 = vmatprep.mubr.bf16.mxu0 0
  %3566 = vmatmul.mubr.bf16.gmra.mxu0 %v3412
  %v3567 = vpop.f32.mrf.mxu0
  %v3568 = vadd.f32 0.0, %v3567
  %v3569 = vpop.f32.mrf.mxu0
  %v3570 = vadd.f32 0.0, %v3569
  %v3571 = vpop.f32.mrf.mxu0
  %v3572 = vadd.f32 0.0, %v3571
  %v3573 = vpop.f32.mrf.mxu0
  %v3574 = vadd.f32 0.0, %v3573
  %3575 = vmatprep.mubr.bf16.mxu0 0
  %3576 = vmatmul.mubr.bf16.gmra.mxu0 %v3415
  %v3577 = vpop.f32.mrf.mxu0
  %v3578 = vadd.f32 0.0, %v3577
  %v3579 = vpop.f32.mrf.mxu0
  %v3580 = vadd.f32 0.0, %v3579
  %v3581 = vpop.f32.mrf.mxu0
  %v3582 = vadd.f32 0.0, %v3581
  %v3583 = vpop.f32.mrf.mxu0
  %v3584 = vadd.f32 0.0, %v3583
  %3585 = vmatprep.mubr.bf16.mxu0 0
  %3586 = vmatmul.mubr.bf16.gmra.mxu0 %v3418
  %v3587 = vpop.f32.mrf.mxu0
  %v3588 = vadd.f32 0.0, %v3587
  %v3589 = vpop.f32.mrf.mxu0
  %v3590 = vadd.f32 0.0, %v3589
  %v3591 = vpop.f32.mrf.mxu0
  %v3592 = vpop.f32.mrf.mxu0
  %3593 = vmatprep.mubr.bf16.mxu0 0
  %3594 = vmatmul.mubr.bf16.gmra.mxu0 %v3421
  %v3595 = vpop.f32.mrf.mxu0
  %v3596 = vpop.f32.mrf.mxu0
  %v3597 = vpop.f32.mrf.mxu0
  %v3598 = vpop.f32.mrf.mxu0
  %3599 = vdwg.mxu0
  %v3627 = vrot.slane %v3458, 1
  %v3628 = vrot.slane %v3462, 1
  %v3629 = vsel %vm569, %v3627, %v3628
  %v3630 = vrot.slane %v3468, 1
  %v3631 = vsel %vm569, %v3628, %v3630
  %v3632 = vrot.slane %v3472, 1
  %v3633 = vsel %vm569, %v3630, %v3632
  %v3634 = vrot.slane %v3478, 1
  %v3635 = vsel %vm569, %v3632, %v3634
  %v3636 = vrot.slane %v3482, 1
  %v3637 = vsel %vm569, %v3634, %v3636
  %v3638 = vrot.slane %v3488, 1
  %v3639 = vsel %vm569, %v3636, %v3638
  %v3640 = vrot.slane %v3492, 1
  %v3641 = vsel %vm569, %v3638, %v3640
  %v3642 = vrot.slane %v3498, 1
  %v3643 = vsel %vm569, %v3640, %v3642
  %v3644 = vrot.slane %v3502, 1
  %v3645 = vsel %vm569, %v3642, %v3644
  %v3646 = vrot.slane %v3508, 1
  %v3647 = vsel %vm569, %v3644, %v3646
  %v3648 = vrot.slane %v3512, 1
  %v3649 = vsel %vm569, %v3646, %v3648
  %v3650 = vrot.slane %v3518, 1
  %v3651 = vsel %vm569, %v3648, %v3650
  %v3652 = vrot.slane %v3522, 1
  %v3653 = vsel %vm569, %v3650, %v3652
  %v3654 = vrot.slane %v3528, 1
  %v3655 = vsel %vm569, %v3652, %v3654
  %v3656 = vrot.slane %v3532, 1
  %v3657 = vsel %vm569, %v3654, %v3656
  %v3658 = vrot.slane %v3538, 1
  %v3659 = vsel %vm569, %v3656, %v3658
  %v3660 = vrot.slane %v3542, 1
  %v3661 = vsel %vm569, %v3658, %v3660
  %v3662 = vrot.slane %v3548, 1
  %v3663 = vsel %vm569, %v3660, %v3662
  %v3664 = vrot.slane %v3552, 1
  %v3665 = vsel %vm569, %v3662, %v3664
  %v3666 = vrot.slane %v3558, 1
  %v3667 = vsel %vm569, %v3664, %v3666
  %v3668 = vrot.slane %v3562, 1
  %v3669 = vsel %vm569, %v3666, %v3668
  %v3670 = vrot.slane %v3568, 1
  %v3671 = vsel %vm569, %v3668, %v3670
  %v3672 = vrot.slane %v3572, 1
  %v3673 = vsel %vm569, %v3670, %v3672
  %v3674 = vrot.slane %v3578, 1
  %v3675 = vsel %vm569, %v3672, %v3674
  %v3676 = vrot.slane %v3582, 1
  %v3677 = vsel %vm569, %v3674, %v3676
  %v3678 = vrot.slane %v3588, 1
  %v3679 = vsel %vm569, %v3676, %v3678
  %3680 = vrot.lane.b32.xlu0 %v3629, 64
  %v3681 = vpop.permute.xlu0 %3680
  %3682 = vrot.lane.b32.xlu0 %v3631, 64
  %v3683 = vpop.permute.xlu0 %3682
  %3684 = vrot.lane.b32.xlu0 %v3633, 64
  %v3685 = vpop.permute.xlu0 %3684
  %3686 = vrot.lane.b32.xlu0 %v3635, 64
  %v3687 = vpop.permute.xlu0 %3686
  %3688 = vrot.lane.b32.xlu0 %v3637, 64
  %v3689 = vpop.permute.xlu0 %3688
  %3690 = vrot.lane.b32.xlu0 %v3639, 64
  %v3691 = vpop.permute.xlu0 %3690
  %3692 = vrot.lane.b32.xlu0 %v3641, 64
  %v3693 = vpop.permute.xlu0 %3692
  %3694 = vrot.lane.b32.xlu0 %v3643, 64
  %v3695 = vpop.permute.xlu0 %3694
  %3696 = vrot.lane.b32.xlu0 %v3645, 64
  %v3697 = vpop.permute.xlu0 %3696
  %3698 = vrot.lane.b32.xlu0 %v3647, 64
  %v3699 = vpop.permute.xlu0 %3698
  %3700 = vrot.lane.b32.xlu0 %v3649, 64
  %v3701 = vpop.permute.xlu0 %3700
  %3702 = vrot.lane.b32.xlu0 %v3651, 64
  %v3703 = vpop.permute.xlu0 %3702
  %3704 = vrot.lane.b32.xlu0 %v3653, 64
  %v3705 = vpop.permute.xlu0 %3704
  %3706 = vrot.lane.b32.xlu0 %v3655, 64
  %v3707 = vpop.permute.xlu0 %3706
  %3708 = vrot.lane.b32.xlu0 %v3657, 64
  %v3709 = vpop.permute.xlu0 %3708
  %3710 = vrot.lane.b32.xlu0 %v3659, 64
  %v3711 = vpop.permute.xlu0 %3710
  %3712 = vrot.lane.b32.xlu0 %v3661, 64
  %v3713 = vpop.permute.xlu0 %3712
  %3714 = vrot.lane.b32.xlu0 %v3663, 64
  %v3715 = vpop.permute.xlu0 %3714
  %3716 = vrot.lane.b32.xlu0 %v3665, 64
  %v3717 = vpop.permute.xlu0 %3716
  %3718 = vrot.lane.b32.xlu0 %v3667, 64
  %v3719 = vpop.permute.xlu0 %3718
  %3720 = vrot.lane.b32.xlu0 %v3669, 64
  %v3721 = vpop.permute.xlu0 %3720
  %3722 = vrot.lane.b32.xlu0 %v3671, 64
  %v3723 = vpop.permute.xlu0 %3722
  %3724 = vrot.lane.b32.xlu0 %v3673, 64
  %v3725 = vpop.permute.xlu0 %3724
  %3726 = vrot.lane.b32.xlu0 %v3675, 64
  %v3727 = vpop.permute.xlu0 %3726
  %3728 = vrot.lane.b32.xlu0 %v3677, 64
  %v3729 = vpop.permute.xlu0 %3728
  %3730 = vrot.lane.b32.xlu0 %v3679, 64
  %v3731 = vpop.permute.xlu0 %3730
  %3732 = vrot.lane.b32.xlu0 %v3678, 64
  %v3733 = vpop.permute.xlu0 %3732
  %v3761 = vadd.f32 %v3458, %v3681
  %v3762 = vadd.f32 %v3462, %v3683
  %v3763 = vadd.f32 %v3468, %v3685
  %v3764 = vadd.f32 %v3472, %v3687
  %v3765 = vadd.f32 %v3478, %v3689
  %v3766 = vadd.f32 %v3482, %v3691
  %v3767 = vadd.f32 %v3488, %v3693
  %v3768 = vadd.f32 %v3492, %v3695
  %v3769 = vadd.f32 %v3498, %v3697
  %v3770 = vadd.f32 %v3502, %v3699
  %v3771 = vadd.f32 %v3508, %v3701
  %v3772 = vadd.f32 %v3512, %v3703
  %v3773 = vadd.f32 %v3518, %v3705
  %v3774 = vadd.f32 %v3522, %v3707
  %v3775 = vadd.f32 %v3528, %v3709
  %v3776 = vadd.f32 %v3532, %v3711
  %v3777 = vadd.f32 %v3538, %v3713
  %v3778 = vadd.f32 %v3542, %v3715
  %v3779 = vadd.f32 %v3548, %v3717
  %v3780 = vadd.f32 %v3552, %v3719
  %v3781 = vadd.f32 %v3558, %v3721
  %v3782 = vadd.f32 %v3562, %v3723
  %v3783 = vadd.f32 %v3568, %v3725
  %v3784 = vadd.f32 %v3572, %v3727
  %v3785 = vadd.f32 %v3578, %v3729
  %v3786 = vadd.f32 %v3582, %v3731
  %v3787 = vadd.f32 %v3588, %v3733
  %v3815 = vrot.slane %v3460, 2
  %v3816 = vrot.slane %v3464, 2
  %v3817 = vsel %vm758, %v3815, %v3816
  %v3818 = vrot.slane %v3470, 2
  %v3819 = vsel %vm758, %v3816, %v3818
  %v3820 = vrot.slane %v3474, 2
  %v3821 = vsel %vm758, %v3818, %v3820
  %v3822 = vrot.slane %v3480, 2
  %v3823 = vsel %vm758, %v3820, %v3822
  %v3824 = vrot.slane %v3484, 2
  %v3825 = vsel %vm758, %v3822, %v3824
  %v3826 = vrot.slane %v3490, 2
  %v3827 = vsel %vm758, %v3824, %v3826
  %v3828 = vrot.slane %v3494, 2
  %v3829 = vsel %vm758, %v3826, %v3828
  %v3830 = vrot.slane %v3500, 2
  %v3831 = vsel %vm758, %v3828, %v3830
  %v3832 = vrot.slane %v3504, 2
  %v3833 = vsel %vm758, %v3830, %v3832
  %v3834 = vrot.slane %v3510, 2
  %v3835 = vsel %vm758, %v3832, %v3834
  %v3836 = vrot.slane %v3514, 2
  %v3837 = vsel %vm758, %v3834, %v3836
  %v3838 = vrot.slane %v3520, 2
  %v3839 = vsel %vm758, %v3836, %v3838
  %v3840 = vrot.slane %v3524, 2
  %v3841 = vsel %vm758, %v3838, %v3840
  %v3842 = vrot.slane %v3530, 2
  %v3843 = vsel %vm758, %v3840, %v3842
  %v3844 = vrot.slane %v3534, 2
  %v3845 = vsel %vm758, %v3842, %v3844
  %v3846 = vrot.slane %v3540, 2
  %v3847 = vsel %vm758, %v3844, %v3846
  %v3848 = vrot.slane %v3544, 2
  %v3849 = vsel %vm758, %v3846, %v3848
  %v3850 = vrot.slane %v3550, 2
  %v3851 = vsel %vm758, %v3848, %v3850
  %v3852 = vrot.slane %v3554, 2
  %v3853 = vsel %vm758, %v3850, %v3852
  %v3854 = vrot.slane %v3560, 2
  %v3855 = vsel %vm758, %v3852, %v3854
  %v3856 = vrot.slane %v3564, 2
  %v3857 = vsel %vm758, %v3854, %v3856
  %v3858 = vrot.slane %v3570, 2
  %v3859 = vsel %vm758, %v3856, %v3858
  %v3860 = vrot.slane %v3574, 2
  %v3861 = vsel %vm758, %v3858, %v3860
  %v3862 = vrot.slane %v3580, 2
  %v3863 = vsel %vm758, %v3860, %v3862
  %v3864 = vrot.slane %v3584, 2
  %v3865 = vsel %vm758, %v3862, %v3864
  %v3866 = vrot.slane %v3590, 2
  %v3867 = vsel %vm758, %v3864, %v3866
  %v3895 = vadd.f32 %v3761, %v3817
  %v3896 = vadd.f32 %v3762, %v3819
  %v3897 = vadd.f32 %v3763, %v3821
  %v3898 = vadd.f32 %v3764, %v3823
  %v3899 = vadd.f32 %v3765, %v3825
  %v3900 = vadd.f32 %v3766, %v3827
  %v3901 = vadd.f32 %v3767, %v3829
  %v3902 = vadd.f32 %v3768, %v3831
  %v3903 = vadd.f32 %v3769, %v3833
  %v3904 = vadd.f32 %v3770, %v3835
  %v3905 = vadd.f32 %v3771, %v3837
  %v3906 = vadd.f32 %v3772, %v3839
  %v3907 = vadd.f32 %v3773, %v3841
  %v3908 = vadd.f32 %v3774, %v3843
  %v3909 = vadd.f32 %v3775, %v3845
  %v3910 = vadd.f32 %v3776, %v3847
  %v3911 = vadd.f32 %v3777, %v3849
  %v3912 = vadd.f32 %v3778, %v3851
  %v3913 = vadd.f32 %v3779, %v3853
  %v3914 = vadd.f32 %v3780, %v3855
  %v3915 = vadd.f32 %v3781, %v3857
  %v3916 = vadd.f32 %v3782, %v3859
  %v3917 = vadd.f32 %v3783, %v3861
  %v3918 = vadd.f32 %v3784, %v3863
  %v3919 = vadd.f32 %v3785, %v3865
  %v3920 = vadd.f32 %v3786, %v3867
  %v3921 = vadd.f32 %v3787, %v3866
  %s3922 = scalar_lea.vmem %s7, 64
  %v3923 = vld [vmem:[%s3922] sm:$0xff]
  %v3924 = vld [vmem:[%s3922 + $0x8] sm:$0xff]
  %v3925 = vld [vmem:[%s3922 + $0x10] sm:$0xff]
  %v3926 = vld [vmem:[%s3922 + $0x18] sm:$0xff]
  %v3927 = vld [vmem:[%s3922 + $0x20] sm:$0xff]
  %v3928 = vld [vmem:[%s3922 + $0x28] sm:$0xff]
  %v3929 = vld [vmem:[%s3922 + $0x30] sm:$0xff]
  %v3930 = vld [vmem:[%s3922 + $0x38] sm:$0xff]
  %v3939 = vunpack.c.l.b16 %v3923
  %v3940 = vunpack.c.h.b16 %v3923
  %v3941 = vunpack.c.l.b16 %v3924
  %v3942 = vunpack.c.h.b16 %v3924
  %v3943 = vunpack.c.l.b16 %v3925
  %v3944 = vunpack.c.h.b16 %v3925
  %v3945 = vunpack.c.l.b16 %v3926
  %v3946 = vunpack.c.h.b16 %v3926
  %v3947 = vunpack.c.l.b16 %v3927
  %v3948 = vunpack.c.h.b16 %v3927
  %v3949 = vunpack.c.l.b16 %v3928
  %v3950 = vunpack.c.h.b16 %v3928
  %v3951 = vunpack.c.l.b16 %v3929
  %v3952 = vunpack.c.h.b16 %v3929
  %v3953 = vunpack.c.l.b16 %v3930
  %v3954 = vunpack.c.h.b16 %v3930
  %v3955 = vpack.c.b16 %v3941, %v3939
  %v3956 = vpack.c.b16 %v3942, %v3940
  %v3957 = vpack.c.b16 %v3945, %v3943
  %v3958 = vpack.c.b16 %v3946, %v3944
  %v3959 = vpack.c.b16 %v3949, %v3947
  %v3960 = vpack.c.b16 %v3950, %v3948
  %v3961 = vpack.c.b16 %v3953, %v3951
  %v3962 = vpack.c.b16 %v3954, %v3952
  %3971 = vmatprep.subr.bf16.mxu0 0
  %3972 = vmatpush1.bf16.msra.mxu0 0
  %3973 = vmatprep.subr.bf16.mxu0 0
  %3974 = vmatpush1.bf16.msra.mxu0 0
  %3975 = vmatprep.subr.bf16.mxu0 0
  %3976 = vmatpush1.bf16.msra.mxu0 0
  %3977 = vmatprep.subr.bf16.mxu0 0
  %3978 = vmatpush1.bf16.msra.mxu0 0
  %3979 = vmatprep.subr.bf16.mxu0 %v3962
  %3980 = vmatpush1.bf16.msra.mxu0 %v3961
  %3981 = vmatprep.subr.bf16.mxu0 %v3960
  %3982 = vmatpush1.bf16.msra.mxu0 %v3959
  %3983 = vmatprep.subr.bf16.mxu0 %v3958
  %3984 = vmatpush1.bf16.msra.mxu0 %v3957
  %3985 = vmatprep.subr.bf16.mxu0 %v3956
  %3986 = vmatpush1.bf16.msra.mxu0 %v3955
  %3987 = vmatprep.subr.bf16.mxu0 0
  %3988 = vmatpush2.bf16.msra.mxu0 0
  %3989 = vmatprep.subr.bf16.mxu0 0
  %3990 = vmatpush2.bf16.msra.mxu0 0
  %3991 = vmatprep.subr.bf16.mxu0 0
  %3992 = vmatpush2.bf16.msra.mxu0 0
  %3993 = vmatprep.subr.bf16.mxu0 0
  %3994 = vmatpush2.bf16.msra.mxu0 0
  %3995 = vmatprep.subr.bf16.mxu0 0
  %3996 = vmatpush2.bf16.msra.mxu0 0
  %3997 = vmatprep.subr.bf16.mxu0 0
  %3998 = vmatpush2.bf16.msra.mxu0 0
  %3999 = vmatprep.subr.bf16.mxu0 0
  %4000 = vmatpush2.bf16.msra.mxu0 0
  %4001 = vmatprep.subr.bf16.mxu0 0
  %4002 = vmatpush2.bf16.msra.mxu0 0
  %4003 = vmatprep.mubr.bf16.mxu0 0
  %4004 = vmatmul.mubr.bf16.gmra.mxu0 %v3379
  %v4005 = vpop.f32.mrf.mxu0
  %v4006 = vpop.f32.mrf.mxu0
  %v4007 = vpop.f32.mrf.mxu0
  %v4008 = vadd.f32 0.0, %v4007
  %v4009 = vpop.f32.mrf.mxu0
  %4010 = vmatprep.mubr.bf16.mxu0 0
  %4011 = vmatmul.mubr.bf16.gmra.mxu0 %v3382
  %v4012 = vpop.f32.mrf.mxu0
  %v4013 = vadd.f32 0.0, %v4012
  %v4014 = vpop.f32.mrf.mxu0
  %v4015 = vadd.f32 0.0, %v4014
  %v4016 = vpop.f32.mrf.mxu0
  %v4017 = vadd.f32 0.0, %v4016
  %v4018 = vpop.f32.mrf.mxu0
  %v4019 = vadd.f32 0.0, %v4018
  %4020 = vmatprep.mubr.bf16.mxu0 0
  %4021 = vmatmul.mubr.bf16.gmra.mxu0 %v3385
  %v4022 = vpop.f32.mrf.mxu0
  %v4023 = vadd.f32 0.0, %v4022
  %v4024 = vpop.f32.mrf.mxu0
  %v4025 = vadd.f32 0.0, %v4024
  %v4026 = vpop.f32.mrf.mxu0
  %v4027 = vadd.f32 0.0, %v4026
  %v4028 = vpop.f32.mrf.mxu0
  %v4029 = vadd.f32 0.0, %v4028
  %4030 = vmatprep.mubr.bf16.mxu0 0
  %4031 = vmatmul.mubr.bf16.gmra.mxu0 %v3388
  %v4032 = vpop.f32.mrf.mxu0
  %v4033 = vadd.f32 0.0, %v4032
  %v4034 = vpop.f32.mrf.mxu0
  %v4035 = vadd.f32 0.0, %v4034
  %v4036 = vpop.f32.mrf.mxu0
  %v4037 = vadd.f32 0.0, %v4036
  %v4038 = vpop.f32.mrf.mxu0
  %v4039 = vadd.f32 0.0, %v4038
  %4040 = vmatprep.mubr.bf16.mxu0 0
  %4041 = vmatmul.mubr.bf16.gmra.mxu0 %v3391
  %v4042 = vpop.f32.mrf.mxu0
  %v4043 = vadd.f32 0.0, %v4042
  %v4044 = vpop.f32.mrf.mxu0
  %v4045 = vadd.f32 0.0, %v4044
  %v4046 = vpop.f32.mrf.mxu0
  %v4047 = vadd.f32 0.0, %v4046
  %v4048 = vpop.f32.mrf.mxu0
  %v4049 = vadd.f32 0.0, %v4048
  %4050 = vmatprep.mubr.bf16.mxu0 0
  %4051 = vmatmul.mubr.bf16.gmra.mxu0 %v3394
  %v4052 = vpop.f32.mrf.mxu0
  %v4053 = vadd.f32 0.0, %v4052
  %v4054 = vpop.f32.mrf.mxu0
  %v4055 = vadd.f32 0.0, %v4054
  %v4056 = vpop.f32.mrf.mxu0
  %v4057 = vadd.f32 0.0, %v4056
  %v4058 = vpop.f32.mrf.mxu0
  %v4059 = vadd.f32 0.0, %v4058
  %4060 = vmatprep.mubr.bf16.mxu0 0
  %4061 = vmatmul.mubr.bf16.gmra.mxu0 %v3397
  %v4062 = vpop.f32.mrf.mxu0
  %v4063 = vadd.f32 0.0, %v4062
  %v4064 = vpop.f32.mrf.mxu0
  %v4065 = vadd.f32 0.0, %v4064
  %v4066 = vpop.f32.mrf.mxu0
  %v4067 = vadd.f32 0.0, %v4066
  %v4068 = vpop.f32.mrf.mxu0
  %v4069 = vadd.f32 0.0, %v4068
  %4070 = vmatprep.mubr.bf16.mxu0 0
  %4071 = vmatmul.mubr.bf16.gmra.mxu0 %v3400
  %v4072 = vpop.f32.mrf.mxu0
  %v4073 = vadd.f32 0.0, %v4072
  %v4074 = vpop.f32.mrf.mxu0
  %v4075 = vadd.f32 0.0, %v4074
  %v4076 = vpop.f32.mrf.mxu0
  %v4077 = vadd.f32 0.0, %v4076
  %v4078 = vpop.f32.mrf.mxu0
  %v4079 = vadd.f32 0.0, %v4078
  %4080 = vmatprep.mubr.bf16.mxu0 0
  %4081 = vmatmul.mubr.bf16.gmra.mxu0 %v3403
  %v4082 = vpop.f32.mrf.mxu0
  %v4083 = vadd.f32 0.0, %v4082
  %v4084 = vpop.f32.mrf.mxu0
  %v4085 = vadd.f32 0.0, %v4084
  %v4086 = vpop.f32.mrf.mxu0
  %v4087 = vadd.f32 0.0, %v4086
  %v4088 = vpop.f32.mrf.mxu0
  %v4089 = vadd.f32 0.0, %v4088
  %4090 = vmatprep.mubr.bf16.mxu0 0
  %4091 = vmatmul.mubr.bf16.gmra.mxu0 %v3406
  %v4092 = vpop.f32.mrf.mxu0
  %v4093 = vadd.f32 0.0, %v4092
  %v4094 = vpop.f32.mrf.mxu0
  %v4095 = vadd.f32 0.0, %v4094
  %v4096 = vpop.f32.mrf.mxu0
  %v4097 = vadd.f32 0.0, %v4096
  %v4098 = vpop.f32.mrf.mxu0
  %v4099 = vadd.f32 0.0, %v4098
  %4100 = vmatprep.mubr.bf16.mxu0 0
  %4101 = vmatmul.mubr.bf16.gmra.mxu0 %v3409
  %v4102 = vpop.f32.mrf.mxu0
  %v4103 = vadd.f32 0.0, %v4102
  %v4104 = vpop.f32.mrf.mxu0
  %v4105 = vadd.f32 0.0, %v4104
  %v4106 = vpop.f32.mrf.mxu0
  %v4107 = vadd.f32 0.0, %v4106
  %v4108 = vpop.f32.mrf.mxu0
  %v4109 = vadd.f32 0.0, %v4108
  %4110 = vmatprep.mubr.bf16.mxu0 0
  %4111 = vmatmul.mubr.bf16.gmra.mxu0 %v3412
  %v4112 = vpop.f32.mrf.mxu0
  %v4113 = vadd.f32 0.0, %v4112
  %v4114 = vpop.f32.mrf.mxu0
  %v4115 = vadd.f32 0.0, %v4114
  %v4116 = vpop.f32.mrf.mxu0
  %v4117 = vadd.f32 0.0, %v4116
  %v4118 = vpop.f32.mrf.mxu0
  %v4119 = vadd.f32 0.0, %v4118
  %4120 = vmatprep.mubr.bf16.mxu0 0
  %4121 = vmatmul.mubr.bf16.gmra.mxu0 %v3415
  %v4122 = vpop.f32.mrf.mxu0
  %v4123 = vadd.f32 0.0, %v4122
  %v4124 = vpop.f32.mrf.mxu0
  %v4125 = vadd.f32 0.0, %v4124
  %v4126 = vpop.f32.mrf.mxu0
  %v4127 = vadd.f32 0.0, %v4126
  %v4128 = vpop.f32.mrf.mxu0
  %v4129 = vadd.f32 0.0, %v4128
  %4130 = vmatprep.mubr.bf16.mxu0 0
  %4131 = vmatmul.mubr.bf16.gmra.mxu0 %v3418
  %v4132 = vpop.f32.mrf.mxu0
  %v4133 = vadd.f32 0.0, %v4132
  %v4134 = vpop.f32.mrf.mxu0
  %v4135 = vadd.f32 0.0, %v4134
  %v4136 = vpop.f32.mrf.mxu0
  %v4137 = vadd.f32 0.0, %v4136
  %v4138 = vpop.f32.mrf.mxu0
  %v4139 = vadd.f32 0.0, %v4138
  %4140 = vmatprep.mubr.bf16.mxu0 0
  %4141 = vmatmul.mubr.bf16.gmra.mxu0 %v3421
  %v4142 = vpop.f32.mrf.mxu0
  %v4143 = vpop.f32.mrf.mxu0
  %v4144 = vadd.f32 0.0, %v4143
  %v4145 = vpop.f32.mrf.mxu0
  %v4146 = vpop.f32.mrf.mxu0
  %4147 = vdwg.mxu0
  %v4175 = vrot.slane %v4008, 2
  %v4176 = vrot.slane %v4013, 2
  %v4177 = vsel %vm758, %v4175, %v4176
  %v4178 = vrot.slane %v4017, 2
  %v4179 = vsel %vm758, %v4176, %v4178
  %v4180 = vrot.slane %v4023, 2
  %v4181 = vsel %vm758, %v4178, %v4180
  %v4182 = vrot.slane %v4027, 2
  %v4183 = vsel %vm758, %v4180, %v4182
  %v4184 = vrot.slane %v4033, 2
  %v4185 = vsel %vm758, %v4182, %v4184
  %v4186 = vrot.slane %v4037, 2
  %v4187 = vsel %vm758, %v4184, %v4186
  %v4188 = vrot.slane %v4043, 2
  %v4189 = vsel %vm758, %v4186, %v4188
  %v4190 = vrot.slane %v4047, 2
  %v4191 = vsel %vm758, %v4188, %v4190
  %v4192 = vrot.slane %v4053, 2
  %v4193 = vsel %vm758, %v4190, %v4192
  %v4194 = vrot.slane %v4057, 2
  %v4195 = vsel %vm758, %v4192, %v4194
  %v4196 = vrot.slane %v4063, 2
  %v4197 = vsel %vm758, %v4194, %v4196
  %v4198 = vrot.slane %v4067, 2
  %v4199 = vsel %vm758, %v4196, %v4198
  %v4200 = vrot.slane %v4073, 2
  %v4201 = vsel %vm758, %v4198, %v4200
  %v4202 = vrot.slane %v4077, 2
  %v4203 = vsel %vm758, %v4200, %v4202
  %v4204 = vrot.slane %v4083, 2
  %v4205 = vsel %vm758, %v4202, %v4204
  %v4206 = vrot.slane %v4087, 2
  %v4207 = vsel %vm758, %v4204, %v4206
  %v4208 = vrot.slane %v4093, 2
  %v4209 = vsel %vm758, %v4206, %v4208
  %v4210 = vrot.slane %v4097, 2
  %v4211 = vsel %vm758, %v4208, %v4210
  %v4212 = vrot.slane %v4103, 2
  %v4213 = vsel %vm758, %v4210, %v4212
  %v4214 = vrot.slane %v4107, 2
  %v4215 = vsel %vm758, %v4212, %v4214
  %v4216 = vrot.slane %v4113, 2
  %v4217 = vsel %vm758, %v4214, %v4216
  %v4218 = vrot.slane %v4117, 2
  %v4219 = vsel %vm758, %v4216, %v4218
  %v4220 = vrot.slane %v4123, 2
  %v4221 = vsel %vm758, %v4218, %v4220
  %v4222 = vrot.slane %v4127, 2
  %v4223 = vsel %vm758, %v4220, %v4222
  %v4224 = vrot.slane %v4133, 2
  %v4225 = vsel %vm758, %v4222, %v4224
  %v4226 = vrot.slane %v4137, 2
  %v4227 = vsel %vm758, %v4224, %v4226
  %v4255 = vadd.f32 %v3895, %v4177
  %v4256 = vadd.f32 %v3896, %v4179
  %v4257 = vadd.f32 %v3897, %v4181
  %v4258 = vadd.f32 %v3898, %v4183
  %v4259 = vadd.f32 %v3899, %v4185
  %v4260 = vadd.f32 %v3900, %v4187
  %v4261 = vadd.f32 %v3901, %v4189
  %v4262 = vadd.f32 %v3902, %v4191
  %v4263 = vadd.f32 %v3903, %v4193
  %v4264 = vadd.f32 %v3904, %v4195
  %v4265 = vadd.f32 %v3905, %v4197
  %v4266 = vadd.f32 %v3906, %v4199
  %v4267 = vadd.f32 %v3907, %v4201
  %v4268 = vadd.f32 %v3908, %v4203
  %v4269 = vadd.f32 %v3909, %v4205
  %v4270 = vadd.f32 %v3910, %v4207
  %v4271 = vadd.f32 %v3911, %v4209
  %v4272 = vadd.f32 %v3912, %v4211
  %v4273 = vadd.f32 %v3913, %v4213
  %v4274 = vadd.f32 %v3914, %v4215
  %v4275 = vadd.f32 %v3915, %v4217
  %v4276 = vadd.f32 %v3916, %v4219
  %v4277 = vadd.f32 %v3917, %v4221
  %v4278 = vadd.f32 %v3918, %v4223
  %v4279 = vadd.f32 %v3919, %v4225
  %v4280 = vadd.f32 %v3920, %v4227
  %v4281 = vadd.f32 %v3921, %v4226
  %v4282 = vrot.slane %v4013, 3
  %v4283 = vrot.slane %v4017, 3
  %v4284 = vsel %vm1226, %v4282, %v4283
  %v4285 = vrot.slane %v4023, 3
  %v4286 = vsel %vm1226, %v4283, %v4285
  %v4287 = vrot.slane %v4027, 3
  %v4288 = vsel %vm1226, %v4285, %v4287
  %v4289 = vrot.slane %v4033, 3
  %v4290 = vsel %vm1226, %v4287, %v4289
  %v4291 = vrot.slane %v4037, 3
  %v4292 = vsel %vm1226, %v4289, %v4291
  %v4293 = vrot.slane %v4043, 3
  %v4294 = vsel %vm1226, %v4291, %v4293
  %v4295 = vrot.slane %v4047, 3
  %v4296 = vsel %vm1226, %v4293, %v4295
  %v4297 = vrot.slane %v4053, 3
  %v4298 = vsel %vm1226, %v4295, %v4297
  %v4299 = vrot.slane %v4057, 3
  %v4300 = vsel %vm1226, %v4297, %v4299
  %v4301 = vrot.slane %v4063, 3
  %v4302 = vsel %vm1226, %v4299, %v4301
  %v4303 = vrot.slane %v4067, 3
  %v4304 = vsel %vm1226, %v4301, %v4303
  %v4305 = vrot.slane %v4073, 3
  %v4306 = vsel %vm1226, %v4303, %v4305
  %v4307 = vrot.slane %v4077, 3
  %v4308 = vsel %vm1226, %v4305, %v4307
  %v4309 = vrot.slane %v4083, 3
  %v4310 = vsel %vm1226, %v4307, %v4309
  %v4311 = vrot.slane %v4087, 3
  %v4312 = vsel %vm1226, %v4309, %v4311
  %v4313 = vrot.slane %v4093, 3
  %v4314 = vsel %vm1226, %v4311, %v4313
  %v4315 = vrot.slane %v4097, 3
  %v4316 = vsel %vm1226, %v4313, %v4315
  %v4317 = vrot.slane %v4103, 3
  %v4318 = vsel %vm1226, %v4315, %v4317
  %v4319 = vrot.slane %v4107, 3
  %v4320 = vsel %vm1226, %v4317, %v4319
  %v4321 = vrot.slane %v4113, 3
  %v4322 = vsel %vm1226, %v4319, %v4321
  %v4323 = vrot.slane %v4117, 3
  %v4324 = vsel %vm1226, %v4321, %v4323
  %v4325 = vrot.slane %v4123, 3
  %v4326 = vsel %vm1226, %v4323, %v4325
  %v4327 = vrot.slane %v4127, 3
  %v4328 = vsel %vm1226, %v4325, %v4327
  %v4329 = vrot.slane %v4133, 3
  %v4330 = vsel %vm1226, %v4327, %v4329
  %v4331 = vrot.slane %v4137, 3
  %v4332 = vsel %vm1226, %v4329, %v4331
  %4333 = vrot.lane.b32.xlu0 %v4282, 64
  %v4334 = vpop.permute.xlu0 %4333
  %4335 = vrot.lane.b32.xlu0 %v4284, 64
  %v4336 = vpop.permute.xlu0 %4335
  %4337 = vrot.lane.b32.xlu0 %v4286, 64
  %v4338 = vpop.permute.xlu0 %4337
  %4339 = vrot.lane.b32.xlu0 %v4288, 64
  %v4340 = vpop.permute.xlu0 %4339
  %4341 = vrot.lane.b32.xlu0 %v4290, 64
  %v4342 = vpop.permute.xlu0 %4341
  %4343 = vrot.lane.b32.xlu0 %v4292, 64
  %v4344 = vpop.permute.xlu0 %4343
  %4345 = vrot.lane.b32.xlu0 %v4294, 64
  %v4346 = vpop.permute.xlu0 %4345
  %4347 = vrot.lane.b32.xlu0 %v4296, 64
  %v4348 = vpop.permute.xlu0 %4347
  %4349 = vrot.lane.b32.xlu0 %v4298, 64
  %v4350 = vpop.permute.xlu0 %4349
  %4351 = vrot.lane.b32.xlu0 %v4300, 64
  %v4352 = vpop.permute.xlu0 %4351
  %4353 = vrot.lane.b32.xlu0 %v4302, 64
  %v4354 = vpop.permute.xlu0 %4353
  %4355 = vrot.lane.b32.xlu0 %v4304, 64
  %v4356 = vpop.permute.xlu0 %4355
  %4357 = vrot.lane.b32.xlu0 %v4306, 64
  %v4358 = vpop.permute.xlu0 %4357
  %4359 = vrot.lane.b32.xlu0 %v4308, 64
  %v4360 = vpop.permute.xlu0 %4359
  %4361 = vrot.lane.b32.xlu0 %v4310, 64
  %v4362 = vpop.permute.xlu0 %4361
  %4363 = vrot.lane.b32.xlu0 %v4312, 64
  %v4364 = vpop.permute.xlu0 %4363
  %4365 = vrot.lane.b32.xlu0 %v4314, 64
  %v4366 = vpop.permute.xlu0 %4365
  %4367 = vrot.lane.b32.xlu0 %v4316, 64
  %v4368 = vpop.permute.xlu0 %4367
  %4369 = vrot.lane.b32.xlu0 %v4318, 64
  %v4370 = vpop.permute.xlu0 %4369
  %4371 = vrot.lane.b32.xlu0 %v4320, 64
  %v4372 = vpop.permute.xlu0 %4371
  %4373 = vrot.lane.b32.xlu0 %v4322, 64
  %v4374 = vpop.permute.xlu0 %4373
  %4375 = vrot.lane.b32.xlu0 %v4324, 64
  %v4376 = vpop.permute.xlu0 %4375
  %4377 = vrot.lane.b32.xlu0 %v4326, 64
  %v4378 = vpop.permute.xlu0 %4377
  %4379 = vrot.lane.b32.xlu0 %v4328, 64
  %v4380 = vpop.permute.xlu0 %4379
  %4381 = vrot.lane.b32.xlu0 %v4330, 64
  %v4382 = vpop.permute.xlu0 %4381
  %4383 = vrot.lane.b32.xlu0 %v4332, 64
  %v4384 = vpop.permute.xlu0 %4383
  %4385 = vrot.lane.b32.xlu0 %v4331, 64
  %v4386 = vpop.permute.xlu0 %4385
  %v4414 = vadd.f32 %v4255, %v4334
  %v4415 = vadd.f32 %v4256, %v4336
  %v4416 = vadd.f32 %v4257, %v4338
  %v4417 = vadd.f32 %v4258, %v4340
  %v4418 = vadd.f32 %v4259, %v4342
  %v4419 = vadd.f32 %v4260, %v4344
  %v4420 = vadd.f32 %v4261, %v4346
  %v4421 = vadd.f32 %v4262, %v4348
  %v4422 = vadd.f32 %v4263, %v4350
  %v4423 = vadd.f32 %v4264, %v4352
  %v4424 = vadd.f32 %v4265, %v4354
  %v4425 = vadd.f32 %v4266, %v4356
  %v4426 = vadd.f32 %v4267, %v4358
  %v4427 = vadd.f32 %v4268, %v4360
  %v4428 = vadd.f32 %v4269, %v4362
  %v4429 = vadd.f32 %v4270, %v4364
  %v4430 = vadd.f32 %v4271, %v4366
  %v4431 = vadd.f32 %v4272, %v4368
  %v4432 = vadd.f32 %v4273, %v4370
  %v4433 = vadd.f32 %v4274, %v4372
  %v4434 = vadd.f32 %v4275, %v4374
  %v4435 = vadd.f32 %v4276, %v4376
  %v4436 = vadd.f32 %v4277, %v4378
  %v4437 = vadd.f32 %v4278, %v4380
  %v4438 = vadd.f32 %v4279, %v4382
  %v4439 = vadd.f32 %v4280, %v4384
  %v4440 = vadd.f32 %v4281, %v4386
  %v4468 = vrot.slane %v4015, 4
  %v4469 = vrot.slane %v4019, 4
  %v4470 = vsel %vm1413, %v4468, %v4469
  %v4471 = vrot.slane %v4025, 4
  %v4472 = vsel %vm1413, %v4469, %v4471
  %v4473 = vrot.slane %v4029, 4
  %v4474 = vsel %vm1413, %v4471, %v4473
  %v4475 = vrot.slane %v4035, 4
  %v4476 = vsel %vm1413, %v4473, %v4475
  %v4477 = vrot.slane %v4039, 4
  %v4478 = vsel %vm1413, %v4475, %v4477
  %v4479 = vrot.slane %v4045, 4
  %v4480 = vsel %vm1413, %v4477, %v4479
  %v4481 = vrot.slane %v4049, 4
  %v4482 = vsel %vm1413, %v4479, %v4481
  %v4483 = vrot.slane %v4055, 4
  %v4484 = vsel %vm1413, %v4481, %v4483
  %v4485 = vrot.slane %v4059, 4
  %v4486 = vsel %vm1413, %v4483, %v4485
  %v4487 = vrot.slane %v4065, 4
  %v4488 = vsel %vm1413, %v4485, %v4487
  %v4489 = vrot.slane %v4069, 4
  %v4490 = vsel %vm1413, %v4487, %v4489
  %v4491 = vrot.slane %v4075, 4
  %v4492 = vsel %vm1413, %v4489, %v4491
  %v4493 = vrot.slane %v4079, 4
  %v4494 = vsel %vm1413, %v4491, %v4493
  %v4495 = vrot.slane %v4085, 4
  %v4496 = vsel %vm1413, %v4493, %v4495
  %v4497 = vrot.slane %v4089, 4
  %v4498 = vsel %vm1413, %v4495, %v4497
  %v4499 = vrot.slane %v4095, 4
  %v4500 = vsel %vm1413, %v4497, %v4499
  %v4501 = vrot.slane %v4099, 4
  %v4502 = vsel %vm1413, %v4499, %v4501
  %v4503 = vrot.slane %v4105, 4
  %v4504 = vsel %vm1413, %v4501, %v4503
  %v4505 = vrot.slane %v4109, 4
  %v4506 = vsel %vm1413, %v4503, %v4505
  %v4507 = vrot.slane %v4115, 4
  %v4508 = vsel %vm1413, %v4505, %v4507
  %v4509 = vrot.slane %v4119, 4
  %v4510 = vsel %vm1413, %v4507, %v4509
  %v4511 = vrot.slane %v4125, 4
  %v4512 = vsel %vm1413, %v4509, %v4511
  %v4513 = vrot.slane %v4129, 4
  %v4514 = vsel %vm1413, %v4511, %v4513
  %v4515 = vrot.slane %v4135, 4
  %v4516 = vsel %vm1413, %v4513, %v4515
  %v4517 = vrot.slane %v4139, 4
  %v4518 = vsel %vm1413, %v4515, %v4517
  %v4519 = vrot.slane %v4144, 4
  %v4520 = vsel %vm1413, %v4517, %v4519
  %v4548 = vadd.f32 %v4414, %v4468
  %v4549 = vadd.f32 %v4415, %v4470
  %v4550 = vadd.f32 %v4416, %v4472
  %v4551 = vadd.f32 %v4417, %v4474
  %v4552 = vadd.f32 %v4418, %v4476
  %v4553 = vadd.f32 %v4419, %v4478
  %v4554 = vadd.f32 %v4420, %v4480
  %v4555 = vadd.f32 %v4421, %v4482
  %v4556 = vadd.f32 %v4422, %v4484
  %v4557 = vadd.f32 %v4423, %v4486
  %v4558 = vadd.f32 %v4424, %v4488
  %v4559 = vadd.f32 %v4425, %v4490
  %v4560 = vadd.f32 %v4426, %v4492
  %v4561 = vadd.f32 %v4427, %v4494
  %v4562 = vadd.f32 %v4428, %v4496
  %v4563 = vadd.f32 %v4429, %v4498
  %v4564 = vadd.f32 %v4430, %v4500
  %v4565 = vadd.f32 %v4431, %v4502
  %v4566 = vadd.f32 %v4432, %v4504
  %v4567 = vadd.f32 %v4433, %v4506
  %v4568 = vadd.f32 %v4434, %v4508
  %v4569 = vadd.f32 %v4435, %v4510
  %v4570 = vadd.f32 %v4436, %v4512
  %v4571 = vadd.f32 %v4437, %v4514
  %v4572 = vadd.f32 %v4438, %v4516
  %v4573 = vadd.f32 %v4439, %v4518
  %v4574 = vadd.f32 %v4440, %v4520
  %s4575 = scalar_lea.vmem %s7, 128
  %v4576 = vld [vmem:[%s4575] sm:$0xff]
  %v4577 = vld [vmem:[%s4575 + $0x8] sm:$0xff]
  %v4578 = vld [vmem:[%s4575 + $0x10] sm:$0xff]
  %v4579 = vld [vmem:[%s4575 + $0x18] sm:$0xff]
  %v4580 = vld [vmem:[%s4575 + $0x20] sm:$0xff]
  %v4581 = vld [vmem:[%s4575 + $0x28] sm:$0xff]
  %v4582 = vld [vmem:[%s4575 + $0x30] sm:$0xff]
  %v4583 = vld [vmem:[%s4575 + $0x38] sm:$0xff]
  %v4592 = vunpack.c.l.b16 %v4576
  %v4593 = vunpack.c.h.b16 %v4576
  %v4594 = vunpack.c.l.b16 %v4577
  %v4595 = vunpack.c.h.b16 %v4577
  %v4596 = vunpack.c.l.b16 %v4578
  %v4597 = vunpack.c.h.b16 %v4578
  %v4598 = vunpack.c.l.b16 %v4579
  %v4599 = vunpack.c.h.b16 %v4579
  %v4600 = vunpack.c.l.b16 %v4580
  %v4601 = vunpack.c.h.b16 %v4580
  %v4602 = vunpack.c.l.b16 %v4581
  %v4603 = vunpack.c.h.b16 %v4581
  %v4604 = vunpack.c.l.b16 %v4582
  %v4605 = vunpack.c.h.b16 %v4582
  %v4606 = vunpack.c.l.b16 %v4583
  %v4607 = vunpack.c.h.b16 %v4583
  %v4608 = vpack.c.b16 %v4594, %v4592
  %v4609 = vpack.c.b16 %v4595, %v4593
  %v4610 = vpack.c.b16 %v4598, %v4596
  %v4611 = vpack.c.b16 %v4599, %v4597
  %v4612 = vpack.c.b16 %v4602, %v4600
  %v4613 = vpack.c.b16 %v4603, %v4601
  %v4614 = vpack.c.b16 %v4606, %v4604
  %v4615 = vpack.c.b16 %v4607, %v4605
  %4624 = vmatprep.subr.bf16.mxu0 0
  %4625 = vmatpush1.bf16.msra.mxu0 0
  %4626 = vmatprep.subr.bf16.mxu0 0
  %4627 = vmatpush1.bf16.msra.mxu0 0
  %4628 = vmatprep.subr.bf16.mxu0 0
  %4629 = vmatpush1.bf16.msra.mxu0 0
  %4630 = vmatprep.subr.bf16.mxu0 0
  %4631 = vmatpush1.bf16.msra.mxu0 0
  %4632 = vmatprep.subr.bf16.mxu0 %v4615
  %4633 = vmatpush1.bf16.msra.mxu0 %v4614
  %4634 = vmatprep.subr.bf16.mxu0 %v4613
  %4635 = vmatpush1.bf16.msra.mxu0 %v4612
  %4636 = vmatprep.subr.bf16.mxu0 %v4611
  %4637 = vmatpush1.bf16.msra.mxu0 %v4610
  %4638 = vmatprep.subr.bf16.mxu0 %v4609
  %4639 = vmatpush1.bf16.msra.mxu0 %v4608
  %4640 = vmatprep.subr.bf16.mxu0 0
  %4641 = vmatpush2.bf16.msra.mxu0 0
  %4642 = vmatprep.subr.bf16.mxu0 0
  %4643 = vmatpush2.bf16.msra.mxu0 0
  %4644 = vmatprep.subr.bf16.mxu0 0
  %4645 = vmatpush2.bf16.msra.mxu0 0
  %4646 = vmatprep.subr.bf16.mxu0 0
  %4647 = vmatpush2.bf16.msra.mxu0 0
  %4648 = vmatprep.subr.bf16.mxu0 0
  %4649 = vmatpush2.bf16.msra.mxu0 0
  %4650 = vmatprep.subr.bf16.mxu0 0
  %4651 = vmatpush2.bf16.msra.mxu0 0
  %4652 = vmatprep.subr.bf16.mxu0 0
  %4653 = vmatpush2.bf16.msra.mxu0 0
  %4654 = vmatprep.subr.bf16.mxu0 0
  %4655 = vmatpush2.bf16.msra.mxu0 0
  %4656 = vmatprep.mubr.bf16.mxu0 0
  %4657 = vmatmul.mubr.bf16.gmra.mxu0 %v3379
  %v4658 = vpop.f32.mrf.mxu0
  %v4659 = vpop.f32.mrf.mxu0
  %v4660 = vpop.f32.mrf.mxu0
  %v4661 = vpop.f32.mrf.mxu0
  %4662 = vmatprep.mubr.bf16.mxu0 0
  %4663 = vmatmul.mubr.bf16.gmra.mxu0 %v3382
  %v4664 = vpop.f32.mrf.mxu0
  %v4665 = vpop.f32.mrf.mxu0
  %v4666 = vpop.f32.mrf.mxu0
  %v4667 = vadd.f32 0.0, %v4666
  %v4668 = vpop.f32.mrf.mxu0
  %v4669 = vadd.f32 0.0, %v4668
  %4670 = vmatprep.mubr.bf16.mxu0 0
  %4671 = vmatmul.mubr.bf16.gmra.mxu0 %v3385
  %v4672 = vpop.f32.mrf.mxu0
  %v4673 = vadd.f32 0.0, %v4672
  %v4674 = vpop.f32.mrf.mxu0
  %v4675 = vadd.f32 0.0, %v4674
  %v4676 = vpop.f32.mrf.mxu0
  %v4677 = vadd.f32 0.0, %v4676
  %v4678 = vpop.f32.mrf.mxu0
  %v4679 = vadd.f32 0.0, %v4678
  %4680 = vmatprep.mubr.bf16.mxu0 0
  %4681 = vmatmul.mubr.bf16.gmra.mxu0 %v3388
  %v4682 = vpop.f32.mrf.mxu0
  %v4683 = vadd.f32 0.0, %v4682
  %v4684 = vpop.f32.mrf.mxu0
  %v4685 = vadd.f32 0.0, %v4684
  %v4686 = vpop.f32.mrf.mxu0
  %v4687 = vadd.f32 0.0, %v4686
  %v4688 = vpop.f32.mrf.mxu0
  %v4689 = vadd.f32 0.0, %v4688
  %4690 = vmatprep.mubr.bf16.mxu0 0
  %4691 = vmatmul.mubr.bf16.gmra.mxu0 %v3391
  %v4692 = vpop.f32.mrf.mxu0
  %v4693 = vadd.f32 0.0, %v4692
  %v4694 = vpop.f32.mrf.mxu0
  %v4695 = vadd.f32 0.0, %v4694
  %v4696 = vpop.f32.mrf.mxu0
  %v4697 = vadd.f32 0.0, %v4696
  %v4698 = vpop.f32.mrf.mxu0
  %v4699 = vadd.f32 0.0, %v4698
  %4700 = vmatprep.mubr.bf16.mxu0 0
  %4701 = vmatmul.mubr.bf16.gmra.mxu0 %v3394
  %v4702 = vpop.f32.mrf.mxu0
  %v4703 = vadd.f32 0.0, %v4702
  %v4704 = vpop.f32.mrf.mxu0
  %v4705 = vadd.f32 0.0, %v4704
  %v4706 = vpop.f32.mrf.mxu0
  %v4707 = vadd.f32 0.0, %v4706
  %v4708 = vpop.f32.mrf.mxu0
  %v4709 = vadd.f32 0.0, %v4708
  %4710 = vmatprep.mubr.bf16.mxu0 0
  %4711 = vmatmul.mubr.bf16.gmra.mxu0 %v3397
  %v4712 = vpop.f32.mrf.mxu0
  %v4713 = vadd.f32 0.0, %v4712
  %v4714 = vpop.f32.mrf.mxu0
  %v4715 = vadd.f32 0.0, %v4714
  %v4716 = vpop.f32.mrf.mxu0
  %v4717 = vadd.f32 0.0, %v4716
  %v4718 = vpop.f32.mrf.mxu0
  %v4719 = vadd.f32 0.0, %v4718
  %4720 = vmatprep.mubr.bf16.mxu0 0
  %4721 = vmatmul.mubr.bf16.gmra.mxu0 %v3400
  %v4722 = vpop.f32.mrf.mxu0
  %v4723 = vadd.f32 0.0, %v4722
  %v4724 = vpop.f32.mrf.mxu0
  %v4725 = vadd.f32 0.0, %v4724
  %v4726 = vpop.f32.mrf.mxu0
  %v4727 = vadd.f32 0.0, %v4726
  %v4728 = vpop.f32.mrf.mxu0
  %v4729 = vadd.f32 0.0, %v4728
  %4730 = vmatprep.mubr.bf16.mxu0 0
  %4731 = vmatmul.mubr.bf16.gmra.mxu0 %v3403
  %v4732 = vpop.f32.mrf.mxu0
  %v4733 = vadd.f32 0.0, %v4732
  %v4734 = vpop.f32.mrf.mxu0
  %v4735 = vadd.f32 0.0, %v4734
  %v4736 = vpop.f32.mrf.mxu0
  %v4737 = vadd.f32 0.0, %v4736
  %v4738 = vpop.f32.mrf.mxu0
  %v4739 = vadd.f32 0.0, %v4738
  %4740 = vmatprep.mubr.bf16.mxu0 0
  %4741 = vmatmul.mubr.bf16.gmra.mxu0 %v3406
  %v4742 = vpop.f32.mrf.mxu0
  %v4743 = vadd.f32 0.0, %v4742
  %v4744 = vpop.f32.mrf.mxu0
  %v4745 = vadd.f32 0.0, %v4744
  %v4746 = vpop.f32.mrf.mxu0
  %v4747 = vadd.f32 0.0, %v4746
  %v4748 = vpop.f32.mrf.mxu0
  %v4749 = vadd.f32 0.0, %v4748
  %4750 = vmatprep.mubr.bf16.mxu0 0
  %4751 = vmatmul.mubr.bf16.gmra.mxu0 %v3409
  %v4752 = vpop.f32.mrf.mxu0
  %v4753 = vadd.f32 0.0, %v4752
  %v4754 = vpop.f32.mrf.mxu0
  %v4755 = vadd.f32 0.0, %v4754
  %v4756 = vpop.f32.mrf.mxu0
  %v4757 = vadd.f32 0.0, %v4756
  %v4758 = vpop.f32.mrf.mxu0
  %v4759 = vadd.f32 0.0, %v4758
  %4760 = vmatprep.mubr.bf16.mxu0 0
  %4761 = vmatmul.mubr.bf16.gmra.mxu0 %v3412
  %v4762 = vpop.f32.mrf.mxu0
  %v4763 = vadd.f32 0.0, %v4762
  %v4764 = vpop.f32.mrf.mxu0
  %v4765 = vadd.f32 0.0, %v4764
  %v4766 = vpop.f32.mrf.mxu0
  %v4767 = vadd.f32 0.0, %v4766
  %v4768 = vpop.f32.mrf.mxu0
  %v4769 = vadd.f32 0.0, %v4768
  %4770 = vmatprep.mubr.bf16.mxu0 0
  %4771 = vmatmul.mubr.bf16.gmra.mxu0 %v3415
  %v4772 = vpop.f32.mrf.mxu0
  %v4773 = vadd.f32 0.0, %v4772
  %v4774 = vpop.f32.mrf.mxu0
  %v4775 = vadd.f32 0.0, %v4774
  %v4776 = vpop.f32.mrf.mxu0
  %v4777 = vadd.f32 0.0, %v4776
  %v4778 = vpop.f32.mrf.mxu0
  %v4779 = vadd.f32 0.0, %v4778
  %4780 = vmatprep.mubr.bf16.mxu0 0
  %4781 = vmatmul.mubr.bf16.gmra.mxu0 %v3418
  %v4782 = vpop.f32.mrf.mxu0
  %v4783 = vadd.f32 0.0, %v4782
  %v4784 = vpop.f32.mrf.mxu0
  %v4785 = vadd.f32 0.0, %v4784
  %v4786 = vpop.f32.mrf.mxu0
  %v4787 = vadd.f32 0.0, %v4786
  %v4788 = vpop.f32.mrf.mxu0
  %v4789 = vadd.f32 0.0, %v4788
  %4790 = vmatprep.mubr.bf16.mxu0 0
  %4791 = vmatmul.mubr.bf16.gmra.mxu0 %v3421
  %v4792 = vpop.f32.mrf.mxu0
  %v4793 = vadd.f32 0.0, %v4792
  %v4794 = vpop.f32.mrf.mxu0
  %v4795 = vadd.f32 0.0, %v4794
  %v4796 = vpop.f32.mrf.mxu0
  %v4797 = vadd.f32 0.0, %v4796
  %v4798 = vpop.f32.mrf.mxu0
  %v4799 = vadd.f32 0.0, %v4798
  %4800 = vdwg.mxu0
  %v4828 = vrot.slane %v4667, 4
  %v4829 = vrot.slane %v4673, 4
  %v4830 = vsel %vm1413, %v4828, %v4829
  %v4831 = vrot.slane %v4677, 4
  %v4832 = vsel %vm1413, %v4829, %v4831
  %v4833 = vrot.slane %v4683, 4
  %v4834 = vsel %vm1413, %v4831, %v4833
  %v4835 = vrot.slane %v4687, 4
  %v4836 = vsel %vm1413, %v4833, %v4835
  %v4837 = vrot.slane %v4693, 4
  %v4838 = vsel %vm1413, %v4835, %v4837
  %v4839 = vrot.slane %v4697, 4
  %v4840 = vsel %vm1413, %v4837, %v4839
  %v4841 = vrot.slane %v4703, 4
  %v4842 = vsel %vm1413, %v4839, %v4841
  %v4843 = vrot.slane %v4707, 4
  %v4844 = vsel %vm1413, %v4841, %v4843
  %v4845 = vrot.slane %v4713, 4
  %v4846 = vsel %vm1413, %v4843, %v4845
  %v4847 = vrot.slane %v4717, 4
  %v4848 = vsel %vm1413, %v4845, %v4847
  %v4849 = vrot.slane %v4723, 4
  %v4850 = vsel %vm1413, %v4847, %v4849
  %v4851 = vrot.slane %v4727, 4
  %v4852 = vsel %vm1413, %v4849, %v4851
  %v4853 = vrot.slane %v4733, 4
  %v4854 = vsel %vm1413, %v4851, %v4853
  %v4855 = vrot.slane %v4737, 4
  %v4856 = vsel %vm1413, %v4853, %v4855
  %v4857 = vrot.slane %v4743, 4
  %v4858 = vsel %vm1413, %v4855, %v4857
  %v4859 = vrot.slane %v4747, 4
  %v4860 = vsel %vm1413, %v4857, %v4859
  %v4861 = vrot.slane %v4753, 4
  %v4862 = vsel %vm1413, %v4859, %v4861
  %v4863 = vrot.slane %v4757, 4
  %v4864 = vsel %vm1413, %v4861, %v4863
  %v4865 = vrot.slane %v4763, 4
  %v4866 = vsel %vm1413, %v4863, %v4865
  %v4867 = vrot.slane %v4767, 4
  %v4868 = vsel %vm1413, %v4865, %v4867
  %v4869 = vrot.slane %v4773, 4
  %v4870 = vsel %vm1413, %v4867, %v4869
  %v4871 = vrot.slane %v4777, 4
  %v4872 = vsel %vm1413, %v4869, %v4871
  %v4873 = vrot.slane %v4783, 4
  %v4874 = vsel %vm1413, %v4871, %v4873
  %v4875 = vrot.slane %v4787, 4
  %v4876 = vsel %vm1413, %v4873, %v4875
  %v4877 = vrot.slane %v4793, 4
  %v4878 = vsel %vm1413, %v4875, %v4877
  %v4879 = vrot.slane %v4797, 4
  %v4880 = vsel %vm1413, %v4877, %v4879
  %v4908 = vadd.f32 %v4548, %v4828
  %v4909 = vadd.f32 %v4549, %v4830
  %v4910 = vadd.f32 %v4550, %v4832
  %v4911 = vadd.f32 %v4551, %v4834
  %v4912 = vadd.f32 %v4552, %v4836
  %v4913 = vadd.f32 %v4553, %v4838
  %v4914 = vadd.f32 %v4554, %v4840
  %v4915 = vadd.f32 %v4555, %v4842
  %v4916 = vadd.f32 %v4556, %v4844
  %v4917 = vadd.f32 %v4557, %v4846
  %v4918 = vadd.f32 %v4558, %v4848
  %v4919 = vadd.f32 %v4559, %v4850
  %v4920 = vadd.f32 %v4560, %v4852
  %v4921 = vadd.f32 %v4561, %v4854
  %v4922 = vadd.f32 %v4562, %v4856
  %v4923 = vadd.f32 %v4563, %v4858
  %v4924 = vadd.f32 %v4564, %v4860
  %v4925 = vadd.f32 %v4565, %v4862
  %v4926 = vadd.f32 %v4566, %v4864
  %v4927 = vadd.f32 %v4567, %v4866
  %v4928 = vadd.f32 %v4568, %v4868
  %v4929 = vadd.f32 %v4569, %v4870
  %v4930 = vadd.f32 %v4570, %v4872
  %v4931 = vadd.f32 %v4571, %v4874
  %v4932 = vadd.f32 %v4572, %v4876
  %v4933 = vadd.f32 %v4573, %v4878
  %v4934 = vadd.f32 %v4574, %v4880
  %v4935 = vrot.slane %v4667, 5
  %v4936 = vrot.slane %v4673, 5
  %v4937 = vsel %vm1881, %v4935, %v4936
  %v4938 = vrot.slane %v4677, 5
  %v4939 = vsel %vm1881, %v4936, %v4938
  %v4940 = vrot.slane %v4683, 5
  %v4941 = vsel %vm1881, %v4938, %v4940
  %v4942 = vrot.slane %v4687, 5
  %v4943 = vsel %vm1881, %v4940, %v4942
  %v4944 = vrot.slane %v4693, 5
  %v4945 = vsel %vm1881, %v4942, %v4944
  %v4946 = vrot.slane %v4697, 5
  %v4947 = vsel %vm1881, %v4944, %v4946
  %v4948 = vrot.slane %v4703, 5
  %v4949 = vsel %vm1881, %v4946, %v4948
  %v4950 = vrot.slane %v4707, 5
  %v4951 = vsel %vm1881, %v4948, %v4950
  %v4952 = vrot.slane %v4713, 5
  %v4953 = vsel %vm1881, %v4950, %v4952
  %v4954 = vrot.slane %v4717, 5
  %v4955 = vsel %vm1881, %v4952, %v4954
  %v4956 = vrot.slane %v4723, 5
  %v4957 = vsel %vm1881, %v4954, %v4956
  %v4958 = vrot.slane %v4727, 5
  %v4959 = vsel %vm1881, %v4956, %v4958
  %v4960 = vrot.slane %v4733, 5
  %v4961 = vsel %vm1881, %v4958, %v4960
  %v4962 = vrot.slane %v4737, 5
  %v4963 = vsel %vm1881, %v4960, %v4962
  %v4964 = vrot.slane %v4743, 5
  %v4965 = vsel %vm1881, %v4962, %v4964
  %v4966 = vrot.slane %v4747, 5
  %v4967 = vsel %vm1881, %v4964, %v4966
  %v4968 = vrot.slane %v4753, 5
  %v4969 = vsel %vm1881, %v4966, %v4968
  %v4970 = vrot.slane %v4757, 5
  %v4971 = vsel %vm1881, %v4968, %v4970
  %v4972 = vrot.slane %v4763, 5
  %v4973 = vsel %vm1881, %v4970, %v4972
  %v4974 = vrot.slane %v4767, 5
  %v4975 = vsel %vm1881, %v4972, %v4974
  %v4976 = vrot.slane %v4773, 5
  %v4977 = vsel %vm1881, %v4974, %v4976
  %v4978 = vrot.slane %v4777, 5
  %v4979 = vsel %vm1881, %v4976, %v4978
  %v4980 = vrot.slane %v4783, 5
  %v4981 = vsel %vm1881, %v4978, %v4980
  %v4982 = vrot.slane %v4787, 5
  %v4983 = vsel %vm1881, %v4980, %v4982
  %v4984 = vrot.slane %v4793, 5
  %v4985 = vsel %vm1881, %v4982, %v4984
  %v4986 = vrot.slane %v4797, 5
  %v4987 = vsel %vm1881, %v4984, %v4986
  %4988 = vrot.lane.b32.xlu0 %v4935, 64
  %v4989 = vpop.permute.xlu0 %4988
  %4990 = vrot.lane.b32.xlu0 %v4937, 64
  %v4991 = vpop.permute.xlu0 %4990
  %4992 = vrot.lane.b32.xlu0 %v4939, 64
  %v4993 = vpop.permute.xlu0 %4992
  %4994 = vrot.lane.b32.xlu0 %v4941, 64
  %v4995 = vpop.permute.xlu0 %4994
  %4996 = vrot.lane.b32.xlu0 %v4943, 64
  %v4997 = vpop.permute.xlu0 %4996
  %4998 = vrot.lane.b32.xlu0 %v4945, 64
  %v4999 = vpop.permute.xlu0 %4998
  %5000 = vrot.lane.b32.xlu0 %v4947, 64
  %v5001 = vpop.permute.xlu0 %5000
  %5002 = vrot.lane.b32.xlu0 %v4949, 64
  %v5003 = vpop.permute.xlu0 %5002
  %5004 = vrot.lane.b32.xlu0 %v4951, 64
  %v5005 = vpop.permute.xlu0 %5004
  %5006 = vrot.lane.b32.xlu0 %v4953, 64
  %v5007 = vpop.permute.xlu0 %5006
  %5008 = vrot.lane.b32.xlu0 %v4955, 64
  %v5009 = vpop.permute.xlu0 %5008
  %5010 = vrot.lane.b32.xlu0 %v4957, 64
  %v5011 = vpop.permute.xlu0 %5010
  %5012 = vrot.lane.b32.xlu0 %v4959, 64
  %v5013 = vpop.permute.xlu0 %5012
  %5014 = vrot.lane.b32.xlu0 %v4961, 64
  %v5015 = vpop.permute.xlu0 %5014
  %5016 = vrot.lane.b32.xlu0 %v4963, 64
  %v5017 = vpop.permute.xlu0 %5016
  %5018 = vrot.lane.b32.xlu0 %v4965, 64
  %v5019 = vpop.permute.xlu0 %5018
  %5020 = vrot.lane.b32.xlu0 %v4967, 64
  %v5021 = vpop.permute.xlu0 %5020
  %5022 = vrot.lane.b32.xlu0 %v4969, 64
  %v5023 = vpop.permute.xlu0 %5022
  %5024 = vrot.lane.b32.xlu0 %v4971, 64
  %v5025 = vpop.permute.xlu0 %5024
  %5026 = vrot.lane.b32.xlu0 %v4973, 64
  %v5027 = vpop.permute.xlu0 %5026
  %5028 = vrot.lane.b32.xlu0 %v4975, 64
  %v5029 = vpop.permute.xlu0 %5028
  %5030 = vrot.lane.b32.xlu0 %v4977, 64
  %v5031 = vpop.permute.xlu0 %5030
  %5032 = vrot.lane.b32.xlu0 %v4979, 64
  %v5033 = vpop.permute.xlu0 %5032
  %5034 = vrot.lane.b32.xlu0 %v4981, 64
  %v5035 = vpop.permute.xlu0 %5034
  %5036 = vrot.lane.b32.xlu0 %v4983, 64
  %v5037 = vpop.permute.xlu0 %5036
  %5038 = vrot.lane.b32.xlu0 %v4985, 64
  %v5039 = vpop.permute.xlu0 %5038
  %5040 = vrot.lane.b32.xlu0 %v4987, 64
  %v5041 = vpop.permute.xlu0 %5040
  %v5069 = vadd.f32 %v4908, %v4989
  %v5070 = vadd.f32 %v4909, %v4991
  %v5071 = vadd.f32 %v4910, %v4993
  %v5072 = vadd.f32 %v4911, %v4995
  %v5073 = vadd.f32 %v4912, %v4997
  %v5074 = vadd.f32 %v4913, %v4999
  %v5075 = vadd.f32 %v4914, %v5001
  %v5076 = vadd.f32 %v4915, %v5003
  %v5077 = vadd.f32 %v4916, %v5005
  %v5078 = vadd.f32 %v4917, %v5007
  %v5079 = vadd.f32 %v4918, %v5009
  %v5080 = vadd.f32 %v4919, %v5011
  %v5081 = vadd.f32 %v4920, %v5013
  %v5082 = vadd.f32 %v4921, %v5015
  %v5083 = vadd.f32 %v4922, %v5017
  %v5084 = vadd.f32 %v4923, %v5019
  %v5085 = vadd.f32 %v4924, %v5021
  %v5086 = vadd.f32 %v4925, %v5023
  %v5087 = vadd.f32 %v4926, %v5025
  %v5088 = vadd.f32 %v4927, %v5027
  %v5089 = vadd.f32 %v4928, %v5029
  %v5090 = vadd.f32 %v4929, %v5031
  %v5091 = vadd.f32 %v4930, %v5033
  %v5092 = vadd.f32 %v4931, %v5035
  %v5093 = vadd.f32 %v4932, %v5037
  %v5094 = vadd.f32 %v4933, %v5039
  %v5095 = vadd.f32 %v4934, %v5041
  %v5123 = vrot.slane %v4669, 6
  %v5124 = vrot.slane %v4675, 6
  %v5125 = vsel %vm2070, %v5123, %v5124
  %v5126 = vrot.slane %v4679, 6
  %v5127 = vsel %vm2070, %v5124, %v5126
  %v5128 = vrot.slane %v4685, 6
  %v5129 = vsel %vm2070, %v5126, %v5128
  %v5130 = vrot.slane %v4689, 6
  %v5131 = vsel %vm2070, %v5128, %v5130
  %v5132 = vrot.slane %v4695, 6
  %v5133 = vsel %vm2070, %v5130, %v5132
  %v5134 = vrot.slane %v4699, 6
  %v5135 = vsel %vm2070, %v5132, %v5134
  %v5136 = vrot.slane %v4705, 6
  %v5137 = vsel %vm2070, %v5134, %v5136
  %v5138 = vrot.slane %v4709, 6
  %v5139 = vsel %vm2070, %v5136, %v5138
  %v5140 = vrot.slane %v4715, 6
  %v5141 = vsel %vm2070, %v5138, %v5140
  %v5142 = vrot.slane %v4719, 6
  %v5143 = vsel %vm2070, %v5140, %v5142
  %v5144 = vrot.slane %v4725, 6
  %v5145 = vsel %vm2070, %v5142, %v5144
  %v5146 = vrot.slane %v4729, 6
  %v5147 = vsel %vm2070, %v5144, %v5146
  %v5148 = vrot.slane %v4735, 6
  %v5149 = vsel %vm2070, %v5146, %v5148
  %v5150 = vrot.slane %v4739, 6
  %v5151 = vsel %vm2070, %v5148, %v5150
  %v5152 = vrot.slane %v4745, 6
  %v5153 = vsel %vm2070, %v5150, %v5152
  %v5154 = vrot.slane %v4749, 6
  %v5155 = vsel %vm2070, %v5152, %v5154
  %v5156 = vrot.slane %v4755, 6
  %v5157 = vsel %vm2070, %v5154, %v5156
  %v5158 = vrot.slane %v4759, 6
  %v5159 = vsel %vm2070, %v5156, %v5158
  %v5160 = vrot.slane %v4765, 6
  %v5161 = vsel %vm2070, %v5158, %v5160
  %v5162 = vrot.slane %v4769, 6
  %v5163 = vsel %vm2070, %v5160, %v5162
  %v5164 = vrot.slane %v4775, 6
  %v5165 = vsel %vm2070, %v5162, %v5164
  %v5166 = vrot.slane %v4779, 6
  %v5167 = vsel %vm2070, %v5164, %v5166
  %v5168 = vrot.slane %v4785, 6
  %v5169 = vsel %vm2070, %v5166, %v5168
  %v5170 = vrot.slane %v4789, 6
  %v5171 = vsel %vm2070, %v5168, %v5170
  %v5172 = vrot.slane %v4795, 6
  %v5173 = vsel %vm2070, %v5170, %v5172
  %v5174 = vrot.slane %v4799, 6
  %v5175 = vsel %vm2070, %v5172, %v5174
  %v5203 = vadd.f32 %v5069, %v5123
  %v5204 = vadd.f32 %v5070, %v5125
  %v5205 = vadd.f32 %v5071, %v5127
  %v5206 = vadd.f32 %v5072, %v5129
  %v5207 = vadd.f32 %v5073, %v5131
  %v5208 = vadd.f32 %v5074, %v5133
  %v5209 = vadd.f32 %v5075, %v5135
  %v5210 = vadd.f32 %v5076, %v5137
  %v5211 = vadd.f32 %v5077, %v5139
  %v5212 = vadd.f32 %v5078, %v5141
  %v5213 = vadd.f32 %v5079, %v5143
  %v5214 = vadd.f32 %v5080, %v5145
  %v5215 = vadd.f32 %v5081, %v5147
  %v5216 = vadd.f32 %v5082, %v5149
  %v5217 = vadd.f32 %v5083, %v5151
  %v5218 = vadd.f32 %v5084, %v5153
  %v5219 = vadd.f32 %v5085, %v5155
  %v5220 = vadd.f32 %v5086, %v5157
  %v5221 = vadd.f32 %v5087, %v5159
  %v5222 = vadd.f32 %v5088, %v5161
  %v5223 = vadd.f32 %v5089, %v5163
  %v5224 = vadd.f32 %v5090, %v5165
  %v5225 = vadd.f32 %v5091, %v5167
  %v5226 = vadd.f32 %v5092, %v5169
  %v5227 = vadd.f32 %v5093, %v5171
  %v5228 = vadd.f32 %v5094, %v5173
  %v5229 = vadd.f32 %v5095, %v5175
  %5244 = vrot.lane.b32.xlu0 %v5216, 64
  %v5245 = vpop.permute.xlu0 %5244
  %5246 = vrot.lane.b32.xlu0 %v5217, 64
  %v5247 = vpop.permute.xlu0 %5246
  %5248 = vrot.lane.b32.xlu0 %v5218, 64
  %v5249 = vpop.permute.xlu0 %5248
  %5250 = vrot.lane.b32.xlu0 %v5219, 64
  %v5251 = vpop.permute.xlu0 %5250
  %5252 = vrot.lane.b32.xlu0 %v5220, 64
  %v5253 = vpop.permute.xlu0 %5252
  %5254 = vrot.lane.b32.xlu0 %v5221, 64
  %v5255 = vpop.permute.xlu0 %5254
  %5256 = vrot.lane.b32.xlu0 %v5222, 64
  %v5257 = vpop.permute.xlu0 %5256
  %5258 = vrot.lane.b32.xlu0 %v5223, 64
  %v5259 = vpop.permute.xlu0 %5258
  %5260 = vrot.lane.b32.xlu0 %v5224, 64
  %v5261 = vpop.permute.xlu0 %5260
  %5262 = vrot.lane.b32.xlu0 %v5225, 64
  %v5263 = vpop.permute.xlu0 %5262
  %5264 = vrot.lane.b32.xlu0 %v5226, 64
  %v5265 = vpop.permute.xlu0 %5264
  %5266 = vrot.lane.b32.xlu0 %v5227, 64
  %v5267 = vpop.permute.xlu0 %5266
  %5268 = vrot.lane.b32.xlu0 %v5228, 64
  %v5269 = vpop.permute.xlu0 %5268
  %5270 = vrot.lane.b32.xlu0 %v5229, 64
  %v5271 = vpop.permute.xlu0 %5270
  %v5286 = vsel %vm319, %v5203, %v5245
  %v5287 = vsel %vm319, %v5204, %v5247
  %v5288 = vsel %vm319, %v5205, %v5249
  %v5289 = vsel %vm319, %v5206, %v5251
  %v5290 = vsel %vm319, %v5207, %v5253
  %v5291 = vsel %vm319, %v5208, %v5255
  %v5292 = vsel %vm319, %v5209, %v5257
  %v5293 = vsel %vm319, %v5210, %v5259
  %v5294 = vsel %vm319, %v5211, %v5261
  %v5295 = vsel %vm319, %v5212, %v5263
  %v5296 = vsel %vm319, %v5213, %v5265
  %v5297 = vsel %vm319, %v5214, %v5267
  %v5298 = vsel %vm319, %v5215, %v5269
  %v5299 = vsel %vm319, %v5216, %v5271
  %v5300 = vld [vmem:[%s3] sm:$0xff]
  %v5301 = vld [vmem:[%s3 + $0x8] sm:$0xff]
  %v5302 = vld [vmem:[%s3 + $0x10] sm:$0xff]
  %v5303 = vld [vmem:[%s3 + $0x18] sm:$0xff]
  %v5304 = vld [vmem:[%s3 + $0x20] sm:$0xff]
  %v5305 = vld [vmem:[%s3 + $0x28] sm:$0xff]
  %v5306 = vld [vmem:[%s3 + $0x30] sm:$0xff]
  %v5307 = vld [vmem:[%s3 + $0x38] sm:$0xff]
  %v5308 = vld [vmem:[%s3 + $0x40] sm:$0xff]
  %v5309 = vld [vmem:[%s3 + $0x48] sm:$0xff]
  %v5310 = vld [vmem:[%s3 + $0x50] sm:$0xff]
  %v5311 = vld [vmem:[%s3 + $0x58] sm:$0xff]
  %v5312 = vld [vmem:[%s3 + $0x60] sm:$0xff]
  %v5326 = vrot.slane %v5300, 3
  %v5327 = vrot.slane %v5301, 3
  %v5328 = vsel %vm1226, %v5326, %v5327
  %v5329 = vrot.slane %v5302, 3
  %v5330 = vsel %vm1226, %v5327, %v5329
  %v5331 = vrot.slane %v5303, 3
  %v5332 = vsel %vm1226, %v5329, %v5331
  %v5333 = vrot.slane %v5304, 3
  %v5334 = vsel %vm1226, %v5331, %v5333
  %v5335 = vrot.slane %v5305, 3
  %v5336 = vsel %vm1226, %v5333, %v5335
  %v5337 = vrot.slane %v5306, 3
  %v5338 = vsel %vm1226, %v5335, %v5337
  %v5339 = vrot.slane %v5307, 3
  %v5340 = vsel %vm1226, %v5337, %v5339
  %v5341 = vrot.slane %v5308, 3
  %v5342 = vsel %vm1226, %v5339, %v5341
  %v5343 = vrot.slane %v5309, 3
  %v5344 = vsel %vm1226, %v5341, %v5343
  %v5345 = vrot.slane %v5310, 3
  %v5346 = vsel %vm1226, %v5343, %v5345
  %v5347 = vrot.slane %v5311, 3
  %v5348 = vsel %vm1226, %v5345, %v5347
  %v5349 = vrot.slane %v5312, 3
  %v5350 = vsel %vm1226, %v5347, %v5349
  %v5365 = vmul.f32 %v5286, %v5326
  %v5366 = vmul.f32 %v5287, %v5328
  %v5367 = vmul.f32 %v5288, %v5330
  %v5368 = vmul.f32 %v5289, %v5332
  %v5369 = vmul.f32 %v5290, %v5334
  %v5370 = vmul.f32 %v5291, %v5336
  %v5371 = vmul.f32 %v5292, %v5338
  %v5372 = vmul.f32 %v5293, %v5340
  %v5373 = vmul.f32 %v5294, %v5342
  %v5374 = vmul.f32 %v5295, %v5344
  %v5375 = vmul.f32 %v5296, %v5346
  %v5376 = vmul.f32 %v5297, %v5348
  %v5377 = vmul.f32 %v5298, %v5350
  %v5378 = vmul.f32 %v5299, %v5349
  %v5393 = vrot.slane %v5365, 5
  %v5394 = vrot.slane %v5366, 5
  %v5395 = vsel %vm1881, %v5393, %v5394
  %v5396 = vrot.slane %v5367, 5
  %v5397 = vsel %vm1881, %v5394, %v5396
  %v5398 = vrot.slane %v5368, 5
  %v5399 = vsel %vm1881, %v5396, %v5398
  %v5400 = vrot.slane %v5369, 5
  %v5401 = vsel %vm1881, %v5398, %v5400
  %v5402 = vrot.slane %v5370, 5
  %v5403 = vsel %vm1881, %v5400, %v5402
  %v5404 = vrot.slane %v5371, 5
  %v5405 = vsel %vm1881, %v5402, %v5404
  %v5406 = vrot.slane %v5372, 5
  %v5407 = vsel %vm1881, %v5404, %v5406
  %v5408 = vrot.slane %v5373, 5
  %v5409 = vsel %vm1881, %v5406, %v5408
  %v5410 = vrot.slane %v5374, 5
  %v5411 = vsel %vm1881, %v5408, %v5410
  %v5412 = vrot.slane %v5375, 5
  %v5413 = vsel %vm1881, %v5410, %v5412
  %v5414 = vrot.slane %v5376, 5
  %v5415 = vsel %vm1881, %v5412, %v5414
  %v5416 = vrot.slane %v5377, 5
  %v5417 = vsel %vm1881, %v5414, %v5416
  %v5418 = vrot.slane %v5378, 5
  %v5419 = vsel %vm1881, %v5416, %v5418
  %v5433 = vadd.f32 %v5395, %v5397
  %v5434 = vadd.f32 %v5433, %v5399
  %v5435 = vadd.f32 %v5434, %v5401
  %v5436 = vadd.f32 %v5435, %v5403
  %v5437 = vadd.f32 %v5436, %v5405
  %v5438 = vadd.f32 %v5437, %v5407
  %v5439 = vadd.f32 %v5438, %v5409
  %v5440 = vadd.f32 %v5439, %v5411
  %v5441 = vadd.f32 %v5440, %v5413
  %v5442 = vadd.f32 %v5441, %v5415
  %v5443 = vadd.f32 %v5442, %v5417
  %v5444 = vadd.f32 %v5443, %v5419
  %v5445 = vrot.slane %v5444, 4
  %v5446 = vadd.f32 %v5444, %v5445
  %v5447 = vrot.slane %v5446, 2
  %v5448 = vadd.f32 %v5446, %v5447
  %v5449 = vrot.slane %v5448, 1
  %v5450 = vadd.f32 %v5448, %v5449
  %5451 = vrot.lane.b32.xlu0 %v5450, 64
  %v5452 = vpop.permute.xlu0 %5451
  %v5453 = vadd.f32 %v5450, %v5452
  %v5454 = vmul.f32 %v5453, 0.0078125
  %v5455 = vlaneseq
  %v5456 = vshrl.u32 %v5455, 7
  %v5457 = vsub.s32 0, %v5456
  %v5458 = vrot.slane %v5454, %v5457
  %v5459 = vsub.f32 %v5286, %v5458
  %v5460 = vsub.f32 %v5287, %v5458
  %v5461 = vsub.f32 %v5288, %v5458
  %v5462 = vsub.f32 %v5289, %v5458
  %v5463 = vsub.f32 %v5290, %v5458
  %v5464 = vsub.f32 %v5291, %v5458
  %v5465 = vsub.f32 %v5292, %v5458
  %v5466 = vsub.f32 %v5293, %v5458
  %v5467 = vsub.f32 %v5294, %v5458
  %v5468 = vsub.f32 %v5295, %v5458
  %v5469 = vsub.f32 %v5296, %v5458
  %v5470 = vsub.f32 %v5297, %v5458
  %v5471 = vsub.f32 %v5298, %v5458
  %v5472 = vsub.f32 %v5299, %v5458
  %v5473 = vmul.f32 %v5459, %v5326
  %v5474 = vmul.f32 %v5460, %v5328
  %v5475 = vmul.f32 %v5461, %v5330
  %v5476 = vmul.f32 %v5462, %v5332
  %v5477 = vmul.f32 %v5463, %v5334
  %v5478 = vmul.f32 %v5464, %v5336
  %v5479 = vmul.f32 %v5465, %v5338
  %v5480 = vmul.f32 %v5466, %v5340
  %v5481 = vmul.f32 %v5467, %v5342
  %v5482 = vmul.f32 %v5468, %v5344
  %v5483 = vmul.f32 %v5469, %v5346
  %v5484 = vmul.f32 %v5470, %v5348
  %v5485 = vmul.f32 %v5471, %v5350
  %v5486 = vmul.f32 %v5472, %v5349
  %v5487 = vmul.f32 %v5473, %v5473
  %v5488 = vmul.f32 %v5474, %v5474
  %v5489 = vmul.f32 %v5475, %v5475
  %v5490 = vmul.f32 %v5476, %v5476
  %v5491 = vmul.f32 %v5477, %v5477
  %v5492 = vmul.f32 %v5478, %v5478
  %v5493 = vmul.f32 %v5479, %v5479
  %v5494 = vmul.f32 %v5480, %v5480
  %v5495 = vmul.f32 %v5481, %v5481
  %v5496 = vmul.f32 %v5482, %v5482
  %v5497 = vmul.f32 %v5483, %v5483
  %v5498 = vmul.f32 %v5484, %v5484
  %v5499 = vmul.f32 %v5485, %v5485
  %v5500 = vmul.f32 %v5486, %v5486
  %v5515 = vrot.slane %v5487, 5
  %v5516 = vrot.slane %v5488, 5
  %v5517 = vsel %vm1881, %v5515, %v5516
  %v5518 = vrot.slane %v5489, 5
  %v5519 = vsel %vm1881, %v5516, %v5518
  %v5520 = vrot.slane %v5490, 5
  %v5521 = vsel %vm1881, %v5518, %v5520
  %v5522 = vrot.slane %v5491, 5
  %v5523 = vsel %vm1881, %v5520, %v5522
  %v5524 = vrot.slane %v5492, 5
  %v5525 = vsel %vm1881, %v5522, %v5524
  %v5526 = vrot.slane %v5493, 5
  %v5527 = vsel %vm1881, %v5524, %v5526
  %v5528 = vrot.slane %v5494, 5
  %v5529 = vsel %vm1881, %v5526, %v5528
  %v5530 = vrot.slane %v5495, 5
  %v5531 = vsel %vm1881, %v5528, %v5530
  %v5532 = vrot.slane %v5496, 5
  %v5533 = vsel %vm1881, %v5530, %v5532
  %v5534 = vrot.slane %v5497, 5
  %v5535 = vsel %vm1881, %v5532, %v5534
  %v5536 = vrot.slane %v5498, 5
  %v5537 = vsel %vm1881, %v5534, %v5536
  %v5538 = vrot.slane %v5499, 5
  %v5539 = vsel %vm1881, %v5536, %v5538
  %v5540 = vrot.slane %v5500, 5
  %v5541 = vsel %vm1881, %v5538, %v5540
  %v5555 = vadd.f32 %v5517, %v5519
  %v5556 = vadd.f32 %v5555, %v5521
  %v5557 = vadd.f32 %v5556, %v5523
  %v5558 = vadd.f32 %v5557, %v5525
  %v5559 = vadd.f32 %v5558, %v5527
  %v5560 = vadd.f32 %v5559, %v5529
  %v5561 = vadd.f32 %v5560, %v5531
  %v5562 = vadd.f32 %v5561, %v5533
  %v5563 = vadd.f32 %v5562, %v5535
  %v5564 = vadd.f32 %v5563, %v5537
  %v5565 = vadd.f32 %v5564, %v5539
  %v5566 = vadd.f32 %v5565, %v5541
  %v5567 = vrot.slane %v5566, 4
  %v5568 = vadd.f32 %v5566, %v5567
  %v5569 = vrot.slane %v5568, 2
  %v5570 = vadd.f32 %v5568, %v5569
  %v5571 = vrot.slane %v5570, 1
  %v5572 = vadd.f32 %v5570, %v5571
  %5573 = vrot.lane.b32.xlu0 %v5572, 64
  %v5574 = vpop.permute.xlu0 %5573
  %v5575 = vadd.f32 %v5572, %v5574
  %v5576 = vmul.f32 %v5575, 0.0078125
  %v5577 = vadd.f32 %v5576, 1e-05
  %v5578 = vrsqrt.pop %v5577
  %v5579 = vld [vmem:[%s8] sm:$0x1]
  %v5580 = vmul.f32 %v5578, %v5579
  %v5581 = vlaneseq
  %v5582 = vshrl.u32 %v5581, 7
  %v5583 = vsub.s32 0, %v5582
  %v5584 = vrot.slane %v5580, %v5583
  %v5585 = vmul.f32 %v5459, %v5584
  %v5586 = vmul.f32 %v5460, %v5584
  %v5587 = vmul.f32 %v5461, %v5584
  %v5588 = vmul.f32 %v5462, %v5584
  %v5589 = vmul.f32 %v5463, %v5584
  %v5590 = vmul.f32 %v5464, %v5584
  %v5591 = vmul.f32 %v5465, %v5584
  %v5592 = vmul.f32 %v5466, %v5584
  %v5593 = vmul.f32 %v5467, %v5584
  %v5594 = vmul.f32 %v5468, %v5584
  %v5595 = vmul.f32 %v5469, %v5584
  %v5596 = vmul.f32 %v5470, %v5584
  %v5597 = vmul.f32 %v5471, %v5584
  %v5598 = vmul.f32 %v5472, %v5584
  %v5599 = vld [vmem:[%s9] sm:$0x1]
  %v5601 = vlaneseq
  %v5602 = vshrl.u32 %v5601, 7
  %v5603 = vsub.s32 0, %v5602
  %v5604 = vrot.slane %v5599, %v5603
  %v5606 = vadd.f32 %v5585, %v5604
  %v5607 = vadd.f32 %v5586, %v5604
  %v5608 = vadd.f32 %v5587, %v5604
  %v5609 = vadd.f32 %v5588, %v5604
  %v5610 = vadd.f32 %v5589, %v5604
  %v5611 = vadd.f32 %v5590, %v5604
  %v5612 = vadd.f32 %v5591, %v5604
  %v5613 = vadd.f32 %v5592, %v5604
  %v5614 = vadd.f32 %v5593, %v5604
  %v5615 = vadd.f32 %v5594, %v5604
  %v5616 = vadd.f32 %v5595, %v5604
  %v5617 = vadd.f32 %v5596, %v5604
  %v5618 = vadd.f32 %v5597, %v5604
  %v5619 = vadd.f32 %v5598, %v5604
  %v5620 = vld [vmem:[%s1] sm:$0xff]
  %v5621 = vld [vmem:[%s1 + $0x8] sm:$0xff]
  %v5622 = vld [vmem:[%s1 + $0x10] sm:$0xff]
  %v5623 = vld [vmem:[%s1 + $0x18] sm:$0xff]
  %v5624 = vld [vmem:[%s1 + $0x20] sm:$0xff]
  %v5625 = vld [vmem:[%s1 + $0x28] sm:$0xff]
  %v5626 = vld [vmem:[%s1 + $0x30] sm:$0xff]
  %v5627 = vld [vmem:[%s1 + $0x38] sm:$0xff]
  %v5628 = vld [vmem:[%s1 + $0x40] sm:$0xff]
  %v5629 = vld [vmem:[%s1 + $0x48] sm:$0xff]
  %v5630 = vld [vmem:[%s1 + $0x50] sm:$0xff]
  %v5631 = vld [vmem:[%s1 + $0x58] sm:$0xff]
  %v5632 = vld [vmem:[%s1 + $0x60] sm:$0xff]
  %v5646 = vrot.slane %v5620, 3
  %v5647 = vrot.slane %v5621, 3
  %v5648 = vsel %vm1226, %v5646, %v5647
  %v5649 = vrot.slane %v5622, 3
  %v5650 = vsel %vm1226, %v5647, %v5649
  %v5651 = vrot.slane %v5623, 3
  %v5652 = vsel %vm1226, %v5649, %v5651
  %v5653 = vrot.slane %v5624, 3
  %v5654 = vsel %vm1226, %v5651, %v5653
  %v5655 = vrot.slane %v5625, 3
  %v5656 = vsel %vm1226, %v5653, %v5655
  %v5657 = vrot.slane %v5626, 3
  %v5658 = vsel %vm1226, %v5655, %v5657
  %v5659 = vrot.slane %v5627, 3
  %v5660 = vsel %vm1226, %v5657, %v5659
  %v5661 = vrot.slane %v5628, 3
  %v5662 = vsel %vm1226, %v5659, %v5661
  %v5663 = vrot.slane %v5629, 3
  %v5664 = vsel %vm1226, %v5661, %v5663
  %v5665 = vrot.slane %v5630, 3
  %v5666 = vsel %vm1226, %v5663, %v5665
  %v5667 = vrot.slane %v5631, 3
  %v5668 = vsel %vm1226, %v5665, %v5667
  %v5669 = vrot.slane %v5632, 3
  %v5670 = vsel %vm1226, %v5667, %v5669
  %v5685 = vadd.f32 %v5606, %v5646
  %v5686 = vadd.f32 %v5607, %v5648
  %v5687 = vadd.f32 %v5608, %v5650
  %v5688 = vadd.f32 %v5609, %v5652
  %v5689 = vadd.f32 %v5610, %v5654
  %v5690 = vadd.f32 %v5611, %v5656
  %v5691 = vadd.f32 %v5612, %v5658
  %v5692 = vadd.f32 %v5613, %v5660
  %v5693 = vadd.f32 %v5614, %v5662
  %v5694 = vadd.f32 %v5615, %v5664
  %v5695 = vadd.f32 %v5616, %v5666
  %v5696 = vadd.f32 %v5617, %v5668
  %v5697 = vadd.f32 %v5618, %v5670
  %v5698 = vadd.f32 %v5619, %v5669
  %5699 = vst [vmem:[%s10 - $0x5] sm:$0xe0] %v5685
  %5700 = vst [vmem:[%s10 + $0x3] sm:$0xff] %v5686
  %5701 = vst [vmem:[%s10 + $0xb] sm:$0xff] %v5687
  %5702 = vst [vmem:[%s10 + $0x13] sm:$0xff] %v5688
  %5703 = vst [vmem:[%s10 + $0x1b] sm:$0xff] %v5689
  %5704 = vst [vmem:[%s10 + $0x23] sm:$0xff] %v5690
  %5705 = vst [vmem:[%s10 + $0x2b] sm:$0xff] %v5691
  %5706 = vst [vmem:[%s10 + $0x33] sm:$0xff] %v5692
  %5707 = vst [vmem:[%s10 + $0x3b] sm:$0xff] %v5693
  %5708 = vst [vmem:[%s10 + $0x43] sm:$0xff] %v5694
  %5709 = vst [vmem:[%s10 + $0x4b] sm:$0xff] %v5695
  %5710 = vst [vmem:[%s10 + $0x53] sm:$0xff] %v5696
  %5711 = vst [vmem:[%s10 + $0x5b] sm:$0xff] %v5697
  %5712 = vst [vmem:[%s10 + $0x63] sm:$0x1f] %v5698
  // Predicated region
  $region42: #{residual_block_pallas.1} parent=0 // pred_check
    _
  $region43: #{residual_block_pallas.1} parent=0 // pred_check_branch
    %5714 = sbr.rel (0) target = $region45
  $region44: #{residual_block_pallas.1} parent=0 // pred_region
    _
  $region45: #{residual_block_pallas.1} parent=0 // pred_fallthru
    _
  // Predicated region
  $region46: #{residual_block_pallas.1} parent=0 // pred_check
    _
  $region47: #{residual_block_pallas.1} parent=0 // pred_check_branch
    %5716 = sbr.rel (0) target = $region49
  $region48: #{residual_block_pallas.1} parent=0 // pred_region
    _
  $region49: #{residual_block_pallas.1} parent=0 // pred_fallthru
    _

</llo_original>
